<compile_context>
chip_gen: v6e
topology: v6e:2x2x1
jax: 0.10.0
libtpu: 0.0.40
codegen_flags: <defaults>
</compile_context>

<pallas_src>
import functools

import jax
import jax.numpy as jnp
from jax import lax
from jax.experimental import pallas as pl
from jax.experimental.pallas import tpu as pltpu

HI = jax.lax.Precision.HIGHEST  # only where cancellation matters (q.k dot)


# ---------------------------------------------------------------------------
# Fused kernel: projections + attention for one batch element
# ---------------------------------------------------------------------------
def _fused_kernel(*args, temperature, use_spk, use_prior, use_mask):
    # ---- unpack refs (inputs..., outputs..., scratch...) ------------------
    idx = 0
    q_ref = args[idx]; idx += 1          # (1, T1, Cmel)
    k_ref = args[idx]; idx += 1          # (1, T2, Ctext)
    spk_ref = prior_ref = mask_ref = None
    if use_spk:
        spk_ref = args[idx]; idx += 1    # (1, 1, Ctext)
    if use_prior:
        prior_ref = args[idx]; idx += 1  # (1, T1, T2)
    if use_mask:
        mask_ref = args[idx]; idx += 1   # (1, 1, T2) int32, nonzero = padded
    (kw1_ref, kb1_ref, kw2_ref, kb2_ref,
     qw1_ref, qb1_ref, qw2_ref, qb2_ref, qw3_ref, qb3_ref) = args[idx:idx + 10]
    idx += 10
    if use_spk:
        kspkw_ref, kspkb_ref, qspkw_ref, qspkb_ref = args[idx:idx + 4]
        idx += 4
    attn_ref, logp_ref = args[idx], args[idx + 1]
    kpad_ref, qpad_ref = args[idx + 2], args[idx + 3]   # VMEM conv-pad scratch

    f32 = jnp.float32
    T1 = q_ref.shape[1]
    T2 = k_ref.shape[1]

    def conv3(pad_ref, x, w1_ref, b_ref):
        # Conv1d(kernel=3, padding=1) over time as 3 shifted MXU matmuls on a
        # zero-padded (T+2, Cin) VMEM scratch (default MXU precision).
        T = x.shape[0]
        pad_ref[...] = jnp.zeros_like(pad_ref)      # zero edge rows
        pad_ref[1:T + 1, :] = x
        xp = pad_ref[...]                            # (T+2, Cin)
        # TODO(synk): pack the 3 taps into a single (T,3*Cin)@(3*Cin,Chid)
        # im2col matmul once unaligned lane-concat lowering is verified.
        return (jnp.dot(xp[0:T], w1_ref[0], preferred_element_type=f32)
                + jnp.dot(xp[1:T + 1], w1_ref[1], preferred_element_type=f32)
                + jnp.dot(xp[2:T + 2], w1_ref[2], preferred_element_type=f32)
                + b_ref[...])

    # ---- optional speaker conditioning ------------------------------------
    k_in = k_ref[0].astype(f32)                      # (T2, Ctext)
    q_in = q_ref[0].astype(f32)                      # (T1, Cmel)
    if use_spk:
        spk = spk_ref[0].astype(f32)                 # (1, Ctext)
        k_in = k_in + (jnp.dot(spk, kspkw_ref[...], preferred_element_type=f32)
                       + kspkb_ref[...])
        q_in = q_in + (jnp.dot(spk, qspkw_ref[...], preferred_element_type=f32)
                       + qspkb_ref[...])

    # ---- key projection:   Conv3 -> ReLU -> Conv1 -------------------------
    h = jnp.maximum(conv3(kpad_ref, k_in, kw1_ref, kb1_ref), 0.0)
    k_enc = jnp.dot(h, kw2_ref[...], preferred_element_type=f32) + kb2_ref[...]

    # ---- query projection: Conv3 -> ReLU -> Conv1 -> ReLU -> Conv1 --------
    h = jnp.maximum(conv3(qpad_ref, q_in, qw1_ref, qb1_ref), 0.0)
    h = jnp.maximum(jnp.dot(h, qw2_ref[...], preferred_element_type=f32)
                    + qb2_ref[...], 0.0)
    q_enc = jnp.dot(h, qw3_ref[...], preferred_element_type=f32) + qb3_ref[...]

    # ---- attention: -T * (||q||^2 + ||k||^2 - 2 q.k) ----------------------
    qk = lax.dot_general(q_enc, k_enc, (((1,), (1,)), ((), ())),
                         preferred_element_type=f32, precision=HI)     # (T1,T2)
    Catt = k_enc.shape[1]
    # ||k||^2 as a (1,T2) row via a tiny K=Catt matmul (no K=1 (T1,T2) drain).
    k2_row = lax.dot_general(jnp.ones((1, Catt), f32), k_enc * k_enc,
                             (((1,), (1,)), ((), ())),
                             preferred_element_type=f32, precision=HI)  # (1,T2)
    raw = -temperature * (k2_row - 2.0 * qk)
    if not use_prior:
        # ||q||^2 is a per-row constant: it cancels in log_softmax/softmax, so
        # it is only needed when the raw logits are themselves the logprob out.
        q2 = jnp.sum(q_enc * q_enc, axis=-1, keepdims=True)             # (T1,1)
        raw = raw - temperature * q2

    # ---- prior, logprob, mask, softmax ------------------------------------
    if use_prior:
        m = jnp.max(raw, axis=-1, keepdims=True)
        e = jnp.exp(raw - m)
        denom = jnp.sum(e, axis=-1, keepdims=True)
        prior_eps = prior_ref[0] + 1e-8
        logp_ref[0] = (raw - m - jnp.log(denom)
                       + jnp.log(prior_eps)).astype(logp_ref.dtype)
        # softmax(log_softmax(raw) + log(prior)) == (e * prior) / sum(e * prior)
        w = e * prior_eps
    else:
        logp_ref[0] = raw.astype(logp_ref.dtype)
        m = jnp.max(raw, axis=-1, keepdims=True)
        w = jnp.exp(raw - m)

    if use_mask:
        keep = mask_ref[0] == 0                      # (1, T2), broadcast over T1
        w = jnp.where(keep, w, 0.0)                  # mask by zeroing, no exp(-inf)
    attn_ref[0] = (w / jnp.sum(w, axis=-1, keepdims=True)).astype(attn_ref.dtype)


# ---------------------------------------------------------------------------
# Wrapper
# ---------------------------------------------------------------------------
def alignment_encoder_forward(queries, keys, params, temperature,
                              mask=None, attn_prior=None, speaker_embed=None):
    """queries: (B, n_mel, T1), keys: (B, n_text, T2)  -- PyTorch NCW layout."""
    B, Cmel, T1 = queries.shape
    _, Ctext, T2 = keys.shape

    q_tc = jnp.transpose(queries, (0, 2, 1)).astype(jnp.float32)   # (B,T1,Cmel)
    k_tc = jnp.transpose(keys, (0, 2, 1)).astype(jnp.float32)      # (B,T2,Ctext)

    use_spk = speaker_embed is not None
    use_prior = attn_prior is not None
    use_mask = mask is not None
    p = params

    inputs = [q_tc, k_tc]
    in_specs = [pl.BlockSpec((1, T1, Cmel), lambda b: (b, 0, 0)),
                pl.BlockSpec((1, T2, Ctext), lambda b: (b, 0, 0))]
    if use_spk:
        inputs.append(speaker_embed.astype(jnp.float32).reshape(B, 1, Ctext))
        in_specs.append(pl.BlockSpec((1, 1, Ctext), lambda b: (b, 0, 0)))
    if use_prior:
        inputs.append(attn_prior.astype(jnp.float32))
        in_specs.append(pl.BlockSpec((1, T1, T2), lambda b: (b, 0, 0)))
    if use_mask:
        inputs.append(mask.astype(jnp.int32).reshape(B, 1, T2))
        in_specs.append(pl.BlockSpec((1, 1, T2), lambda b: (b, 0, 0)))

    weights = [p["key_w1"], p["key_b1"], p["key_w2"], p["key_b2"],
               p["q_w1"], p["q_b1"], p["q_w2"], p["q_b2"],
               p["q_w3"], p["q_b3"]]
    if use_spk:
        weights += [p["key_spk_w"], p["key_spk_b"],
                    p["query_spk_w"], p["query_spk_b"]]
    for w in weights:
        # constant block index -> weights DMAed once, resident across the grid
        in_specs.append(pl.BlockSpec(w.shape, lambda b, n=w.ndim: (0,) * n))
    inputs += weights

    kern = functools.partial(_fused_kernel, temperature=float(temperature),
                             use_spk=use_spk, use_prior=use_prior,
                             use_mask=use_mask)
    attn, logp = pl.pallas_call(
        kern,
        out_shape=(jax.ShapeDtypeStruct((B, T1, T2), jnp.float32),
                   jax.ShapeDtypeStruct((B, T1, T2), jnp.float32)),
        grid=(B,),
        in_specs=in_specs,
        out_specs=(pl.BlockSpec((1, T1, T2), lambda b: (b, 0, 0)),
                   pl.BlockSpec((1, T1, T2), lambda b: (b, 0, 0))),
        scratch_shapes=[pltpu.VMEM((T2 + 2, Ctext), jnp.float32),
                        pltpu.VMEM((T1 + 2, Cmel), jnp.float32)],
        compiler_params=pltpu.CompilerParams(dimension_semantics=("parallel",)),
    )(*inputs)
    # TODO(synk): for very long mel sequences whose (T1,T2) tiles overflow scoped
    # VMEM (esp. v7x's 64 MiB), add a T1 tile axis to the grid and keep k_enc in
    # a persistent VMEM scratch computed at tile 0.
    return attn[:, None], logp[:, None]   # B x 1 x T1 x T2


# ---------------------------------------------------------------------------
# Deterministic parameter init (shapes follow the PyTorch module __init__)
# ---------------------------------------------------------------------------
def init_params(key, n_mel, n_att, n_text):
    ks = jax.random.split(key, 14)
    w = lambda k, s: (0.1 * jax.random.normal(k, s)).astype(jnp.float32)
    return {
        # key_proj: Conv(n_text -> 2*n_text, k=3), Conv(2*n_text -> n_att, k=1)
        "key_w1": w(ks[0], (3, n_text, 2 * n_text)),
        "key_b1": w(ks[1], (1, 2 * n_text)),
        "key_w2": w(ks[2], (2 * n_text, n_att)),
        "key_b2": w(ks[3], (1, n_att)),
        # query_proj: Conv(n_mel -> 2*n_mel, k=3), Conv(2*n_mel -> n_mel, k=1),
        #             Conv(n_mel -> n_att, k=1)
        "q_w1": w(ks[4], (3, n_mel, 2 * n_mel)),
        "q_b1": w(ks[5], (1, 2 * n_mel)),
        "q_w2": w(ks[6], (2 * n_mel, n_mel)),
        "q_b2": w(ks[7], (1, n_mel)),
        "q_w3": w(ks[8], (n_mel, n_att)),
        "q_b3": w(ks[9], (1, n_att)),
        # speaker projections (Linear), stored already transposed for x @ W
        "key_spk_w": w(ks[10], (n_text, n_text)),
        "key_spk_b": w(ks[11], (1, n_text)),
        "query_spk_w": w(ks[12], (n_text, n_mel)),
        "query_spk_b": w(ks[13], (1, n_mel)),
    }


# ---------------------------------------------------------------------------
# Pure-JAX reference (high precision, used only as a correctness check)
# ---------------------------------------------------------------------------
def ref_forward(queries, keys, params, temperature, mask=None, prior=None, spk=None):
    q_tc = jnp.transpose(queries, (0, 2, 1)).astype(jnp.float32)
    k_tc = jnp.transpose(keys, (0, 2, 1)).astype(jnp.float32)
    p = params

    def conv3(x, w, b):
        T = x.shape[1]
        xp = jnp.pad(x, ((0, 0), (1, 1), (0, 0)))
        return (jnp.einsum("btc,cd->btd", xp[:, 0:T], w[0], precision=HI)
                + jnp.einsum("btc,cd->btd", xp[:, 1:T + 1], w[1], precision=HI)
                + jnp.einsum("btc,cd->btd", xp[:, 2:T + 2], w[2], precision=HI) + b)

    mm = lambda x, w: jnp.einsum("btc,cd->btd", x, w, precision=HI)
    k_in, q_in = k_tc, q_tc
    if spk is not None:
        k_in = k_in + (jnp.einsum("bc,cd->bd", spk, p["key_spk_w"], precision=HI)
                       + p["key_spk_b"])[:, None, :]
        q_in = q_in + (jnp.einsum("bc,cd->bd", spk, p["query_spk_w"], precision=HI)
                       + p["query_spk_b"])[:, None, :]
    k_enc = mm(jax.nn.relu(conv3(k_in, p["key_w1"], p["key_b1"])), p["key_w2"]) + p["key_b2"]
    q_enc = conv3(q_in, p["q_w1"], p["q_b1"])
    q_enc = jax.nn.relu(mm(jax.nn.relu(q_enc), p["q_w2"]) + p["q_b2"])
    q_enc = mm(q_enc, p["q_w3"]) + p["q_b3"]
    dist = jnp.sum((q_enc[:, :, None, :] - k_enc[:, None, :, :]) ** 2, axis=-1)
    attn = -temperature * dist
    if prior is not None:
        attn = jax.nn.log_softmax(attn, axis=-1) + jnp.log(prior + 1e-8)
    logp = attn
    if mask is not None:
        attn = jnp.where(mask[:, None, :] != 0, -jnp.inf, attn)
    attn = jax.nn.softmax(attn, axis=-1)
    return attn[:, None], logp[:, None]


# ---------------------------------------------------------------------------
if __name__ == "__main__":
    B, T1, T2 = 2, 24, 12
    n_mel, n_att, n_text = 16, 16, 32
    temperature = 0.0005

    root = jax.random.PRNGKey(0)
    k_par, k_q, k_k, k_p, k_s = jax.random.split(root, 5)
    params = init_params(k_par, n_mel, n_att, n_text)

    queries = jax.random.normal(k_q, (B, n_mel, T1), jnp.float32)   # B x C x T1
    keys = jax.random.normal(k_k, (B, n_text, T2), jnp.float32)     # B x C2 x T2
    attn_prior = jax.random.uniform(k_p, (B, T1, T2), jnp.float32) + 0.1
    speaker_embed = jax.random.normal(k_s, (B, n_text), jnp.float32)
    lengths = jnp.array([T2, 9])
    mask = (jnp.arange(T2)[None, :] >= lengths[:, None]).astype(jnp.int32)  # 1 = padded

    # Full-featured path: speaker embedding + attention prior + mask.
    attn, attn_logprob = alignment_encoder_forward(
        queries, keys, params, temperature,
        mask=mask, attn_prior=attn_prior, speaker_embed=speaker_embed)
    jax.block_until_ready((attn, attn_logprob))
    assert attn.shape == (B, 1, T1, T2) and attn_logprob.shape == (B, 1, T1, T2)
    ra, rl = ref_forward(queries, keys, params, temperature,
                         mask=mask, prior=attn_prior, spk=speaker_embed)
    assert bool(jnp.allclose(attn, ra, atol=1e-3, rtol=1e-3)), "attn mismatch (full)"
    assert bool(jnp.allclose(attn_logprob, rl, atol=1e-3, rtol=1e-3)), "logprob mismatch (full)"

    # Specialized path: prior / mask / speaker omitted -> not DMAed at all.
    attn2, logp2 = alignment_encoder_forward(queries, keys, params, temperature)
    jax.block_until_ready((attn2, logp2))
    ra2, rl2 = ref_forward(queries, keys, params, temperature)
    assert bool(jnp.allclose(attn2, ra2, atol=1e-3, rtol=1e-3)), "attn mismatch (plain)"
    assert bool(jnp.allclose(logp2, rl2, atol=1e-3, rtol=1e-3)), "logprob mismatch (plain)"

    print("KERNEL_OK")
</pallas_src>

<mosaic_0001>
module attributes {stable_mosaic.version = 11 : i64} {
  func.func @_fused_kernel(%arg0: i32, %arg1: memref<1x24x16xf32, #tpu.memory_space<vmem>>, %arg2: memref<1x12x32xf32, #tpu.memory_space<vmem>>, %arg3: memref<1x1x32xf32, #tpu.memory_space<vmem>>, %arg4: memref<1x24x12xf32, #tpu.memory_space<vmem>>, %arg5: memref<1x1x12xi32, #tpu.memory_space<vmem>>, %arg6: memref<3x32x64xf32, #tpu.memory_space<vmem>>, %arg7: memref<1x64xf32, #tpu.memory_space<vmem>>, %arg8: memref<64x16xf32, #tpu.memory_space<vmem>>, %arg9: memref<1x16xf32, #tpu.memory_space<vmem>>, %arg10: memref<3x16x32xf32, #tpu.memory_space<vmem>>, %arg11: memref<1x32xf32, #tpu.memory_space<vmem>>, %arg12: memref<32x16xf32, #tpu.memory_space<vmem>>, %arg13: memref<1x16xf32, #tpu.memory_space<vmem>>, %arg14: memref<16x16xf32, #tpu.memory_space<vmem>>, %arg15: memref<1x16xf32, #tpu.memory_space<vmem>>, %arg16: memref<32x32xf32, #tpu.memory_space<vmem>>, %arg17: memref<1x32xf32, #tpu.memory_space<vmem>>, %arg18: memref<32x16xf32, #tpu.memory_space<vmem>>, %arg19: memref<1x16xf32, #tpu.memory_space<vmem>>, %arg20: memref<1x24x12xf32, #tpu.memory_space<vmem>>, %arg21: memref<1x24x12xf32, #tpu.memory_space<vmem>>, %arg22: memref<14x32xf32, #tpu.memory_space<vmem>>, %arg23: memref<26x16xf32, #tpu.memory_space<vmem>>) attributes {dimension_semantics = [#tpu.dimension_semantics<parallel>], iteration_bounds = array<i64: 2>, scalar_prefetch = 0 : i64, scratch_operands = 2 : i64, tpu.core_type = #tpu.core_type<tc>, window_params = [{transform_indices = @transform_0, window_bounds = array<i64: 1, 24, 16>}, {transform_indices = @transform_1, window_bounds = array<i64: 1, 12, 32>}, {transform_indices = @transform_2, window_bounds = array<i64: 1, 1, 32>}, {transform_indices = @transform_3, window_bounds = array<i64: 1, 24, 12>}, {transform_indices = @transform_4, window_bounds = array<i64: 1, 1, 12>}, {pipeline_mode = #tpu.pipeline_mode<synchronous>, transform_indices = @transform_5, window_bounds = array<i64: 3, 32, 64>}, {pipeline_mode = #tpu.pipeline_mode<synchronous>, transform_indices = @transform_6, window_bounds = array<i64: 1, 64>}, {pipeline_mode = #tpu.pipeline_mode<synchronous>, transform_indices = @transform_7, window_bounds = array<i64: 64, 16>}, {pipeline_mode = #tpu.pipeline_mode<synchronous>, transform_indices = @transform_8, window_bounds = array<i64: 1, 16>}, {pipeline_mode = #tpu.pipeline_mode<synchronous>, transform_indices = @transform_9, window_bounds = array<i64: 3, 16, 32>}, {pipeline_mode = #tpu.pipeline_mode<synchronous>, transform_indices = @transform_10, window_bounds = array<i64: 1, 32>}, {pipeline_mode = #tpu.pipeline_mode<synchronous>, transform_indices = @transform_11, window_bounds = array<i64: 32, 16>}, {pipeline_mode = #tpu.pipeline_mode<synchronous>, transform_indices = @transform_12, window_bounds = array<i64: 1, 16>}, {pipeline_mode = #tpu.pipeline_mode<synchronous>, transform_indices = @transform_13, window_bounds = array<i64: 16, 16>}, {pipeline_mode = #tpu.pipeline_mode<synchronous>, transform_indices = @transform_14, window_bounds = array<i64: 1, 16>}, {pipeline_mode = #tpu.pipeline_mode<synchronous>, transform_indices = @transform_15, window_bounds = array<i64: 32, 32>}, {pipeline_mode = #tpu.pipeline_mode<synchronous>, transform_indices = @transform_16, window_bounds = array<i64: 1, 32>}, {pipeline_mode = #tpu.pipeline_mode<synchronous>, transform_indices = @transform_17, window_bounds = array<i64: 32, 16>}, {pipeline_mode = #tpu.pipeline_mode<synchronous>, transform_indices = @transform_18, window_bounds = array<i64: 1, 16>}, {transform_indices = @transform_19, window_bounds = array<i64: 1, 24, 12>}, {transform_indices = @transform_20, window_bounds = array<i64: 1, 24, 12>}]} {
    %c0 = arith.constant 0 : index
    %c0_0 = arith.constant 0 : index
    %c0_1 = arith.constant 0 : index
    %0 = vector.load %arg2[%c0, %c0_0, %c0_1] : memref<1x12x32xf32, #tpu.memory_space<vmem>>, vector<1x12x32xf32>
    %1 = vector.shape_cast %0 : vector<1x12x32xf32> to vector<12x32xf32>
    %c0_2 = arith.constant 0 : index
    %c0_3 = arith.constant 0 : index
    %c0_4 = arith.constant 0 : index
    %2 = vector.load %arg1[%c0_2, %c0_3, %c0_4] : memref<1x24x16xf32, #tpu.memory_space<vmem>>, vector<1x24x16xf32>
    %3 = vector.shape_cast %2 : vector<1x24x16xf32> to vector<24x16xf32>
    %c0_5 = arith.constant 0 : index
    %c0_6 = arith.constant 0 : index
    %c0_7 = arith.constant 0 : index
    %4 = vector.load %arg3[%c0_5, %c0_6, %c0_7] : memref<1x1x32xf32, #tpu.memory_space<vmem>>, vector<1x1x32xf32>
    %5 = vector.shape_cast %4 : vector<1x1x32xf32> to vector<1x32xf32>
    %c0_8 = arith.constant 0 : index
    %c0_9 = arith.constant 0 : index
    %6 = vector.load %arg16[%c0_8, %c0_9] : memref<32x32xf32, #tpu.memory_space<vmem>>, vector<32x32xf32>
    %cst = arith.constant dense<0.000000e+00> : vector<1x32xf32>
    %7 = tpu.matmul %5, %6, %cst {dimension_numbers = #tpu.dot_dimension_numbers<[1], [0], [0], [1], [0, 0, 1, 1], [], []>} : vector<1x32xf32>, vector<32x32xf32>, vector<1x32xf32> -> vector<1x32xf32>
    %c0_10 = arith.constant 0 : index
    %c0_11 = arith.constant 0 : index
    %8 = vector.load %arg17[%c0_10, %c0_11] : memref<1x32xf32, #tpu.memory_space<vmem>>, vector<1x32xf32>
    %9 = arith.addf %7, %8 : vector<1x32xf32>
    %10 = vector.broadcast %9 : vector<1x32xf32> to vector<12x32xf32>
    %11 = arith.addf %1, %10 : vector<12x32xf32>
    %c0_12 = arith.constant 0 : index
    %c0_13 = arith.constant 0 : index
    %12 = vector.load %arg18[%c0_12, %c0_13] : memref<32x16xf32, #tpu.memory_space<vmem>>, vector<32x16xf32>
    %cst_14 = arith.constant dense<0.000000e+00> : vector<1x16xf32>
    %13 = tpu.matmul %5, %12, %cst_14 {dimension_numbers = #tpu.dot_dimension_numbers<[1], [0], [0], [1], [0, 0, 1, 1], [], []>} : vector<1x32xf32>, vector<32x16xf32>, vector<1x16xf32> -> vector<1x16xf32>
    %c0_15 = arith.constant 0 : index
    %c0_16 = arith.constant 0 : index
    %14 = vector.load %arg19[%c0_15, %c0_16] : memref<1x16xf32, #tpu.memory_space<vmem>>, vector<1x16xf32>
    %15 = arith.addf %13, %14 : vector<1x16xf32>
    %16 = vector.broadcast %15 : vector<1x16xf32> to vector<24x16xf32>
    %17 = arith.addf %3, %16 : vector<24x16xf32>
    %cst_17 = arith.constant 0.000000e+00 : f32
    %18 = vector.broadcast %cst_17 : f32 to vector<14x32xf32>
    %c0_18 = arith.constant 0 : index
    %c0_19 = arith.constant 0 : index
    %19 = vector.load %arg22[%c0_18, %c0_19] : memref<14x32xf32, #tpu.memory_space<vmem>>, vector<14x32xf32>
    tpu.vector_store %arg22[%c0_18, %c0_19], %18 {strides = array<i32>} : memref<14x32xf32, #tpu.memory_space<vmem>>, vector<14x32xf32>,
    %c1 = arith.constant 1 : index
    %c0_20 = arith.constant 0 : index
    %20 = vector.load %arg22[%c1, %c0_20] : memref<14x32xf32, #tpu.memory_space<vmem>>, vector<12x32xf32>
    tpu.vector_store %arg22[%c1, %c0_20], %11 {strides = array<i32>} : memref<14x32xf32, #tpu.memory_space<vmem>>, vector<12x32xf32>,
    %c0_21 = arith.constant 0 : index
    %c0_22 = arith.constant 0 : index
    %21 = vector.load %arg22[%c0_21, %c0_22] : memref<14x32xf32, #tpu.memory_space<vmem>>, vector<14x32xf32>
    %22 = vector.extract_strided_slice %21 {offsets = [0, 0], sizes = [12, 32], strides = [1, 1]} : vector<14x32xf32> to vector<12x32xf32>
    %c0_23 = arith.constant 0 : index
    %c0_24 = arith.constant 0 : index
    %c0_25 = arith.constant 0 : index
    %23 = vector.load %arg6[%c0_23, %c0_24, %c0_25] : memref<3x32x64xf32, #tpu.memory_space<vmem>>, vector<1x32x64xf32>
    %24 = vector.shape_cast %23 : vector<1x32x64xf32> to vector<32x64xf32>
    %cst_26 = arith.constant dense<0.000000e+00> : vector<12x64xf32>
    %25 = tpu.matmul %22, %24, %cst_26 {dimension_numbers = #tpu.dot_dimension_numbers<[1], [0], [0], [1], [0, 0, 1, 1], [], []>} : vector<12x32xf32>, vector<32x64xf32>, vector<12x64xf32> -> vector<12x64xf32>
    %26 = vector.extract_strided_slice %21 {offsets = [1, 0], sizes = [12, 32], strides = [1, 1]} : vector<14x32xf32> to vector<12x32xf32>
    %c1_27 = arith.constant 1 : index
    %c0_28 = arith.constant 0 : index
    %c0_29 = arith.constant 0 : index
    %27 = vector.load %arg6[%c1_27, %c0_28, %c0_29] : memref<3x32x64xf32, #tpu.memory_space<vmem>>, vector<1x32x64xf32>
    %28 = vector.shape_cast %27 : vector<1x32x64xf32> to vector<32x64xf32>
    %cst_30 = arith.constant dense<0.000000e+00> : vector<12x64xf32>
    %29 = tpu.matmul %26, %28, %cst_30 {dimension_numbers = #tpu.dot_dimension_numbers<[1], [0], [0], [1], [0, 0, 1, 1], [], []>} : vector<12x32xf32>, vector<32x64xf32>, vector<12x64xf32> -> vector<12x64xf32>
    %30 = arith.addf %25, %29 : vector<12x64xf32>
    %31 = vector.extract_strided_slice %21 {offsets = [2, 0], sizes = [12, 32], strides = [1, 1]} : vector<14x32xf32> to vector<12x32xf32>
    %c2 = arith.constant 2 : index
    %c0_31 = arith.constant 0 : index
    %c0_32 = arith.constant 0 : index
    %32 = vector.load %arg6[%c2, %c0_31, %c0_32] : memref<3x32x64xf32, #tpu.memory_space<vmem>>, vector<1x32x64xf32>
    %33 = vector.shape_cast %32 : vector<1x32x64xf32> to vector<32x64xf32>
    %cst_33 = arith.constant dense<0.000000e+00> : vector<12x64xf32>
    %34 = tpu.matmul %31, %33, %cst_33 {dimension_numbers = #tpu.dot_dimension_numbers<[1], [0], [0], [1], [0, 0, 1, 1], [], []>} : vector<12x32xf32>, vector<32x64xf32>, vector<12x64xf32> -> vector<12x64xf32>
    %35 = arith.addf %30, %34 : vector<12x64xf32>
    %c0_34 = arith.constant 0 : index
    %c0_35 = arith.constant 0 : index
    %36 = vector.load %arg7[%c0_34, %c0_35] : memref<1x64xf32, #tpu.memory_space<vmem>>, vector<1x64xf32>
    %37 = vector.broadcast %36 : vector<1x64xf32> to vector<12x64xf32>
    %38 = arith.addf %35, %37 : vector<12x64xf32>
    %cst_36 = arith.constant 0.000000e+00 : f32
    %39 = vector.broadcast %cst_36 : f32 to vector<12x64xf32>
    %40 = arith.maximumf %38, %39 : vector<12x64xf32>
    %c0_37 = arith.constant 0 : index
    %c0_38 = arith.constant 0 : index
    %41 = vector.load %arg8[%c0_37, %c0_38] : memref<64x16xf32, #tpu.memory_space<vmem>>, vector<64x16xf32>
    %cst_39 = arith.constant dense<0.000000e+00> : vector<12x16xf32>
    %42 = tpu.matmul %40, %41, %cst_39 {dimension_numbers = #tpu.dot_dimension_numbers<[1], [0], [0], [1], [0, 0, 1, 1], [], []>} : vector<12x64xf32>, vector<64x16xf32>, vector<12x16xf32> -> vector<12x16xf32>
    %c0_40 = arith.constant 0 : index
    %c0_41 = arith.constant 0 : index
    %43 = vector.load %arg9[%c0_40, %c0_41] : memref<1x16xf32, #tpu.memory_space<vmem>>, vector<1x16xf32>
    %44 = vector.broadcast %43 : vector<1x16xf32> to vector<12x16xf32>
    %45 = arith.addf %42, %44 : vector<12x16xf32>
    %cst_42 = arith.constant 0.000000e+00 : f32
    %46 = vector.broadcast %cst_42 : f32 to vector<26x16xf32>
    %c0_43 = arith.constant 0 : index
    %c0_44 = arith.constant 0 : index
    %47 = vector.load %arg23[%c0_43, %c0_44] : memref<26x16xf32, #tpu.memory_space<vmem>>, vector<26x16xf32>
    tpu.vector_store %arg23[%c0_43, %c0_44], %46 {strides = array<i32>} : memref<26x16xf32, #tpu.memory_space<vmem>>, vector<26x16xf32>,
    %c1_45 = arith.constant 1 : index
    %c0_46 = arith.constant 0 : index
    %48 = vector.load %arg23[%c1_45, %c0_46] : memref<26x16xf32, #tpu.memory_space<vmem>>, vector<24x16xf32>
    tpu.vector_store %arg23[%c1_45, %c0_46], %17 {strides = array<i32>} : memref<26x16xf32, #tpu.memory_space<vmem>>, vector<24x16xf32>,
    %c0_47 = arith.constant 0 : index
    %c0_48 = arith.constant 0 : index
    %49 = vector.load %arg23[%c0_47, %c0_48] : memref<26x16xf32, #tpu.memory_space<vmem>>, vector<26x16xf32>
    %50 = vector.extract_strided_slice %49 {offsets = [0, 0], sizes = [24, 16], strides = [1, 1]} : vector<26x16xf32> to vector<24x16xf32>
    %c0_49 = arith.constant 0 : index
    %c0_50 = arith.constant 0 : index
    %c0_51 = arith.constant 0 : index
    %51 = vector.load %arg10[%c0_49, %c0_50, %c0_51] : memref<3x16x32xf32, #tpu.memory_space<vmem>>, vector<1x16x32xf32>
    %52 = vector.shape_cast %51 : vector<1x16x32xf32> to vector<16x32xf32>
    %cst_52 = arith.constant dense<0.000000e+00> : vector<24x32xf32>
    %53 = tpu.matmul %50, %52, %cst_52 {dimension_numbers = #tpu.dot_dimension_numbers<[1], [0], [0], [1], [0, 0, 1, 1], [], []>} : vector<24x16xf32>, vector<16x32xf32>, vector<24x32xf32> -> vector<24x32xf32>
    %54 = vector.extract_strided_slice %49 {offsets = [1, 0], sizes = [24, 16], strides = [1, 1]} : vector<26x16xf32> to vector<24x16xf32>
    %c1_53 = arith.constant 1 : index
    %c0_54 = arith.constant 0 : index
    %c0_55 = arith.constant 0 : index
    %55 = vector.load %arg10[%c1_53, %c0_54, %c0_55] : memref<3x16x32xf32, #tpu.memory_space<vmem>>, vector<1x16x32xf32>
    %56 = vector.shape_cast %55 : vector<1x16x32xf32> to vector<16x32xf32>
    %cst_56 = arith.constant dense<0.000000e+00> : vector<24x32xf32>
    %57 = tpu.matmul %54, %56, %cst_56 {dimension_numbers = #tpu.dot_dimension_numbers<[1], [0], [0], [1], [0, 0, 1, 1], [], []>} : vector<24x16xf32>, vector<16x32xf32>, vector<24x32xf32> -> vector<24x32xf32>
    %58 = arith.addf %53, %57 : vector<24x32xf32>
    %59 = vector.extract_strided_slice %49 {offsets = [2, 0], sizes = [24, 16], strides = [1, 1]} : vector<26x16xf32> to vector<24x16xf32>
    %c2_57 = arith.constant 2 : index
    %c0_58 = arith.constant 0 : index
    %c0_59 = arith.constant 0 : index
    %60 = vector.load %arg10[%c2_57, %c0_58, %c0_59] : memref<3x16x32xf32, #tpu.memory_space<vmem>>, vector<1x16x32xf32>
    %61 = vector.shape_cast %60 : vector<1x16x32xf32> to vector<16x32xf32>
    %cst_60 = arith.constant dense<0.000000e+00> : vector<24x32xf32>
    %62 = tpu.matmul %59, %61, %cst_60 {dimension_numbers = #tpu.dot_dimension_numbers<[1], [0], [0], [1], [0, 0, 1, 1], [], []>} : vector<24x16xf32>, vector<16x32xf32>, vector<24x32xf32> -> vector<24x32xf32>
    %63 = arith.addf %58, %62 : vector<24x32xf32>
    %c0_61 = arith.constant 0 : index
    %c0_62 = arith.constant 0 : index
    %64 = vector.load %arg11[%c0_61, %c0_62] : memref<1x32xf32, #tpu.memory_space<vmem>>, vector<1x32xf32>
    %65 = vector.broadcast %64 : vector<1x32xf32> to vector<24x32xf32>
    %66 = arith.addf %63, %65 : vector<24x32xf32>
    %cst_63 = arith.constant 0.000000e+00 : f32
    %67 = vector.broadcast %cst_63 : f32 to vector<24x32xf32>
    %68 = arith.maximumf %66, %67 : vector<24x32xf32>
    %c0_64 = arith.constant 0 : index
    %c0_65 = arith.constant 0 : index
    %69 = vector.load %arg12[%c0_64, %c0_65] : memref<32x16xf32, #tpu.memory_space<vmem>>, vector<32x16xf32>
    %cst_66 = arith.constant dense<0.000000e+00> : vector<24x16xf32>
    %70 = tpu.matmul %68, %69, %cst_66 {dimension_numbers = #tpu.dot_dimension_numbers<[1], [0], [0], [1], [0, 0, 1, 1], [], []>} : vector<24x32xf32>, vector<32x16xf32>, vector<24x16xf32> -> vector<24x16xf32>
    %c0_67 = arith.constant 0 : index
    %c0_68 = arith.constant 0 : index
    %71 = vector.load %arg13[%c0_67, %c0_68] : memref<1x16xf32, #tpu.memory_space<vmem>>, vector<1x16xf32>
    %72 = vector.broadcast %71 : vector<1x16xf32> to vector<24x16xf32>
    %73 = arith.addf %70, %72 : vector<24x16xf32>
    %cst_69 = arith.constant 0.000000e+00 : f32
    %74 = vector.broadcast %cst_69 : f32 to vector<24x16xf32>
    %75 = arith.maximumf %73, %74 : vector<24x16xf32>
    %c0_70 = arith.constant 0 : index
    %c0_71 = arith.constant 0 : index
    %76 = vector.load %arg14[%c0_70, %c0_71] : memref<16x16xf32, #tpu.memory_space<vmem>>, vector<16x16xf32>
    %cst_72 = arith.constant dense<0.000000e+00> : vector<24x16xf32>
    %77 = tpu.matmul %75, %76, %cst_72 {dimension_numbers = #tpu.dot_dimension_numbers<[1], [0], [0], [1], [0, 0, 1, 1], [], []>} : vector<24x16xf32>, vector<16x16xf32>, vector<24x16xf32> -> vector<24x16xf32>
    %c0_73 = arith.constant 0 : index
    %c0_74 = arith.constant 0 : index
    %78 = vector.load %arg15[%c0_73, %c0_74] : memref<1x16xf32, #tpu.memory_space<vmem>>, vector<1x16xf32>
    %79 = vector.broadcast %78 : vector<1x16xf32> to vector<24x16xf32>
    %80 = arith.addf %77, %79 : vector<24x16xf32>
    %cst_75 = arith.constant dense<0.000000e+00> : vector<24x12xf32>
    %81 = tpu.matmul %80, %45, %cst_75 {dimension_numbers = #tpu.dot_dimension_numbers<[1], [1], [0], [0], [0, 0, 1, 0], [], []>, precision = #tpu.contract_precision<fp32>} : vector<24x16xf32>, vector<12x16xf32>, vector<24x12xf32> -> vector<24x12xf32>
    %cst_76 = arith.constant 1.000000e+00 : f32
    %82 = vector.broadcast %cst_76 : f32 to vector<1x16xf32>
    %83 = arith.mulf %45, %45 : vector<12x16xf32>
    %cst_77 = arith.constant dense<0.000000e+00> : vector<1x12xf32>
    %84 = tpu.matmul %82, %83, %cst_77 {dimension_numbers = #tpu.dot_dimension_numbers<[1], [1], [0], [0], [0, 0, 1, 0], [], []>, precision = #tpu.contract_precision<fp32>} : vector<1x16xf32>, vector<12x16xf32>, vector<1x12xf32> -> vector<1x12xf32>
    %cst_78 = arith.constant 2.000000e+00 : f32
    %85 = vector.broadcast %cst_78 : f32 to vector<24x12xf32>
    %86 = arith.mulf %85, %81 : vector<24x12xf32>
    %87 = vector.broadcast %84 : vector<1x12xf32> to vector<24x12xf32>
    %88 = arith.subf %87, %86 : vector<24x12xf32>
    %cst_79 = arith.constant -5.000000e-04 : f32
    %89 = vector.broadcast %cst_79 : f32 to vector<24x12xf32>
    %90 = arith.mulf %89, %88 : vector<24x12xf32>
    %cst_80 = arith.constant dense<0xFF800000> : vector<24xf32>
    %91 = vector.multi_reduction <maximumf>, %90, %cst_80 [1] : vector<24x12xf32> to vector<24xf32>
    %92 = vector.shape_cast %91 : vector<24xf32> to vector<24x1xf32>
    %93 = vector.broadcast %92 : vector<24x1xf32> to vector<24x12xf32>
    %94 = arith.subf %90, %93 : vector<24x12xf32>
    %95 = math.exp %94 : vector<24x12xf32>
    %cst_81 = arith.constant dense<0.000000e+00> : vector<24xf32>
    %96 = vector.multi_reduction <add>, %95, %cst_81 [1] : vector<24x12xf32> to vector<24xf32>
    %97 = vector.shape_cast %96 : vector<24xf32> to vector<24x1xf32>
    %c0_82 = arith.constant 0 : index
    %c0_83 = arith.constant 0 : index
    %c0_84 = arith.constant 0 : index
    %98 = vector.load %arg4[%c0_82, %c0_83, %c0_84] : memref<1x24x12xf32, #tpu.memory_space<vmem>>, vector<1x24x12xf32>
    %99 = vector.shape_cast %98 : vector<1x24x12xf32> to vector<24x12xf32>
    %cst_85 = arith.constant 9.99999993E-9 : f32
    %100 = vector.broadcast %cst_85 : f32 to vector<24x12xf32>
    %101 = arith.addf %99, %100 : vector<24x12xf32>
    %102 = vector.broadcast %92 : vector<24x1xf32> to vector<24x12xf32>
    %103 = arith.subf %90, %102 : vector<24x12xf32>
    %104 = math.log %97 : vector<24x1xf32>
    %105 = vector.broadcast %104 : vector<24x1xf32> to vector<24x12xf32>
    %106 = arith.subf %103, %105 : vector<24x12xf32>
    %107 = math.log %101 : vector<24x12xf32>
    %108 = arith.addf %106, %107 : vector<24x12xf32>
    %c0_86 = arith.constant 0 : index
    %c0_87 = arith.constant 0 : index
    %c0_88 = arith.constant 0 : index
    %109 = vector.load %arg21[%c0_86, %c0_87, %c0_88] : memref<1x24x12xf32, #tpu.memory_space<vmem>>, vector<1x24x12xf32>
    %110 = vector.shape_cast %109 : vector<1x24x12xf32> to vector<24x12xf32>
    %111 = vector.shape_cast %108 : vector<24x12xf32> to vector<1x24x12xf32>
    tpu.vector_store %arg21[%c0_86, %c0_87, %c0_88], %111 {strides = array<i32>} : memref<1x24x12xf32, #tpu.memory_space<vmem>>, vector<1x24x12xf32>,
    %112 = arith.mulf %95, %101 : vector<24x12xf32>
    %c0_89 = arith.constant 0 : index
    %c0_90 = arith.constant 0 : index
    %c0_91 = arith.constant 0 : index
    %113 = vector.load %arg5[%c0_89, %c0_90, %c0_91] : memref<1x1x12xi32, #tpu.memory_space<vmem>>, vector<1x1x12xi32>
    %114 = vector.shape_cast %113 : vector<1x1x12xi32> to vector<1x12xi32>
    %c0_i32 = arith.constant 0 : i32
    %115 = vector.broadcast %c0_i32 : i32 to vector<1x12xi32>
    %116 = arith.cmpi eq, %114, %115 : vector<1x12xi32>
    %cst_92 = arith.constant 0.000000e+00 : f32
    %117 = vector.shape_cast %116 : vector<1x12xi1> to vector<1x12xi1>
    %118 = vector.broadcast %117 : vector<1x12xi1> to vector<24x12xi1>
    %119 = vector.broadcast %cst_92 : f32 to vector<24x12xf32>
    %120 = arith.select %118, %112, %119 : vector<24x12xi1>, vector<24x12xf32>
    %cst_93 = arith.constant dense<0.000000e+00> : vector<24xf32>
    %121 = vector.multi_reduction <add>, %120, %cst_93 [1] : vector<24x12xf32> to vector<24xf32>
    %122 = vector.shape_cast %121 : vector<24xf32> to vector<24x1xf32>
    %123 = vector.broadcast %122 : vector<24x1xf32> to vector<24x12xf32>
    %124 = arith.divf %120, %123 : vector<24x12xf32>
    %c0_94 = arith.constant 0 : index
    %c0_95 = arith.constant 0 : index
    %c0_96 = arith.constant 0 : index
    %125 = vector.load %arg20[%c0_94, %c0_95, %c0_96] : memref<1x24x12xf32, #tpu.memory_space<vmem>>, vector<1x24x12xf32>
    %126 = vector.shape_cast %125 : vector<1x24x12xf32> to vector<24x12xf32>
    %127 = vector.shape_cast %124 : vector<24x12xf32> to vector<1x24x12xf32>
    tpu.vector_store %arg20[%c0_94, %c0_95, %c0_96], %127 {strides = array<i32>} : memref<1x24x12xf32, #tpu.memory_space<vmem>>, vector<1x24x12xf32>,
    return
  }
  func.func @transform_0(%arg0: i32) -> (i32, i32, i32) {
    %c0_i32 = arith.constant 0 : i32
    %c0_i32_0 = arith.constant 0 : i32
    %c0_i32_1 = arith.constant 0 : i32
    return %arg0, %c0_i32, %c0_i32_0 : i32, i32, i32
  }
  func.func @transform_1(%arg0: i32) -> (i32, i32, i32) {
    %c0_i32 = arith.constant 0 : i32
    %c0_i32_0 = arith.constant 0 : i32
    %c0_i32_1 = arith.constant 0 : i32
    return %arg0, %c0_i32, %c0_i32_0 : i32, i32, i32
  }
  func.func @transform_2(%arg0: i32) -> (i32, i32, i32) {
    %c0_i32 = arith.constant 0 : i32
    %c0_i32_0 = arith.constant 0 : i32
    %c0_i32_1 = arith.constant 0 : i32
    return %arg0, %c0_i32, %c0_i32_0 : i32, i32, i32
  }
  func.func @transform_3(%arg0: i32) -> (i32, i32, i32) {
    %c0_i32 = arith.constant 0 : i32
    %c0_i32_0 = arith.constant 0 : i32
    %c0_i32_1 = arith.constant 0 : i32
    return %arg0, %c0_i32, %c0_i32_0 : i32, i32, i32
  }
  func.func @transform_4(%arg0: i32) -> (i32, i32, i32) {
    %c0_i32 = arith.constant 0 : i32
    %c0_i32_0 = arith.constant 0 : i32
    %c0_i32_1 = arith.constant 0 : i32
    return %arg0, %c0_i32, %c0_i32_0 : i32, i32, i32
  }
  func.func @transform_5(%arg0: i32) -> (i32, i32, i32) {
    %c0_i32 = arith.constant 0 : i32
    %c0_i32_0 = arith.constant 0 : i32
    %c0_i32_1 = arith.constant 0 : i32
    %c0_i32_2 = arith.constant 0 : i32
    return %c0_i32, %c0_i32_0, %c0_i32_1 : i32, i32, i32
  }
  func.func @transform_6(%arg0: i32) -> (i32, i32) {
    %c0_i32 = arith.constant 0 : i32
    %c0_i32_0 = arith.constant 0 : i32
    %c0_i32_1 = arith.constant 0 : i32
    return %c0_i32, %c0_i32_0 : i32, i32
  }
  func.func @transform_7(%arg0: i32) -> (i32, i32) {
    %c0_i32 = arith.constant 0 : i32
    %c0_i32_0 = arith.constant 0 : i32
    %c0_i32_1 = arith.constant 0 : i32
    return %c0_i32, %c0_i32_0 : i32, i32
  }
  func.func @transform_8(%arg0: i32) -> (i32, i32) {
    %c0_i32 = arith.constant 0 : i32
    %c0_i32_0 = arith.constant 0 : i32
    %c0_i32_1 = arith.constant 0 : i32
    return %c0_i32, %c0_i32_0 : i32, i32
  }
  func.func @transform_9(%arg0: i32) -> (i32, i32, i32) {
    %c0_i32 = arith.constant 0 : i32
    %c0_i32_0 = arith.constant 0 : i32
    %c0_i32_1 = arith.constant 0 : i32
    %c0_i32_2 = arith.constant 0 : i32
    return %c0_i32, %c0_i32_0, %c0_i32_1 : i32, i32, i32
  }
  func.func @transform_10(%arg0: i32) -> (i32, i32) {
    %c0_i32 = arith.constant 0 : i32
    %c0_i32_0 = arith.constant 0 : i32
    %c0_i32_1 = arith.constant 0 : i32
    return %c0_i32, %c0_i32_0 : i32, i32
  }
  func.func @transform_11(%arg0: i32) -> (i32, i32) {
    %c0_i32 = arith.constant 0 : i32
    %c0_i32_0 = arith.constant 0 : i32
    %c0_i32_1 = arith.constant 0 : i32
    return %c0_i32, %c0_i32_0 : i32, i32
  }
  func.func @transform_12(%arg0: i32) -> (i32, i32) {
    %c0_i32 = arith.constant 0 : i32
    %c0_i32_0 = arith.constant 0 : i32
    %c0_i32_1 = arith.constant 0 : i32
    return %c0_i32, %c0_i32_0 : i32, i32
  }
  func.func @transform_13(%arg0: i32) -> (i32, i32) {
    %c0_i32 = arith.constant 0 : i32
    %c0_i32_0 = arith.constant 0 : i32
    %c0_i32_1 = arith.constant 0 : i32
    return %c0_i32, %c0_i32_0 : i32, i32
  }
  func.func @transform_14(%arg0: i32) -> (i32, i32) {
    %c0_i32 = arith.constant 0 : i32
    %c0_i32_0 = arith.constant 0 : i32
    %c0_i32_1 = arith.constant 0 : i32
    return %c0_i32, %c0_i32_0 : i32, i32
  }
  func.func @transform_15(%arg0: i32) -> (i32, i32) {
    %c0_i32 = arith.constant 0 : i32
    %c0_i32_0 = arith.constant 0 : i32
    %c0_i32_1 = arith.constant 0 : i32
    return %c0_i32, %c0_i32_0 : i32, i32
  }
  func.func @transform_16(%arg0: i32) -> (i32, i32) {
    %c0_i32 = arith.constant 0 : i32
    %c0_i32_0 = arith.constant 0 : i32
    %c0_i32_1 = arith.constant 0 : i32
    return %c0_i32, %c0_i32_0 : i32, i32
  }
  func.func @transform_17(%arg0: i32) -> (i32, i32) {
    %c0_i32 = arith.constant 0 : i32
    %c0_i32_0 = arith.constant 0 : i32
    %c0_i32_1 = arith.constant 0 : i32
    return %c0_i32, %c0_i32_0 : i32, i32
  }
  func.func @transform_18(%arg0: i32) -> (i32, i32) {
    %c0_i32 = arith.constant 0 : i32
    %c0_i32_0 = arith.constant 0 : i32
    %c0_i32_1 = arith.constant 0 : i32
    return %c0_i32, %c0_i32_0 : i32, i32
  }
  func.func @transform_19(%arg0: i32) -> (i32, i32, i32) {
    %c0_i32 = arith.constant 0 : i32
    %c0_i32_0 = arith.constant 0 : i32
    %c0_i32_1 = arith.constant 0 : i32
    return %arg0, %c0_i32, %c0_i32_0 : i32, i32, i32
  }
  func.func @transform_20(%arg0: i32) -> (i32, i32, i32) {
    %c0_i32 = arith.constant 0 : i32
    %c0_i32_0 = arith.constant 0 : i32
    %c0_i32_1 = arith.constant 0 : i32
    return %arg0, %c0_i32, %c0_i32_0 : i32, i32, i32
  }
}

</mosaic_0001>

<llo_original>
// kernel: tpu_custom_call.1
$region0: #{tpu_custom_call.1}
  #allocation0 [shape = 'u32[]', space=smem, size = 0x4, offset = 0x4, fixed_abs, tag = 'smem constant byte address 0x4 - core index']
  #allocation1 [shape = 'u32[144,128]{1,0:T(1,128)}', space=vmem, size = 0x12000, scoped, tag = 'internal scratch']
  #allocation2 [shape = 'f32[14,32]{1,0:T(8,128)}', space=vmem, size = 0x2000, scoped, tag = 'scratch operand']
  #allocation3 [shape = 'f32[26,16]{1,0:T(8,128)}', space=vmem, size = 0x4000, scoped, tag = 'scratch operand']
  %s0 = inlined_call_operand.vmem [shape: f32[2,24,16], index: 0, kind: input, shape index: {}]
  %s1 = inlined_call_operand.vmem [shape: f32[2,12,32], index: 1, kind: input, shape index: {}]
  %s2 = inlined_call_operand.vmem [shape: f32[2,1,32], index: 2, kind: input, shape index: {}]
  %s3 = inlined_call_operand.vmem [shape: f32[2,24,12], index: 3, kind: input, shape index: {}]
  %s4 = inlined_call_operand.vmem [shape: s32[2,1,12], index: 4, kind: input, shape index: {}]
  %s5 = inlined_call_operand.vmem [shape: f32[3,32,64], index: 5, kind: input, shape index: {}]
  %s6 = inlined_call_operand.vmem [shape: f32[1,64], index: 6, kind: input, shape index: {}]
  %s7 = inlined_call_operand.vmem [shape: f32[64,16], index: 7, kind: input, shape index: {}]
  %s8 = inlined_call_operand.vmem [shape: f32[1,16], index: 8, kind: input, shape index: {}]
  %s9 = inlined_call_operand.vmem [shape: f32[3,16,32], index: 9, kind: input, shape index: {}]
  %s10 = inlined_call_operand.vmem [shape: f32[1,32], index: 10, kind: input, shape index: {}]
  %s11 = inlined_call_operand.vmem [shape: f32[32,16], index: 11, kind: input, shape index: {}]
  %s12 = inlined_call_operand.vmem [shape: f32[1,16], index: 12, kind: input, shape index: {}]
  %s13 = inlined_call_operand.vmem [shape: f32[16,16], index: 13, kind: input, shape index: {}]
  %s14 = inlined_call_operand.vmem [shape: f32[1,16], index: 14, kind: input, shape index: {}]
  %s15 = inlined_call_operand.vmem [shape: f32[32,32], index: 15, kind: input, shape index: {}]
  %s16 = inlined_call_operand.vmem [shape: f32[1,32], index: 16, kind: input, shape index: {}]
  %s17 = inlined_call_operand.vmem [shape: f32[32,16], index: 17, kind: input, shape index: {}]
  %s18 = inlined_call_operand.vmem [shape: f32[1,16], index: 18, kind: input, shape index: {}]
  %s19 = inlined_call_operand.vmem [shape: f32[2,24,12], index: 19, kind: output, shape index: {0}]
  %s20 = inlined_call_operand.vmem [shape: f32[2,24,12], index: 20, kind: output, shape index: {1}]
  %21 = xla_tuple %s19, %s20
  %s22 = sld [smem:[#allocation0]]
  $region117: #{tpu_custom_call.1} parent=0
    _
  %s24 = ssub.s32 1, %s22
  %s25 = scalar_select 0, %s24, %s22
  loop: start=0, step=1, limit=4
  $region2: #{tpu_custom_call.1} parent=0 // loop_pre_header
    _
  $region3: #{tpu_custom_call.1} parent=0 // loop_header
    %s27 = sphi 0, %s31
    %p28 = scmp.ge.s32.totalorder %s27, 4
    %s37 = sphi 0, %s39
    %s40 = sphi 0, %s37
    %s41 = sphi 0, %s40
    %s57 = sphi 0, %s41
    %s63 = sphi 0, %s65
    %s66 = sphi 0, %s63
    %s67 = sphi 0, %s66
    %s83 = sphi 0, %s67
    %s89 = sphi 0, %s91
    %s92 = sphi 0, %s89
    %s93 = sphi 0, %s92
    %s109 = sphi 0, %s93
    %s115 = sphi 0, %s117
    %s118 = sphi 0, %s115
    %s119 = sphi 0, %s118
    %s135 = sphi 0, %s119
    %s141 = sphi 0, %s143
    %s144 = sphi 0, %s141
    %s145 = sphi 0, %s144
    %s161 = sphi 0, %s145
    %s165 = sphi 0, %s165
    %s167 = sphi 0, %s165
    %s168 = sphi 0, %s167
    %s182 = sphi 0, %s168
    %s186 = sphi 0, %s186
    %s188 = sphi 0, %s186
    %s189 = sphi 0, %s188
    %s203 = sphi 0, %s189
    %s207 = sphi 0, %s207
    %s209 = sphi 0, %s207
    %s210 = sphi 0, %s209
    %s224 = sphi 0, %s210
    %s228 = sphi 0, %s228
    %s230 = sphi 0, %s228
    %s231 = sphi 0, %s230
    %s245 = sphi 0, %s231
    %s249 = sphi 0, %s249
    %s251 = sphi 0, %s249
    %s252 = sphi 0, %s251
    %s266 = sphi 0, %s252
    %s270 = sphi 0, %s270
    %s272 = sphi 0, %s270
    %s273 = sphi 0, %s272
    %s287 = sphi 0, %s273
    %s291 = sphi 0, %s291
    %s293 = sphi 0, %s291
    %s294 = sphi 0, %s293
    %s308 = sphi 0, %s294
    %s312 = sphi 0, %s312
    %s314 = sphi 0, %s312
    %s315 = sphi 0, %s314
    %s329 = sphi 0, %s315
    %s333 = sphi 0, %s333
    %s335 = sphi 0, %s333
    %s336 = sphi 0, %s335
    %s350 = sphi 0, %s336
    %s354 = sphi 0, %s354
    %s356 = sphi 0, %s354
    %s357 = sphi 0, %s356
    %s371 = sphi 0, %s357
    %s375 = sphi 0, %s375
    %s377 = sphi 0, %s375
    %s378 = sphi 0, %s377
    %s392 = sphi 0, %s378
    %s396 = sphi 0, %s396
    %s398 = sphi 0, %s396
    %s399 = sphi 0, %s398
    %s413 = sphi 0, %s399
    %s417 = sphi 0, %s417
    %s419 = sphi 0, %s417
    %s420 = sphi 0, %s419
    %s434 = sphi 0, %s420
    %s438 = sphi 0, %s438
    %s440 = sphi 0, %s438
    %s441 = sphi 0, %s440
    %s455 = sphi 0, %s441
    %s461 = sphi 0, %s463
    %s464 = sphi 0, %s461
    %s465 = sphi 0, %s464
    %s481 = sphi 0, %s465
    %s487 = sphi 0, %s489
    %s490 = sphi 0, %s487
    %s491 = sphi 0, %s490
    %s507 = sphi 0, %s491
  $region4: #{tpu_custom_call.1} parent=0 // loop_header_branch
    %30 = sbr.rel (%p28) target = $region8
  $region5: #{tpu_custom_call.1} parent=0 // loop_body
    %s32 = ssub.s32 %s27, 1
    %s33 = ssub.s32 %s27, 2
    %s34 = sadd.s32 %s27, 1
    %s35 = ssub.s32 %s27, %s34
    %p36 = scmp.eq.s32.totalorder %s35, 0
    %s38 = sadd.s32 %s37, 1
    %s39 = scalar_select %p36, %s37, %s38
    %p42 = pneg %p36
    %p43 = scmp.eq.s32.totalorder %s27, 1
    %p44 = por %p42, %p43
    %p45 = scmp.ne.s32.totalorder %s37, %s40
    %p46 = scmp.eq.s32.totalorder %s27, 0
    %p47 = por %p45, %p46
    %p48 = scmp.ne.s32.totalorder %s37, %s40
    %p49 = scmp.eq.s32.totalorder %s32, 1
    %p50 = por %p48, %p49
    %p51 = scmp.ne.s32.totalorder %s40, %s41
    %p52 = scmp.eq.s32.totalorder %s32, 0
    %p53 = por %p51, %p52
    %p54 = scmp.ne.s32.totalorder %s40, %s41
    %p55 = scmp.eq.s32.totalorder %s33, 1
    %p56 = por %p54, %p55
    %p58 = scmp.ne.s32.totalorder %s41, %s57
    %p59 = scmp.eq.s32.totalorder %s33, 0
    %p60 = por %p58, %p59
    %s61 = ssub.s32 %s27, %s34
    %p62 = scmp.eq.s32.totalorder %s61, 0
    %s64 = sadd.s32 %s63, 1
    %s65 = scalar_select %p62, %s63, %s64
    %p68 = pneg %p62
    %p69 = scmp.eq.s32.totalorder %s27, 1
    %p70 = por %p68, %p69
    %p71 = scmp.ne.s32.totalorder %s63, %s66
    %p72 = scmp.eq.s32.totalorder %s27, 0
    %p73 = por %p71, %p72
    %p74 = scmp.ne.s32.totalorder %s63, %s66
    %p75 = scmp.eq.s32.totalorder %s32, 1
    %p76 = por %p74, %p75
    %p77 = scmp.ne.s32.totalorder %s66, %s67
    %p78 = scmp.eq.s32.totalorder %s32, 0
    %p79 = por %p77, %p78
    %p80 = scmp.ne.s32.totalorder %s66, %s67
    %p81 = scmp.eq.s32.totalorder %s33, 1
    %p82 = por %p80, %p81
    %p84 = scmp.ne.s32.totalorder %s67, %s83
    %p85 = scmp.eq.s32.totalorder %s33, 0
    %p86 = por %p84, %p85
    %s87 = ssub.s32 %s27, %s34
    %p88 = scmp.eq.s32.totalorder %s87, 0
    %s90 = sadd.s32 %s89, 1
    %s91 = scalar_select %p88, %s89, %s90
    %p94 = pneg %p88
    %p95 = scmp.eq.s32.totalorder %s27, 1
    %p96 = por %p94, %p95
    %p97 = scmp.ne.s32.totalorder %s89, %s92
    %p98 = scmp.eq.s32.totalorder %s27, 0
    %p99 = por %p97, %p98
    %p100 = scmp.ne.s32.totalorder %s89, %s92
    %p101 = scmp.eq.s32.totalorder %s32, 1
    %p102 = por %p100, %p101
    %p103 = scmp.ne.s32.totalorder %s92, %s93
    %p104 = scmp.eq.s32.totalorder %s32, 0
    %p105 = por %p103, %p104
    %p106 = scmp.ne.s32.totalorder %s92, %s93
    %p107 = scmp.eq.s32.totalorder %s33, 1
    %p108 = por %p106, %p107
    %p110 = scmp.ne.s32.totalorder %s93, %s109
    %p111 = scmp.eq.s32.totalorder %s33, 0
    %p112 = por %p110, %p111
    %s113 = ssub.s32 %s27, %s34
    %p114 = scmp.eq.s32.totalorder %s113, 0
    %s116 = sadd.s32 %s115, 1
    %s117 = scalar_select %p114, %s115, %s116
    %p120 = pneg %p114
    %p121 = scmp.eq.s32.totalorder %s27, 1
    %p122 = por %p120, %p121
    %p123 = scmp.ne.s32.totalorder %s115, %s118
    %p124 = scmp.eq.s32.totalorder %s27, 0
    %p125 = por %p123, %p124
    %p126 = scmp.ne.s32.totalorder %s115, %s118
    %p127 = scmp.eq.s32.totalorder %s32, 1
    %p128 = por %p126, %p127
    %p129 = scmp.ne.s32.totalorder %s118, %s119
    %p130 = scmp.eq.s32.totalorder %s32, 0
    %p131 = por %p129, %p130
    %p132 = scmp.ne.s32.totalorder %s118, %s119
    %p133 = scmp.eq.s32.totalorder %s33, 1
    %p134 = por %p132, %p133
    %p136 = scmp.ne.s32.totalorder %s119, %s135
    %p137 = scmp.eq.s32.totalorder %s33, 0
    %p138 = por %p136, %p137
    %s139 = ssub.s32 %s27, %s34
    %p140 = scmp.eq.s32.totalorder %s139, 0
    %s142 = sadd.s32 %s141, 1
    %s143 = scalar_select %p140, %s141, %s142
    %p146 = pneg %p140
    %p147 = scmp.eq.s32.totalorder %s27, 1
    %p148 = por %p146, %p147
    %p149 = scmp.ne.s32.totalorder %s141, %s144
    %p150 = scmp.eq.s32.totalorder %s27, 0
    %p151 = por %p149, %p150
    %p152 = scmp.ne.s32.totalorder %s141, %s144
    %p153 = scmp.eq.s32.totalorder %s32, 1
    %p154 = por %p152, %p153
    %p155 = scmp.ne.s32.totalorder %s144, %s145
    %p156 = scmp.eq.s32.totalorder %s32, 0
    %p157 = por %p155, %p156
    %p158 = scmp.ne.s32.totalorder %s144, %s145
    %p159 = scmp.eq.s32.totalorder %s33, 1
    %p160 = por %p158, %p159
    %p162 = scmp.ne.s32.totalorder %s145, %s161
    %p163 = scmp.eq.s32.totalorder %s33, 0
    %p164 = por %p162, %p163
    %s166 = sadd.s32 %s165, 1
    %p169 = scmp.eq.s32.totalorder %s27, 1
    %p170 = scmp.ne.s32.totalorder %s165, %s167
    %p171 = scmp.eq.s32.totalorder %s27, 0
    %p172 = por %p170, %p171
    %p173 = scmp.ne.s32.totalorder %s165, %s167
    %p174 = scmp.eq.s32.totalorder %s32, 1
    %p175 = por %p173, %p174
    %p176 = scmp.ne.s32.totalorder %s167, %s168
    %p177 = scmp.eq.s32.totalorder %s32, 0
    %p178 = por %p176, %p177
    %p179 = scmp.ne.s32.totalorder %s167, %s168
    %p180 = scmp.eq.s32.totalorder %s33, 1
    %p181 = por %p179, %p180
    %p183 = scmp.ne.s32.totalorder %s168, %s182
    %p184 = scmp.eq.s32.totalorder %s33, 0
    %p185 = por %p183, %p184
    %s187 = sadd.s32 %s186, 1
    %p190 = scmp.eq.s32.totalorder %s27, 1
    %p191 = scmp.ne.s32.totalorder %s186, %s188
    %p192 = scmp.eq.s32.totalorder %s27, 0
    %p193 = por %p191, %p192
    %p194 = scmp.ne.s32.totalorder %s186, %s188
    %p195 = scmp.eq.s32.totalorder %s32, 1
    %p196 = por %p194, %p195
    %p197 = scmp.ne.s32.totalorder %s188, %s189
    %p198 = scmp.eq.s32.totalorder %s32, 0
    %p199 = por %p197, %p198
    %p200 = scmp.ne.s32.totalorder %s188, %s189
    %p201 = scmp.eq.s32.totalorder %s33, 1
    %p202 = por %p200, %p201
    %p204 = scmp.ne.s32.totalorder %s189, %s203
    %p205 = scmp.eq.s32.totalorder %s33, 0
    %p206 = por %p204, %p205
    %s208 = sadd.s32 %s207, 1
    %p211 = scmp.eq.s32.totalorder %s27, 1
    %p212 = scmp.ne.s32.totalorder %s207, %s209
    %p213 = scmp.eq.s32.totalorder %s27, 0
    %p214 = por %p212, %p213
    %p215 = scmp.ne.s32.totalorder %s207, %s209
    %p216 = scmp.eq.s32.totalorder %s32, 1
    %p217 = por %p215, %p216
    %p218 = scmp.ne.s32.totalorder %s209, %s210
    %p219 = scmp.eq.s32.totalorder %s32, 0
    %p220 = por %p218, %p219
    %p221 = scmp.ne.s32.totalorder %s209, %s210
    %p222 = scmp.eq.s32.totalorder %s33, 1
    %p223 = por %p221, %p222
    %p225 = scmp.ne.s32.totalorder %s210, %s224
    %p226 = scmp.eq.s32.totalorder %s33, 0
    %p227 = por %p225, %p226
    %s229 = sadd.s32 %s228, 1
    %p232 = scmp.eq.s32.totalorder %s27, 1
    %p233 = scmp.ne.s32.totalorder %s228, %s230
    %p234 = scmp.eq.s32.totalorder %s27, 0
    %p235 = por %p233, %p234
    %p236 = scmp.ne.s32.totalorder %s228, %s230
    %p237 = scmp.eq.s32.totalorder %s32, 1
    %p238 = por %p236, %p237
    %p239 = scmp.ne.s32.totalorder %s230, %s231
    %p240 = scmp.eq.s32.totalorder %s32, 0
    %p241 = por %p239, %p240
    %p242 = scmp.ne.s32.totalorder %s230, %s231
    %p243 = scmp.eq.s32.totalorder %s33, 1
    %p244 = por %p242, %p243
    %p246 = scmp.ne.s32.totalorder %s231, %s245
    %p247 = scmp.eq.s32.totalorder %s33, 0
    %p248 = por %p246, %p247
    %s250 = sadd.s32 %s249, 1
    %p253 = scmp.eq.s32.totalorder %s27, 1
    %p254 = scmp.ne.s32.totalorder %s249, %s251
    %p255 = scmp.eq.s32.totalorder %s27, 0
    %p256 = por %p254, %p255
    %p257 = scmp.ne.s32.totalorder %s249, %s251
    %p258 = scmp.eq.s32.totalorder %s32, 1
    %p259 = por %p257, %p258
    %p260 = scmp.ne.s32.totalorder %s251, %s252
    %p261 = scmp.eq.s32.totalorder %s32, 0
    %p262 = por %p260, %p261
    %p263 = scmp.ne.s32.totalorder %s251, %s252
    %p264 = scmp.eq.s32.totalorder %s33, 1
    %p265 = por %p263, %p264
    %p267 = scmp.ne.s32.totalorder %s252, %s266
    %p268 = scmp.eq.s32.totalorder %s33, 0
    %p269 = por %p267, %p268
    %s271 = sadd.s32 %s270, 1
    %p274 = scmp.eq.s32.totalorder %s27, 1
    %p275 = scmp.ne.s32.totalorder %s270, %s272
    %p276 = scmp.eq.s32.totalorder %s27, 0
    %p277 = por %p275, %p276
    %p278 = scmp.ne.s32.totalorder %s270, %s272
    %p279 = scmp.eq.s32.totalorder %s32, 1
    %p280 = por %p278, %p279
    %p281 = scmp.ne.s32.totalorder %s272, %s273
    %p282 = scmp.eq.s32.totalorder %s32, 0
    %p283 = por %p281, %p282
    %p284 = scmp.ne.s32.totalorder %s272, %s273
    %p285 = scmp.eq.s32.totalorder %s33, 1
    %p286 = por %p284, %p285
    %p288 = scmp.ne.s32.totalorder %s273, %s287
    %p289 = scmp.eq.s32.totalorder %s33, 0
    %p290 = por %p288, %p289
    %s292 = sadd.s32 %s291, 1
    %p295 = scmp.eq.s32.totalorder %s27, 1
    %p296 = scmp.ne.s32.totalorder %s291, %s293
    %p297 = scmp.eq.s32.totalorder %s27, 0
    %p298 = por %p296, %p297
    %p299 = scmp.ne.s32.totalorder %s291, %s293
    %p300 = scmp.eq.s32.totalorder %s32, 1
    %p301 = por %p299, %p300
    %p302 = scmp.ne.s32.totalorder %s293, %s294
    %p303 = scmp.eq.s32.totalorder %s32, 0
    %p304 = por %p302, %p303
    %p305 = scmp.ne.s32.totalorder %s293, %s294
    %p306 = scmp.eq.s32.totalorder %s33, 1
    %p307 = por %p305, %p306
    %p309 = scmp.ne.s32.totalorder %s294, %s308
    %p310 = scmp.eq.s32.totalorder %s33, 0
    %p311 = por %p309, %p310
    %s313 = sadd.s32 %s312, 1
    %p316 = scmp.eq.s32.totalorder %s27, 1
    %p317 = scmp.ne.s32.totalorder %s312, %s314
    %p318 = scmp.eq.s32.totalorder %s27, 0
    %p319 = por %p317, %p318
    %p320 = scmp.ne.s32.totalorder %s312, %s314
    %p321 = scmp.eq.s32.totalorder %s32, 1
    %p322 = por %p320, %p321
    %p323 = scmp.ne.s32.totalorder %s314, %s315
    %p324 = scmp.eq.s32.totalorder %s32, 0
    %p325 = por %p323, %p324
    %p326 = scmp.ne.s32.totalorder %s314, %s315
    %p327 = scmp.eq.s32.totalorder %s33, 1
    %p328 = por %p326, %p327
    %p330 = scmp.ne.s32.totalorder %s315, %s329
    %p331 = scmp.eq.s32.totalorder %s33, 0
    %p332 = por %p330, %p331
    %s334 = sadd.s32 %s333, 1
    %p337 = scmp.eq.s32.totalorder %s27, 1
    %p338 = scmp.ne.s32.totalorder %s333, %s335
    %p339 = scmp.eq.s32.totalorder %s27, 0
    %p340 = por %p338, %p339
    %p341 = scmp.ne.s32.totalorder %s333, %s335
    %p342 = scmp.eq.s32.totalorder %s32, 1
    %p343 = por %p341, %p342
    %p344 = scmp.ne.s32.totalorder %s335, %s336
    %p345 = scmp.eq.s32.totalorder %s32, 0
    %p346 = por %p344, %p345
    %p347 = scmp.ne.s32.totalorder %s335, %s336
    %p348 = scmp.eq.s32.totalorder %s33, 1
    %p349 = por %p347, %p348
    %p351 = scmp.ne.s32.totalorder %s336, %s350
    %p352 = scmp.eq.s32.totalorder %s33, 0
    %p353 = por %p351, %p352
    %s355 = sadd.s32 %s354, 1
    %p358 = scmp.eq.s32.totalorder %s27, 1
    %p359 = scmp.ne.s32.totalorder %s354, %s356
    %p360 = scmp.eq.s32.totalorder %s27, 0
    %p361 = por %p359, %p360
    %p362 = scmp.ne.s32.totalorder %s354, %s356
    %p363 = scmp.eq.s32.totalorder %s32, 1
    %p364 = por %p362, %p363
    %p365 = scmp.ne.s32.totalorder %s356, %s357
    %p366 = scmp.eq.s32.totalorder %s32, 0
    %p367 = por %p365, %p366
    %p368 = scmp.ne.s32.totalorder %s356, %s357
    %p369 = scmp.eq.s32.totalorder %s33, 1
    %p370 = por %p368, %p369
    %p372 = scmp.ne.s32.totalorder %s357, %s371
    %p373 = scmp.eq.s32.totalorder %s33, 0
    %p374 = por %p372, %p373
    %s376 = sadd.s32 %s375, 1
    %p379 = scmp.eq.s32.totalorder %s27, 1
    %p380 = scmp.ne.s32.totalorder %s375, %s377
    %p381 = scmp.eq.s32.totalorder %s27, 0
    %p382 = por %p380, %p381
    %p383 = scmp.ne.s32.totalorder %s375, %s377
    %p384 = scmp.eq.s32.totalorder %s32, 1
    %p385 = por %p383, %p384
    %p386 = scmp.ne.s32.totalorder %s377, %s378
    %p387 = scmp.eq.s32.totalorder %s32, 0
    %p388 = por %p386, %p387
    %p389 = scmp.ne.s32.totalorder %s377, %s378
    %p390 = scmp.eq.s32.totalorder %s33, 1
    %p391 = por %p389, %p390
    %p393 = scmp.ne.s32.totalorder %s378, %s392
    %p394 = scmp.eq.s32.totalorder %s33, 0
    %p395 = por %p393, %p394
    %s397 = sadd.s32 %s396, 1
    %p400 = scmp.eq.s32.totalorder %s27, 1
    %p401 = scmp.ne.s32.totalorder %s396, %s398
    %p402 = scmp.eq.s32.totalorder %s27, 0
    %p403 = por %p401, %p402
    %p404 = scmp.ne.s32.totalorder %s396, %s398
    %p405 = scmp.eq.s32.totalorder %s32, 1
    %p406 = por %p404, %p405
    %p407 = scmp.ne.s32.totalorder %s398, %s399
    %p408 = scmp.eq.s32.totalorder %s32, 0
    %p409 = por %p407, %p408
    %p410 = scmp.ne.s32.totalorder %s398, %s399
    %p411 = scmp.eq.s32.totalorder %s33, 1
    %p412 = por %p410, %p411
    %p414 = scmp.ne.s32.totalorder %s399, %s413
    %p415 = scmp.eq.s32.totalorder %s33, 0
    %p416 = por %p414, %p415
    %s418 = sadd.s32 %s417, 1
    %p421 = scmp.eq.s32.totalorder %s27, 1
    %p422 = scmp.ne.s32.totalorder %s417, %s419
    %p423 = scmp.eq.s32.totalorder %s27, 0
    %p424 = por %p422, %p423
    %p425 = scmp.ne.s32.totalorder %s417, %s419
    %p426 = scmp.eq.s32.totalorder %s32, 1
    %p427 = por %p425, %p426
    %p428 = scmp.ne.s32.totalorder %s419, %s420
    %p429 = scmp.eq.s32.totalorder %s32, 0
    %p430 = por %p428, %p429
    %p431 = scmp.ne.s32.totalorder %s419, %s420
    %p432 = scmp.eq.s32.totalorder %s33, 1
    %p433 = por %p431, %p432
    %p435 = scmp.ne.s32.totalorder %s420, %s434
    %p436 = scmp.eq.s32.totalorder %s33, 0
    %p437 = por %p435, %p436
    %s439 = sadd.s32 %s438, 1
    %p442 = scmp.eq.s32.totalorder %s27, 1
    %p443 = scmp.ne.s32.totalorder %s438, %s440
    %p444 = scmp.eq.s32.totalorder %s27, 0
    %p445 = por %p443, %p444
    %p446 = scmp.ne.s32.totalorder %s438, %s440
    %p447 = scmp.eq.s32.totalorder %s32, 1
    %p448 = por %p446, %p447
    %p449 = scmp.ne.s32.totalorder %s440, %s441
    %p450 = scmp.eq.s32.totalorder %s32, 0
    %p451 = por %p449, %p450
    %p452 = scmp.ne.s32.totalorder %s440, %s441
    %p453 = scmp.eq.s32.totalorder %s33, 1
    %p454 = por %p452, %p453
    %p456 = scmp.ne.s32.totalorder %s441, %s455
    %p457 = scmp.eq.s32.totalorder %s33, 0
    %p458 = por %p456, %p457
    %s459 = ssub.s32 %s27, %s34
    %p460 = scmp.eq.s32.totalorder %s459, 0
    %s462 = sadd.s32 %s461, 1
    %s463 = scalar_select %p460, %s461, %s462
    %p466 = pneg %p460
    %p467 = scmp.eq.s32.totalorder %s27, 1
    %p468 = por %p466, %p467
    %p469 = scmp.ne.s32.totalorder %s461, %s464
    %p470 = scmp.eq.s32.totalorder %s27, 0
    %p471 = por %p469, %p470
    %p472 = scmp.ne.s32.totalorder %s461, %s464
    %p473 = scmp.eq.s32.totalorder %s32, 1
    %p474 = por %p472, %p473
    %p475 = scmp.ne.s32.totalorder %s464, %s465
    %p476 = scmp.eq.s32.totalorder %s32, 0
    %p477 = por %p475, %p476
    %p478 = scmp.ne.s32.totalorder %s464, %s465
    %p479 = scmp.eq.s32.totalorder %s33, 1
    %p480 = por %p478, %p479
    %p482 = scmp.ne.s32.totalorder %s465, %s481
    %p483 = scmp.eq.s32.totalorder %s33, 0
    %p484 = por %p482, %p483
    %s485 = ssub.s32 %s27, %s34
    %p486 = scmp.eq.s32.totalorder %s485, 0
    %s488 = sadd.s32 %s487, 1
    %s489 = scalar_select %p486, %s487, %s488
    %p492 = pneg %p486
    %p493 = scmp.eq.s32.totalorder %s27, 1
    %p494 = por %p492, %p493
    %p495 = scmp.ne.s32.totalorder %s487, %s490
    %p496 = scmp.eq.s32.totalorder %s27, 0
    %p497 = por %p495, %p496
    %p498 = scmp.ne.s32.totalorder %s487, %s490
    %p499 = scmp.eq.s32.totalorder %s32, 1
    %p500 = por %p498, %p499
    %p501 = scmp.ne.s32.totalorder %s490, %s491
    %p502 = scmp.eq.s32.totalorder %s32, 0
    %p503 = por %p501, %p502
    %p504 = scmp.ne.s32.totalorder %s490, %s491
    %p505 = scmp.eq.s32.totalorder %s33, 1
    %p506 = por %p504, %p505
    %p508 = scmp.ne.s32.totalorder %s491, %s507
    %p509 = scmp.eq.s32.totalorder %s33, 0
    %p510 = por %p508, %p509
    %p511 = scmp.le.s32.totalorder 1, %s27
    %p512 = scmp.lt.s32.totalorder %s27, 3
    %p513 = pnand %p511, %p512
    %p514 = pneg %p513
    // Predicated region
    $region9: #{tpu_custom_call.1} parent=5 // pred_check
      _
    $region10: #{tpu_custom_call.1} parent=5 // pred_check_branch
      %516 = sbr.rel (%p513) target = $region12
    $region11: #{tpu_custom_call.1} parent=5 // pred_region
      %s517 = ssub.s32 %s27, 1
      // Predicated region
      $region13: #{tpu_custom_call.1} parent=11 // pred_check
        %p518 = pneg %p178
      $region14: #{tpu_custom_call.1} parent=11 // pred_check_branch
        %520 = sbr.rel (%p518) target = $region16
      $region15: #{tpu_custom_call.1} parent=11 // pred_region
        _
      $region16: #{tpu_custom_call.1} parent=11 // pred_fallthru
        _
      // Predicated region
      $region17: #{tpu_custom_call.1} parent=11 // pred_check
        %p521 = pneg %p199
      $region18: #{tpu_custom_call.1} parent=11 // pred_check_branch
        %523 = sbr.rel (%p521) target = $region20
      $region19: #{tpu_custom_call.1} parent=11 // pred_region
        _
      $region20: #{tpu_custom_call.1} parent=11 // pred_fallthru
        _
      // Predicated region
      $region21: #{tpu_custom_call.1} parent=11 // pred_check
        %p524 = pneg %p220
      $region22: #{tpu_custom_call.1} parent=11 // pred_check_branch
        %526 = sbr.rel (%p524) target = $region24
      $region23: #{tpu_custom_call.1} parent=11 // pred_region
        _
      $region24: #{tpu_custom_call.1} parent=11 // pred_fallthru
        _
      // Predicated region
      $region25: #{tpu_custom_call.1} parent=11 // pred_check
        %p527 = pneg %p241
      $region26: #{tpu_custom_call.1} parent=11 // pred_check_branch
        %529 = sbr.rel (%p527) target = $region28
      $region27: #{tpu_custom_call.1} parent=11 // pred_region
        _
      $region28: #{tpu_custom_call.1} parent=11 // pred_fallthru
        _
      // Predicated region
      $region29: #{tpu_custom_call.1} parent=11 // pred_check
        %p530 = pneg %p262
      $region30: #{tpu_custom_call.1} parent=11 // pred_check_branch
        %532 = sbr.rel (%p530) target = $region32
      $region31: #{tpu_custom_call.1} parent=11 // pred_region
        _
      $region32: #{tpu_custom_call.1} parent=11 // pred_fallthru
        _
      // Predicated region
      $region33: #{tpu_custom_call.1} parent=11 // pred_check
        %p533 = pneg %p283
      $region34: #{tpu_custom_call.1} parent=11 // pred_check_branch
        %535 = sbr.rel (%p533) target = $region36
      $region35: #{tpu_custom_call.1} parent=11 // pred_region
        _
      $region36: #{tpu_custom_call.1} parent=11 // pred_fallthru
        _
      // Predicated region
      $region37: #{tpu_custom_call.1} parent=11 // pred_check
        %p536 = pneg %p304
      $region38: #{tpu_custom_call.1} parent=11 // pred_check_branch
        %538 = sbr.rel (%p536) target = $region40
      $region39: #{tpu_custom_call.1} parent=11 // pred_region
        _
      $region40: #{tpu_custom_call.1} parent=11 // pred_fallthru
        _
      // Predicated region
      $region41: #{tpu_custom_call.1} parent=11 // pred_check
        %p539 = pneg %p325
      $region42: #{tpu_custom_call.1} parent=11 // pred_check_branch
        %541 = sbr.rel (%p539) target = $region44
      $region43: #{tpu_custom_call.1} parent=11 // pred_region
        _
      $region44: #{tpu_custom_call.1} parent=11 // pred_fallthru
        _
      // Predicated region
      $region45: #{tpu_custom_call.1} parent=11 // pred_check
        %p542 = pneg %p346
      $region46: #{tpu_custom_call.1} parent=11 // pred_check_branch
        %544 = sbr.rel (%p542) target = $region48
      $region47: #{tpu_custom_call.1} parent=11 // pred_region
        _
      $region48: #{tpu_custom_call.1} parent=11 // pred_fallthru
        _
      // Predicated region
      $region49: #{tpu_custom_call.1} parent=11 // pred_check
        %p545 = pneg %p367
      $region50: #{tpu_custom_call.1} parent=11 // pred_check_branch
        %547 = sbr.rel (%p545) target = $region52
      $region51: #{tpu_custom_call.1} parent=11 // pred_region
        _
      $region52: #{tpu_custom_call.1} parent=11 // pred_fallthru
        _
      // Predicated region
      $region53: #{tpu_custom_call.1} parent=11 // pred_check
        %p548 = pneg %p388
      $region54: #{tpu_custom_call.1} parent=11 // pred_check_branch
        %550 = sbr.rel (%p548) target = $region56
      $region55: #{tpu_custom_call.1} parent=11 // pred_region
        _
      $region56: #{tpu_custom_call.1} parent=11 // pred_fallthru
        _
      // Predicated region
      $region57: #{tpu_custom_call.1} parent=11 // pred_check
        %p551 = pneg %p409
      $region58: #{tpu_custom_call.1} parent=11 // pred_check_branch
        %553 = sbr.rel (%p551) target = $region60
      $region59: #{tpu_custom_call.1} parent=11 // pred_region
        _
      $region60: #{tpu_custom_call.1} parent=11 // pred_fallthru
        _
      // Predicated region
      $region61: #{tpu_custom_call.1} parent=11 // pred_check
        %p554 = pneg %p430
      $region62: #{tpu_custom_call.1} parent=11 // pred_check_branch
        %556 = sbr.rel (%p554) target = $region64
      $region63: #{tpu_custom_call.1} parent=11 // pred_region
        _
      $region64: #{tpu_custom_call.1} parent=11 // pred_fallthru
        _
      // Predicated region
      $region65: #{tpu_custom_call.1} parent=11 // pred_check
        %p557 = pneg %p451
      $region66: #{tpu_custom_call.1} parent=11 // pred_check_branch
        %559 = sbr.rel (%p557) target = $region68
      $region67: #{tpu_custom_call.1} parent=11 // pred_region
        _
      $region68: #{tpu_custom_call.1} parent=11 // pred_fallthru
        _
    $region12: #{tpu_custom_call.1} parent=5 // pred_fallthru
      _
    %p560 = scmp.lt.s32.totalorder %s27, 2
    // Predicated region
    $region69: #{tpu_custom_call.1} parent=5 // pred_check
      %p561 = pneg %p560
    $region70: #{tpu_custom_call.1} parent=5 // pred_check_branch
      %563 = sbr.rel (%p561) target = $region72
    $region71: #{tpu_custom_call.1} parent=5 // pred_region
      // Predicated region
      $region73: #{tpu_custom_call.1} parent=71 // pred_check
        %p564 = pneg %p47
      $region74: #{tpu_custom_call.1} parent=71 // pred_check_branch
        %566 = sbr.rel (%p564) target = $region76
      $region75: #{tpu_custom_call.1} parent=71 // pred_region
        %p567 = scmp.lt.s32.totalorder %s27, 1
        %s568 = scalar_select %p567, %s27, 1
        %s569 = smul.addr %s568, 3
        %s570 = smul.addr %s569, 8
        %s571 = scalar_lea.vmem %s0, %s570
      $region76: #{tpu_custom_call.1} parent=71 // pred_fallthru
        _
      // Predicated region
      $region77: #{tpu_custom_call.1} parent=71 // pred_check
        %p572 = pneg %p73
      $region78: #{tpu_custom_call.1} parent=71 // pred_check_branch
        %574 = sbr.rel (%p572) target = $region80
      $region79: #{tpu_custom_call.1} parent=71 // pred_region
        %p575 = scmp.lt.s32.totalorder %s27, 1
        %s576 = scalar_select %p575, %s27, 1
        %s577 = smul.addr %s576, 2
        %s578 = smul.addr %s577, 8
        %s579 = scalar_lea.vmem %s1, %s578
      $region80: #{tpu_custom_call.1} parent=71 // pred_fallthru
        _
      // Predicated region
      $region81: #{tpu_custom_call.1} parent=71 // pred_check
        %p580 = pneg %p99
      $region82: #{tpu_custom_call.1} parent=71 // pred_check_branch
        %582 = sbr.rel (%p580) target = $region84
      $region83: #{tpu_custom_call.1} parent=71 // pred_region
        %p583 = scmp.lt.s32.totalorder %s27, 1
        %s584 = scalar_select %p583, %s27, 1
        %s585 = scalar_lea.vmem %s2, %s584
      $region84: #{tpu_custom_call.1} parent=71 // pred_fallthru
        _
      // Predicated region
      $region85: #{tpu_custom_call.1} parent=71 // pred_check
        %p586 = pneg %p125
      $region86: #{tpu_custom_call.1} parent=71 // pred_check_branch
        %588 = sbr.rel (%p586) target = $region88
      $region87: #{tpu_custom_call.1} parent=71 // pred_region
        %p589 = scmp.lt.s32.totalorder %s27, 1
        %s590 = scalar_select %p589, %s27, 1
        %s591 = smul.addr %s590, 3
        %s592 = smul.addr %s591, 8
        %s593 = scalar_lea.vmem %s3, %s592
      $region88: #{tpu_custom_call.1} parent=71 // pred_fallthru
        _
      // Predicated region
      $region89: #{tpu_custom_call.1} parent=71 // pred_check
        %p594 = pneg %p151
      $region90: #{tpu_custom_call.1} parent=71 // pred_check_branch
        %596 = sbr.rel (%p594) target = $region92
      $region91: #{tpu_custom_call.1} parent=71 // pred_region
        %p597 = scmp.lt.s32.totalorder %s27, 1
        %s598 = scalar_select %p597, %s27, 1
        %s599 = scalar_lea.vmem %s4, %s598
      $region92: #{tpu_custom_call.1} parent=71 // pred_fallthru
        _
    $region72: #{tpu_custom_call.1} parent=5 // pred_fallthru
      _
    %p600 = scmp.le.s32.totalorder 1, %s27
    %p601 = scmp.lt.s32.totalorder %s27, 3
    %p602 = pnand %p600, %p601
    %p603 = pneg %p602
    // Predicated region
    $region93: #{tpu_custom_call.1} parent=5 // pred_check
      _
    $region94: #{tpu_custom_call.1} parent=5 // pred_check_branch
      %605 = sbr.rel (%p602) target = $region96
    $region95: #{tpu_custom_call.1} parent=5 // pred_region
      %s606 = ssub.s32 %s27, 1
      %p607 = scmp.lt.s32.totalorder %s32, 1
      %s608 = scalar_select %p607, %s32, 1
      %s609 = smul.addr %s608, 3
      %s610 = smul.addr %s609, 8
      %s611 = scalar_lea.vmem %s0, %s610
      %p612 = pneg %p53
      %p613 = pneg %p50
      %p614 = scmp.lt.s32.totalorder %s32, 1
      %s615 = scalar_select %p614, %s32, 1
      %s616 = smul.addr %s615, 2
      %s617 = smul.addr %s616, 8
      %s618 = scalar_lea.vmem %s1, %s617
      %p619 = pneg %p79
      %p620 = pneg %p76
      %p621 = scmp.lt.s32.totalorder %s32, 1
      %s622 = scalar_select %p621, %s32, 1
      %s623 = scalar_lea.vmem %s2, %s622
      %p624 = pneg %p105
      %p625 = pneg %p102
      %p626 = scmp.lt.s32.totalorder %s32, 1
      %s627 = scalar_select %p626, %s32, 1
      %s628 = smul.addr %s627, 3
      %s629 = smul.addr %s628, 8
      %s630 = scalar_lea.vmem %s3, %s629
      %p631 = pneg %p131
      %p632 = pneg %p128
      %p633 = scmp.lt.s32.totalorder %s32, 1
      %s634 = scalar_select %p633, %s32, 1
      %s635 = scalar_lea.vmem %s4, %s634
      %p636 = pneg %p157
      %p637 = pneg %p154
      %p638 = pneg %p178
      %p639 = pneg %p175
      %p640 = pneg %p199
      %p641 = pneg %p196
      %p642 = pneg %p220
      %p643 = pneg %p217
      %p644 = pneg %p241
      %p645 = pneg %p238
      %p646 = pneg %p262
      %p647 = pneg %p259
      %p648 = pneg %p283
      %p649 = pneg %p280
      %p650 = pneg %p304
      %p651 = pneg %p301
      %p652 = pneg %p325
      %p653 = pneg %p322
      %p654 = pneg %p346
      %p655 = pneg %p343
      %p656 = pneg %p367
      %p657 = pneg %p364
      %p658 = pneg %p388
      %p659 = pneg %p385
      %p660 = pneg %p409
      %p661 = pneg %p406
      %p662 = pneg %p430
      %p663 = pneg %p427
      %p664 = pneg %p451
      %p665 = pneg %p448
      %p666 = pneg %p477
      %p667 = pneg %p474
      %p668 = scmp.lt.s32.totalorder %s32, 1
      %s669 = scalar_select %p668, %s32, 1
      %s670 = smul.addr %s669, 3
      %s671 = smul.addr %s670, 8
      %s672 = scalar_lea.vmem %s19, %s671
      %p673 = pneg %p503
      %p674 = pneg %p500
      %p675 = scmp.lt.s32.totalorder %s32, 1
      %s676 = scalar_select %p675, %s32, 1
      %s677 = smul.addr %s676, 3
      %s678 = smul.addr %s677, 8
      %s679 = scalar_lea.vmem %s20, %s678
      %p680 = scmp.lt.s32.totalorder %s32, 1
      %s681 = scalar_select %p680, %s32, 1
      %s682 = smul.addr %s681, 3
      %s683 = smul.addr %s682, 8
      %s684 = scalar_lea.vmem %s0, %s683
      %p685 = scmp.lt.s32.totalorder %s32, 1
      %s686 = scalar_select %p685, %s32, 1
      %s687 = smul.addr %s686, 2
      %s688 = smul.addr %s687, 8
      %s689 = scalar_lea.vmem %s1, %s688
      %p690 = scmp.lt.s32.totalorder %s32, 1
      %s691 = scalar_select %p690, %s32, 1
      %s692 = scalar_lea.vmem %s2, %s691
      %p693 = scmp.lt.s32.totalorder %s32, 1
      %s694 = scalar_select %p693, %s32, 1
      %s695 = smul.addr %s694, 3
      %s696 = smul.addr %s695, 8
      %s697 = scalar_lea.vmem %s3, %s696
      %p698 = scmp.lt.s32.totalorder %s32, 1
      %s699 = scalar_select %p698, %s32, 1
      %s700 = scalar_lea.vmem %s4, %s699
      %p701 = scmp.lt.s32.totalorder %s32, 1
      %s702 = scalar_select %p701, %s32, 1
      %s703 = smul.addr %s702, 3
      %s704 = smul.addr %s703, 8
      %s705 = scalar_lea.vmem %s19, %s704
      %p706 = scmp.lt.s32.totalorder %s32, 1
      %s707 = scalar_select %p706, %s32, 1
      %s708 = smul.addr %s707, 3
      %s709 = smul.addr %s708, 8
      %s710 = scalar_lea.vmem %s20, %s709
      %v711 = vld [vmem:[%s689] sm:$0xff]
      %v712 = vld [vmem:[%s689 + $0x8] sm:$0xf]
      %v713 = vld [vmem:[%s684] sm:$0xff]
      %v714 = vld [vmem:[%s684 + $0x8] sm:$0xff]
      %v715 = vld [vmem:[%s684 + $0x10] sm:$0xff]
      %v716 = vld [vmem:[%s692] sm:$0x1]
      %v717 = vld [vmem:[%s15] sm:$0xff]
      %v718 = vld [vmem:[%s15 + $0x8] sm:$0xff]
      %v719 = vld [vmem:[%s15 + $0x10] sm:$0xff]
      %v720 = vld [vmem:[%s15 + $0x18] sm:$0xff]
      %v721 = vld [vmem:[%s16] sm:$0x1]
      %vm722 = vcmask 261120
      %v724 = vsel %vm722, %v716, 0
      %726 = vmatprep.subr.mxu0 0.0
      %727 = vmatpush1.msra.mxu0 0.0
      %728 = vmatprep.subr.mxu0 0.0
      %729 = vmatpush1.msra.mxu0 0.0
      %730 = vmatprep.subr.mxu0 0.0
      %731 = vmatpush1.msra.mxu0 0.0
      %732 = vmatprep.subr.mxu0 0.0
      %733 = vmatpush1.msra.mxu0 0.0
      %734 = vmatprep.subr.mxu0 0.0
      %735 = vmatpush1.msra.mxu0 0.0
      %736 = vmatprep.subr.mxu0 0.0
      %737 = vmatpush1.msra.mxu0 0.0
      %738 = vmatprep.subr.mxu0 0.0
      %739 = vmatpush1.msra.mxu0 0.0
      %740 = vmatprep.subr.mxu0 0.0
      %741 = vmatpush1.msra.mxu0 0.0
      %742 = vmatprep.subr.mxu0 0.0
      %743 = vmatpush1.msra.mxu0 0.0
      %744 = vmatprep.subr.mxu0 0.0
      %745 = vmatpush1.msra.mxu0 0.0
      %746 = vmatprep.subr.mxu0 0.0
      %747 = vmatpush1.msra.mxu0 0.0
      %748 = vmatprep.subr.mxu0 0.0
      %749 = vmatpush1.msra.mxu0 0.0
      %750 = vmatprep.subr.mxu0 0.0
      %751 = vmatpush1.msra.mxu0 %v720
      %752 = vmatprep.subr.mxu0 0.0
      %753 = vmatpush1.msra.mxu0 %v719
      %754 = vmatprep.subr.mxu0 0.0
      %755 = vmatpush1.msra.mxu0 %v718
      %756 = vmatprep.subr.mxu0 0.0
      %757 = vmatpush1.msra.mxu0 %v717
      %758 = vmatprep.subr.mxu0 0.0
      %759 = vmatpush2.msra.mxu0 0.0
      %760 = vmatprep.subr.mxu0 0.0
      %761 = vmatpush2.msra.mxu0 0.0
      %762 = vmatprep.subr.mxu0 0.0
      %763 = vmatpush2.msra.mxu0 0.0
      %764 = vmatprep.subr.mxu0 0.0
      %765 = vmatpush2.msra.mxu0 0.0
      %766 = vmatprep.subr.mxu0 0.0
      %767 = vmatpush2.msra.mxu0 0.0
      %768 = vmatprep.subr.mxu0 0.0
      %769 = vmatpush2.msra.mxu0 0.0
      %770 = vmatprep.subr.mxu0 0.0
      %771 = vmatpush2.msra.mxu0 0.0
      %772 = vmatprep.subr.mxu0 0.0
      %773 = vmatpush2.msra.mxu0 0.0
      %774 = vmatprep.subr.mxu0 0.0
      %775 = vmatpush2.msra.mxu0 0.0
      %776 = vmatprep.subr.mxu0 0.0
      %777 = vmatpush2.msra.mxu0 0.0
      %778 = vmatprep.subr.mxu0 0.0
      %779 = vmatpush2.msra.mxu0 0.0
      %780 = vmatprep.subr.mxu0 0.0
      %781 = vmatpush2.msra.mxu0 0.0
      %782 = vmatprep.subr.mxu0 0.0
      %783 = vmatpush2.msra.mxu0 0.0
      %784 = vmatprep.subr.mxu0 0.0
      %785 = vmatpush2.msra.mxu0 0.0
      %786 = vmatprep.subr.mxu0 0.0
      %787 = vmatpush2.msra.mxu0 0.0
      %788 = vmatprep.subr.mxu0 0.0
      %789 = vmatpush2.msra.mxu0 0.0
      %790 = vmatprep.mubr.f32.mxu0 0.0
      %791 = vmatmul.mubr.f32.gmra.mxu0 %v724
      %v792 = vpop.f32.mrf.mxu0
      %v793 = vadd.f32 %v721, %v792
      %v794 = vpop.f32.mrf.mxu0
      %795 = vdwg.mxu0
      %v796 = vlaneseq
      %v797 = vshrl.u32 %v796, 7
      %v798 = vsub.s32 0, %v797
      %v799 = vrot.slane %v793, %v798
      %v800 = vadd.f32 %v711, %v799
      %v801 = vadd.f32 %v712, %v799
      %v802 = vld [vmem:[%s17] sm:$0xff]
      %v803 = vld [vmem:[%s17 + $0x8] sm:$0xff]
      %v804 = vld [vmem:[%s17 + $0x10] sm:$0xff]
      %v805 = vld [vmem:[%s17 + $0x18] sm:$0xff]
      %v806 = vld [vmem:[%s18] sm:$0x1]
      %807 = vmatprep.subr.mxu0 0.0
      %808 = vmatpush1.msra.mxu0 0.0
      %809 = vmatprep.subr.mxu0 0.0
      %810 = vmatpush1.msra.mxu0 0.0
      %811 = vmatprep.subr.mxu0 0.0
      %812 = vmatpush1.msra.mxu0 0.0
      %813 = vmatprep.subr.mxu0 0.0
      %814 = vmatpush1.msra.mxu0 0.0
      %815 = vmatprep.subr.mxu0 0.0
      %816 = vmatpush1.msra.mxu0 0.0
      %817 = vmatprep.subr.mxu0 0.0
      %818 = vmatpush1.msra.mxu0 0.0
      %819 = vmatprep.subr.mxu0 0.0
      %820 = vmatpush1.msra.mxu0 0.0
      %821 = vmatprep.subr.mxu0 0.0
      %822 = vmatpush1.msra.mxu0 0.0
      %823 = vmatprep.subr.mxu0 0.0
      %824 = vmatpush1.msra.mxu0 0.0
      %825 = vmatprep.subr.mxu0 0.0
      %826 = vmatpush1.msra.mxu0 0.0
      %827 = vmatprep.subr.mxu0 0.0
      %828 = vmatpush1.msra.mxu0 0.0
      %829 = vmatprep.subr.mxu0 0.0
      %830 = vmatpush1.msra.mxu0 0.0
      %831 = vmatprep.subr.mxu0 0.0
      %832 = vmatpush1.msra.mxu0 %v805
      %833 = vmatprep.subr.mxu0 0.0
      %834 = vmatpush1.msra.mxu0 %v804
      %835 = vmatprep.subr.mxu0 0.0
      %836 = vmatpush1.msra.mxu0 %v803
      %837 = vmatprep.subr.mxu0 0.0
      %838 = vmatpush1.msra.mxu0 %v802
      %839 = vmatprep.subr.mxu0 0.0
      %840 = vmatpush2.msra.mxu0 0.0
      %841 = vmatprep.subr.mxu0 0.0
      %842 = vmatpush2.msra.mxu0 0.0
      %843 = vmatprep.subr.mxu0 0.0
      %844 = vmatpush2.msra.mxu0 0.0
      %845 = vmatprep.subr.mxu0 0.0
      %846 = vmatpush2.msra.mxu0 0.0
      %847 = vmatprep.subr.mxu0 0.0
      %848 = vmatpush2.msra.mxu0 0.0
      %849 = vmatprep.subr.mxu0 0.0
      %850 = vmatpush2.msra.mxu0 0.0
      %851 = vmatprep.subr.mxu0 0.0
      %852 = vmatpush2.msra.mxu0 0.0
      %853 = vmatprep.subr.mxu0 0.0
      %854 = vmatpush2.msra.mxu0 0.0
      %855 = vmatprep.subr.mxu0 0.0
      %856 = vmatpush2.msra.mxu0 0.0
      %857 = vmatprep.subr.mxu0 0.0
      %858 = vmatpush2.msra.mxu0 0.0
      %859 = vmatprep.subr.mxu0 0.0
      %860 = vmatpush2.msra.mxu0 0.0
      %861 = vmatprep.subr.mxu0 0.0
      %862 = vmatpush2.msra.mxu0 0.0
      %863 = vmatprep.subr.mxu0 0.0
      %864 = vmatpush2.msra.mxu0 0.0
      %865 = vmatprep.subr.mxu0 0.0
      %866 = vmatpush2.msra.mxu0 0.0
      %867 = vmatprep.subr.mxu0 0.0
      %868 = vmatpush2.msra.mxu0 0.0
      %869 = vmatprep.subr.mxu0 0.0
      %870 = vmatpush2.msra.mxu0 0.0
      %871 = vmatprep.mubr.f32.mxu0 0.0
      %872 = vmatmul.mubr.f32.gmra.mxu0 %v724
      %v873 = vpop.f32.mrf.mxu0
      %v874 = vadd.f32 %v806, %v873
      %v875 = vpop.f32.mrf.mxu0
      %876 = vdwg.mxu0
      %v877 = vlaneseq
      %v878 = vshrl.u32 %v877, 7
      %v879 = vsub.s32 0, %v878
      %v880 = vrot.slane %v874, %v879
      %v881 = vadd.f32 %v713, %v880
      %v882 = vadd.f32 %v714, %v880
      %v883 = vadd.f32 %v715, %v880
      %884 = vst.msk [vmem:[#allocation2] sm:$0xff] %vm722, 0.0
      %vm885 = vcmask 259072
      %886 = vst.msk [vmem:[#allocation2 + $0x8] sm:$0x3f] %vm885, 0.0
      %887 = vst.msk [vmem:[#allocation2 + $0x1] sm:$0xff] %vm722, %v800
      %vm888 = vcmask 257024
      %889 = vst.msk [vmem:[#allocation2 + $0x9] sm:$0xf] %vm888, %v801
      %v890 = vld [vmem:[#allocation2] sm:$0xff]
      %v891 = vld [vmem:[#allocation2 + $0x8] sm:$0x3f]
      %v892 = vld [vmem:[%s5] sm:$0xff]
      %v893 = vld [vmem:[%s5 + $0x8] sm:$0xff]
      %v894 = vld [vmem:[%s5 + $0x10] sm:$0xff]
      %v895 = vld [vmem:[%s5 + $0x18] sm:$0xff]
      %s896 = scalar_lea.vmem %s5, 32
      %v897 = vld [vmem:[%s896] sm:$0xff]
      %v898 = vld [vmem:[%s896 + $0x8] sm:$0xff]
      %v899 = vld [vmem:[%s896 + $0x10] sm:$0xff]
      %v900 = vld [vmem:[%s896 + $0x18] sm:$0xff]
      %vm903 = vcmask 1046528
      %v904 = vrot.slane %v890, 1
      %v905 = vrot.slane %v891, 1
      %v906 = vsel %vm903, %v904, %v905
      %v907 = vsel %vm722, %v906, 0
      %v909 = vsel %vm722, %v905, 0
      %911 = vmatprep.subr.mxu0 0.0
      %912 = vmatpush1.msra.mxu0 0.0
      %913 = vmatprep.subr.mxu0 0.0
      %914 = vmatpush1.msra.mxu0 0.0
      %915 = vmatprep.subr.mxu0 0.0
      %916 = vmatpush1.msra.mxu0 0.0
      %917 = vmatprep.subr.mxu0 0.0
      %918 = vmatpush1.msra.mxu0 0.0
      %919 = vmatprep.subr.mxu0 0.0
      %920 = vmatpush1.msra.mxu0 0.0
      %921 = vmatprep.subr.mxu0 0.0
      %922 = vmatpush1.msra.mxu0 0.0
      %923 = vmatprep.subr.mxu0 0.0
      %924 = vmatpush1.msra.mxu0 0.0
      %925 = vmatprep.subr.mxu0 0.0
      %926 = vmatpush1.msra.mxu0 0.0
      %927 = vmatprep.subr.mxu0 0.0
      %928 = vmatpush1.msra.mxu0 0.0
      %929 = vmatprep.subr.mxu0 0.0
      %930 = vmatpush1.msra.mxu0 0.0
      %931 = vmatprep.subr.mxu0 0.0
      %932 = vmatpush1.msra.mxu0 0.0
      %933 = vmatprep.subr.mxu0 0.0
      %934 = vmatpush1.msra.mxu0 0.0
      %935 = vmatprep.subr.mxu0 0.0
      %936 = vmatpush1.msra.mxu0 %v900
      %937 = vmatprep.subr.mxu0 0.0
      %938 = vmatpush1.msra.mxu0 %v899
      %939 = vmatprep.subr.mxu0 0.0
      %940 = vmatpush1.msra.mxu0 %v898
      %941 = vmatprep.subr.mxu0 0.0
      %942 = vmatpush1.msra.mxu0 %v897
      %943 = vmatprep.subr.mxu0 0.0
      %944 = vmatpush2.msra.mxu0 0.0
      %945 = vmatprep.subr.mxu0 0.0
      %946 = vmatpush2.msra.mxu0 0.0
      %947 = vmatprep.subr.mxu0 0.0
      %948 = vmatpush2.msra.mxu0 0.0
      %949 = vmatprep.subr.mxu0 0.0
      %950 = vmatpush2.msra.mxu0 0.0
      %951 = vmatprep.subr.mxu0 0.0
      %952 = vmatpush2.msra.mxu0 0.0
      %953 = vmatprep.subr.mxu0 0.0
      %954 = vmatpush2.msra.mxu0 0.0
      %955 = vmatprep.subr.mxu0 0.0
      %956 = vmatpush2.msra.mxu0 0.0
      %957 = vmatprep.subr.mxu0 0.0
      %958 = vmatpush2.msra.mxu0 0.0
      %959 = vmatprep.subr.mxu0 0.0
      %960 = vmatpush2.msra.mxu0 0.0
      %961 = vmatprep.subr.mxu0 0.0
      %962 = vmatpush2.msra.mxu0 0.0
      %963 = vmatprep.subr.mxu0 0.0
      %964 = vmatpush2.msra.mxu0 0.0
      %965 = vmatprep.subr.mxu0 0.0
      %966 = vmatpush2.msra.mxu0 0.0
      %967 = vmatprep.subr.mxu0 0.0
      %968 = vmatpush2.msra.mxu0 0.0
      %969 = vmatprep.subr.mxu0 0.0
      %970 = vmatpush2.msra.mxu0 0.0
      %971 = vmatprep.subr.mxu0 0.0
      %972 = vmatpush2.msra.mxu0 0.0
      %973 = vmatprep.subr.mxu0 0.0
      %974 = vmatpush2.msra.mxu0 0.0
      %975 = vmatprep.mubr.f32.mxu0 0.0
      %976 = vmatmul.mubr.f32.gmra.mxu0 %v907
      %v977 = vpop.f32.mrf.mxu0
      %v978 = vadd.f32 0.0, %v977
      %v979 = vpop.f32.mrf.mxu0
      %980 = vmatprep.mubr.f32.mxu0 0.0
      %981 = vmatmul.mubr.f32.gmra.mxu0 %v909
      %v982 = vpop.f32.mrf.mxu0
      %v983 = vadd.f32 0.0, %v982
      %v984 = vpop.f32.mrf.mxu0
      %985 = vdwg.mxu0
      %v986 = vsel %vm722, %v890, 0
      %v988 = vsel %vm722, %v891, 0
      %990 = vmatprep.subr.mxu0 0.0
      %991 = vmatpush1.msra.mxu0 0.0
      %992 = vmatprep.subr.mxu0 0.0
      %993 = vmatpush1.msra.mxu0 0.0
      %994 = vmatprep.subr.mxu0 0.0
      %995 = vmatpush1.msra.mxu0 0.0
      %996 = vmatprep.subr.mxu0 0.0
      %997 = vmatpush1.msra.mxu0 0.0
      %998 = vmatprep.subr.mxu0 0.0
      %999 = vmatpush1.msra.mxu0 0.0
      %1000 = vmatprep.subr.mxu0 0.0
      %1001 = vmatpush1.msra.mxu0 0.0
      %1002 = vmatprep.subr.mxu0 0.0
      %1003 = vmatpush1.msra.mxu0 0.0
      %1004 = vmatprep.subr.mxu0 0.0
      %1005 = vmatpush1.msra.mxu0 0.0
      %1006 = vmatprep.subr.mxu0 0.0
      %1007 = vmatpush1.msra.mxu0 0.0
      %1008 = vmatprep.subr.mxu0 0.0
      %1009 = vmatpush1.msra.mxu0 0.0
      %1010 = vmatprep.subr.mxu0 0.0
      %1011 = vmatpush1.msra.mxu0 0.0
      %1012 = vmatprep.subr.mxu0 0.0
      %1013 = vmatpush1.msra.mxu0 0.0
      %1014 = vmatprep.subr.mxu0 0.0
      %1015 = vmatpush1.msra.mxu0 %v895
      %1016 = vmatprep.subr.mxu0 0.0
      %1017 = vmatpush1.msra.mxu0 %v894
      %1018 = vmatprep.subr.mxu0 0.0
      %1019 = vmatpush1.msra.mxu0 %v893
      %1020 = vmatprep.subr.mxu0 0.0
      %1021 = vmatpush1.msra.mxu0 %v892
      %1022 = vmatprep.subr.mxu0 0.0
      %1023 = vmatpush2.msra.mxu0 0.0
      %1024 = vmatprep.subr.mxu0 0.0
      %1025 = vmatpush2.msra.mxu0 0.0
      %1026 = vmatprep.subr.mxu0 0.0
      %1027 = vmatpush2.msra.mxu0 0.0
      %1028 = vmatprep.subr.mxu0 0.0
      %1029 = vmatpush2.msra.mxu0 0.0
      %1030 = vmatprep.subr.mxu0 0.0
      %1031 = vmatpush2.msra.mxu0 0.0
      %1032 = vmatprep.subr.mxu0 0.0
      %1033 = vmatpush2.msra.mxu0 0.0
      %1034 = vmatprep.subr.mxu0 0.0
      %1035 = vmatpush2.msra.mxu0 0.0
      %1036 = vmatprep.subr.mxu0 0.0
      %1037 = vmatpush2.msra.mxu0 0.0
      %1038 = vmatprep.subr.mxu0 0.0
      %1039 = vmatpush2.msra.mxu0 0.0
      %1040 = vmatprep.subr.mxu0 0.0
      %1041 = vmatpush2.msra.mxu0 0.0
      %1042 = vmatprep.subr.mxu0 0.0
      %1043 = vmatpush2.msra.mxu0 0.0
      %1044 = vmatprep.subr.mxu0 0.0
      %1045 = vmatpush2.msra.mxu0 0.0
      %1046 = vmatprep.subr.mxu0 0.0
      %1047 = vmatpush2.msra.mxu0 0.0
      %1048 = vmatprep.subr.mxu0 0.0
      %1049 = vmatpush2.msra.mxu0 0.0
      %1050 = vmatprep.subr.mxu0 0.0
      %1051 = vmatpush2.msra.mxu0 0.0
      %1052 = vmatprep.subr.mxu0 0.0
      %1053 = vmatpush2.msra.mxu0 0.0
      %1054 = vmatprep.mubr.f32.mxu0 0.0
      %1055 = vmatmul.mubr.f32.gmra.mxu0 %v986
      %v1056 = vpop.f32.mrf.mxu0
      %v1057 = vadd.f32 %v978, %v1056
      %v1058 = vpop.f32.mrf.mxu0
      %1059 = vmatprep.mubr.f32.mxu0 0.0
      %1060 = vmatmul.mubr.f32.gmra.mxu0 %v988
      %v1061 = vpop.f32.mrf.mxu0
      %v1062 = vadd.f32 %v983, %v1061
      %v1063 = vpop.f32.mrf.mxu0
      %1064 = vdwg.mxu0
      %s1065 = scalar_lea.vmem %s5, 64
      %v1066 = vld [vmem:[%s1065] sm:$0xff]
      %v1067 = vld [vmem:[%s1065 + $0x8] sm:$0xff]
      %v1068 = vld [vmem:[%s1065 + $0x10] sm:$0xff]
      %v1069 = vld [vmem:[%s1065 + $0x18] sm:$0xff]
      %vm1070 = vcmask 1045504
      %v1071 = vrot.slane %v890, 2
      %v1072 = vrot.slane %v891, 2
      %v1073 = vsel %vm1070, %v1071, %v1072
      %v1074 = vsel %vm722, %v1073, 0
      %v1076 = vsel %vm722, %v1072, 0
      %1078 = vmatprep.subr.mxu0 0.0
      %1079 = vmatpush1.msra.mxu0 0.0
      %1080 = vmatprep.subr.mxu0 0.0
      %1081 = vmatpush1.msra.mxu0 0.0
      %1082 = vmatprep.subr.mxu0 0.0
      %1083 = vmatpush1.msra.mxu0 0.0
      %1084 = vmatprep.subr.mxu0 0.0
      %1085 = vmatpush1.msra.mxu0 0.0
      %1086 = vmatprep.subr.mxu0 0.0
      %1087 = vmatpush1.msra.mxu0 0.0
      %1088 = vmatprep.subr.mxu0 0.0
      %1089 = vmatpush1.msra.mxu0 0.0
      %1090 = vmatprep.subr.mxu0 0.0
      %1091 = vmatpush1.msra.mxu0 0.0
      %1092 = vmatprep.subr.mxu0 0.0
      %1093 = vmatpush1.msra.mxu0 0.0
      %1094 = vmatprep.subr.mxu0 0.0
      %1095 = vmatpush1.msra.mxu0 0.0
      %1096 = vmatprep.subr.mxu0 0.0
      %1097 = vmatpush1.msra.mxu0 0.0
      %1098 = vmatprep.subr.mxu0 0.0
      %1099 = vmatpush1.msra.mxu0 0.0
      %1100 = vmatprep.subr.mxu0 0.0
      %1101 = vmatpush1.msra.mxu0 0.0
      %1102 = vmatprep.subr.mxu0 0.0
      %1103 = vmatpush1.msra.mxu0 %v1069
      %1104 = vmatprep.subr.mxu0 0.0
      %1105 = vmatpush1.msra.mxu0 %v1068
      %1106 = vmatprep.subr.mxu0 0.0
      %1107 = vmatpush1.msra.mxu0 %v1067
      %1108 = vmatprep.subr.mxu0 0.0
      %1109 = vmatpush1.msra.mxu0 %v1066
      %1110 = vmatprep.subr.mxu0 0.0
      %1111 = vmatpush2.msra.mxu0 0.0
      %1112 = vmatprep.subr.mxu0 0.0
      %1113 = vmatpush2.msra.mxu0 0.0
      %1114 = vmatprep.subr.mxu0 0.0
      %1115 = vmatpush2.msra.mxu0 0.0
      %1116 = vmatprep.subr.mxu0 0.0
      %1117 = vmatpush2.msra.mxu0 0.0
      %1118 = vmatprep.subr.mxu0 0.0
      %1119 = vmatpush2.msra.mxu0 0.0
      %1120 = vmatprep.subr.mxu0 0.0
      %1121 = vmatpush2.msra.mxu0 0.0
      %1122 = vmatprep.subr.mxu0 0.0
      %1123 = vmatpush2.msra.mxu0 0.0
      %1124 = vmatprep.subr.mxu0 0.0
      %1125 = vmatpush2.msra.mxu0 0.0
      %1126 = vmatprep.subr.mxu0 0.0
      %1127 = vmatpush2.msra.mxu0 0.0
      %1128 = vmatprep.subr.mxu0 0.0
      %1129 = vmatpush2.msra.mxu0 0.0
      %1130 = vmatprep.subr.mxu0 0.0
      %1131 = vmatpush2.msra.mxu0 0.0
      %1132 = vmatprep.subr.mxu0 0.0
      %1133 = vmatpush2.msra.mxu0 0.0
      %1134 = vmatprep.subr.mxu0 0.0
      %1135 = vmatpush2.msra.mxu0 0.0
      %1136 = vmatprep.subr.mxu0 0.0
      %1137 = vmatpush2.msra.mxu0 0.0
      %1138 = vmatprep.subr.mxu0 0.0
      %1139 = vmatpush2.msra.mxu0 0.0
      %1140 = vmatprep.subr.mxu0 0.0
      %1141 = vmatpush2.msra.mxu0 0.0
      %1142 = vmatprep.mubr.f32.mxu0 0.0
      %1143 = vmatmul.mubr.f32.gmra.mxu0 %v1074
      %v1144 = vpop.f32.mrf.mxu0
      %v1145 = vadd.f32 0.0, %v1144
      %v1146 = vpop.f32.mrf.mxu0
      %1147 = vmatprep.mubr.f32.mxu0 0.0
      %1148 = vmatmul.mubr.f32.gmra.mxu0 %v1076
      %v1149 = vpop.f32.mrf.mxu0
      %v1150 = vadd.f32 0.0, %v1149
      %v1151 = vpop.f32.mrf.mxu0
      %1152 = vdwg.mxu0
      %v1153 = vadd.f32 %v1057, %v1145
      %v1154 = vadd.f32 %v1062, %v1150
      %v1155 = vld [vmem:[%s6] sm:$0x1]
      %v1157 = vlaneseq
      %v1158 = vshrl.u32 %v1157, 7
      %v1159 = vsub.s32 0, %v1158
      %v1160 = vrot.slane %v1155, %v1159
      %v1162 = vadd.f32 %v1153, %v1160
      %v1163 = vadd.f32 %v1154, %v1160
      %v1164 = vmax.f32 %v1162, 0.0
      %v1165 = vmax.f32 %v1163, 0.0
      %v1166 = vld [vmem:[%s7] sm:$0xff]
      %v1167 = vld [vmem:[%s7 + $0x8] sm:$0xff]
      %v1168 = vld [vmem:[%s7 + $0x10] sm:$0xff]
      %v1169 = vld [vmem:[%s7 + $0x18] sm:$0xff]
      %v1170 = vld [vmem:[%s7 + $0x20] sm:$0xff]
      %v1171 = vld [vmem:[%s7 + $0x28] sm:$0xff]
      %v1172 = vld [vmem:[%s7 + $0x30] sm:$0xff]
      %v1173 = vld [vmem:[%s7 + $0x38] sm:$0xff]
      %v1174 = vld [vmem:[%s8] sm:$0x1]
      %v1176 = vlaneseq
      %v1177 = vshrl.u32 %v1176, 7
      %v1178 = vsub.s32 0, %v1177
      %v1179 = vrot.slane %v1174, %v1178
      %vm1181 = vcmask 523264
      %v1183 = vsel %vm1181, %v1164, 0
      %v1186 = vsel %vm1181, %v1165, 0
      %1188 = vmatprep.subr.mxu0 0.0
      %1189 = vmatpush1.msra.mxu0 0.0
      %1190 = vmatprep.subr.mxu0 0.0
      %1191 = vmatpush1.msra.mxu0 0.0
      %1192 = vmatprep.subr.mxu0 0.0
      %1193 = vmatpush1.msra.mxu0 0.0
      %1194 = vmatprep.subr.mxu0 0.0
      %1195 = vmatpush1.msra.mxu0 0.0
      %1196 = vmatprep.subr.mxu0 0.0
      %1197 = vmatpush1.msra.mxu0 0.0
      %1198 = vmatprep.subr.mxu0 0.0
      %1199 = vmatpush1.msra.mxu0 0.0
      %1200 = vmatprep.subr.mxu0 0.0
      %1201 = vmatpush1.msra.mxu0 0.0
      %1202 = vmatprep.subr.mxu0 0.0
      %1203 = vmatpush1.msra.mxu0 0.0
      %1204 = vmatprep.subr.mxu0 0.0
      %1205 = vmatpush1.msra.mxu0 %v1173
      %1206 = vmatprep.subr.mxu0 0.0
      %1207 = vmatpush1.msra.mxu0 %v1172
      %1208 = vmatprep.subr.mxu0 0.0
      %1209 = vmatpush1.msra.mxu0 %v1171
      %1210 = vmatprep.subr.mxu0 0.0
      %1211 = vmatpush1.msra.mxu0 %v1170
      %1212 = vmatprep.subr.mxu0 0.0
      %1213 = vmatpush1.msra.mxu0 %v1169
      %1214 = vmatprep.subr.mxu0 0.0
      %1215 = vmatpush1.msra.mxu0 %v1168
      %1216 = vmatprep.subr.mxu0 0.0
      %1217 = vmatpush1.msra.mxu0 %v1167
      %1218 = vmatprep.subr.mxu0 0.0
      %1219 = vmatpush1.msra.mxu0 %v1166
      %1220 = vmatprep.subr.mxu0 0.0
      %1221 = vmatpush2.msra.mxu0 0.0
      %1222 = vmatprep.subr.mxu0 0.0
      %1223 = vmatpush2.msra.mxu0 0.0
      %1224 = vmatprep.subr.mxu0 0.0
      %1225 = vmatpush2.msra.mxu0 0.0
      %1226 = vmatprep.subr.mxu0 0.0
      %1227 = vmatpush2.msra.mxu0 0.0
      %1228 = vmatprep.subr.mxu0 0.0
      %1229 = vmatpush2.msra.mxu0 0.0
      %1230 = vmatprep.subr.mxu0 0.0
      %1231 = vmatpush2.msra.mxu0 0.0
      %1232 = vmatprep.subr.mxu0 0.0
      %1233 = vmatpush2.msra.mxu0 0.0
      %1234 = vmatprep.subr.mxu0 0.0
      %1235 = vmatpush2.msra.mxu0 0.0
      %1236 = vmatprep.subr.mxu0 0.0
      %1237 = vmatpush2.msra.mxu0 0.0
      %1238 = vmatprep.subr.mxu0 0.0
      %1239 = vmatpush2.msra.mxu0 0.0
      %1240 = vmatprep.subr.mxu0 0.0
      %1241 = vmatpush2.msra.mxu0 0.0
      %1242 = vmatprep.subr.mxu0 0.0
      %1243 = vmatpush2.msra.mxu0 0.0
      %1244 = vmatprep.subr.mxu0 0.0
      %1245 = vmatpush2.msra.mxu0 0.0
      %1246 = vmatprep.subr.mxu0 0.0
      %1247 = vmatpush2.msra.mxu0 0.0
      %1248 = vmatprep.subr.mxu0 0.0
      %1249 = vmatpush2.msra.mxu0 0.0
      %1250 = vmatprep.subr.mxu0 0.0
      %1251 = vmatpush2.msra.mxu0 0.0
      %1252 = vmatprep.mubr.f32.mxu0 0.0
      %1253 = vmatmul.mubr.f32.gmra.mxu0 %v1183
      %v1254 = vpop.f32.mrf.mxu0
      %v1255 = vadd.f32 %v1179, %v1254
      %v1256 = vpop.f32.mrf.mxu0
      %1257 = vmatprep.mubr.f32.mxu0 0.0
      %1258 = vmatmul.mubr.f32.gmra.mxu0 %v1186
      %v1259 = vpop.f32.mrf.mxu0
      %v1260 = vadd.f32 %v1179, %v1259
      %v1261 = vpop.f32.mrf.mxu0
      %1262 = vdwg.mxu0
      %vm1263 = vcmask 130048
      %1264 = vst.msk [vmem:[#allocation3] sm:$0xff] %vm1263, 0.0
      %1265 = vst.msk [vmem:[#allocation3 + $0x8] sm:$0xff] %vm1263, 0.0
      %1266 = vst.msk [vmem:[#allocation3 + $0x10] sm:$0xff] %vm1263, 0.0
      %vm1267 = vcmask 123904
      %1268 = vst.msk [vmem:[#allocation3 + $0x18] sm:$0x3] %vm1267, 0.0
      %1269 = vst.msk [vmem:[#allocation3 + $0x1] sm:$0xff] %vm1263, %v881
      %1270 = vst.msk [vmem:[#allocation3 + $0x9] sm:$0xff] %vm1263, %v882
      %1271 = vst.msk [vmem:[#allocation3 + $0x11] sm:$0xff] %vm1263, %v883
      %v1272 = vld [vmem:[#allocation3] sm:$0xff]
      %v1273 = vld [vmem:[#allocation3 + $0x8] sm:$0xff]
      %v1274 = vld [vmem:[#allocation3 + $0x10] sm:$0xff]
      %v1275 = vld [vmem:[#allocation3 + $0x18] sm:$0x3]
      %v1276 = vld [vmem:[%s9] sm:$0xff]
      %v1277 = vld [vmem:[%s9 + $0x8] sm:$0xff]
      %s1278 = scalar_lea.vmem %s9, 16
      %v1279 = vld [vmem:[%s1278] sm:$0xff]
      %v1280 = vld [vmem:[%s1278 + $0x8] sm:$0xff]
      %v1285 = vrot.slane %v1272, 1
      %v1286 = vrot.slane %v1273, 1
      %v1287 = vsel %vm903, %v1285, %v1286
      %v1288 = vrot.slane %v1274, 1
      %v1289 = vsel %vm903, %v1286, %v1288
      %v1290 = vrot.slane %v1275, 1
      %v1291 = vsel %vm903, %v1288, %v1290
      %v1292 = vsel %vm1263, %v1287, 0
      %v1294 = vsel %vm1263, %v1289, 0
      %v1296 = vsel %vm1263, %v1291, 0
      %1298 = vmatprep.subr.mxu0 0.0
      %1299 = vmatpush1.msra.mxu0 0.0
      %1300 = vmatprep.subr.mxu0 0.0
      %1301 = vmatpush1.msra.mxu0 0.0
      %1302 = vmatprep.subr.mxu0 0.0
      %1303 = vmatpush1.msra.mxu0 0.0
      %1304 = vmatprep.subr.mxu0 0.0
      %1305 = vmatpush1.msra.mxu0 0.0
      %1306 = vmatprep.subr.mxu0 0.0
      %1307 = vmatpush1.msra.mxu0 0.0
      %1308 = vmatprep.subr.mxu0 0.0
      %1309 = vmatpush1.msra.mxu0 0.0
      %1310 = vmatprep.subr.mxu0 0.0
      %1311 = vmatpush1.msra.mxu0 0.0
      %1312 = vmatprep.subr.mxu0 0.0
      %1313 = vmatpush1.msra.mxu0 0.0
      %1314 = vmatprep.subr.mxu0 0.0
      %1315 = vmatpush1.msra.mxu0 0.0
      %1316 = vmatprep.subr.mxu0 0.0
      %1317 = vmatpush1.msra.mxu0 0.0
      %1318 = vmatprep.subr.mxu0 0.0
      %1319 = vmatpush1.msra.mxu0 0.0
      %1320 = vmatprep.subr.mxu0 0.0
      %1321 = vmatpush1.msra.mxu0 0.0
      %1322 = vmatprep.subr.mxu0 0.0
      %1323 = vmatpush1.msra.mxu0 0.0
      %1324 = vmatprep.subr.mxu0 0.0
      %1325 = vmatpush1.msra.mxu0 0.0
      %1326 = vmatprep.subr.mxu0 0.0
      %1327 = vmatpush1.msra.mxu0 %v1280
      %1328 = vmatprep.subr.mxu0 0.0
      %1329 = vmatpush1.msra.mxu0 %v1279
      %1330 = vmatprep.subr.mxu0 0.0
      %1331 = vmatpush2.msra.mxu0 0.0
      %1332 = vmatprep.subr.mxu0 0.0
      %1333 = vmatpush2.msra.mxu0 0.0
      %1334 = vmatprep.subr.mxu0 0.0
      %1335 = vmatpush2.msra.mxu0 0.0
      %1336 = vmatprep.subr.mxu0 0.0
      %1337 = vmatpush2.msra.mxu0 0.0
      %1338 = vmatprep.subr.mxu0 0.0
      %1339 = vmatpush2.msra.mxu0 0.0
      %1340 = vmatprep.subr.mxu0 0.0
      %1341 = vmatpush2.msra.mxu0 0.0
      %1342 = vmatprep.subr.mxu0 0.0
      %1343 = vmatpush2.msra.mxu0 0.0
      %1344 = vmatprep.subr.mxu0 0.0
      %1345 = vmatpush2.msra.mxu0 0.0
      %1346 = vmatprep.subr.mxu0 0.0
      %1347 = vmatpush2.msra.mxu0 0.0
      %1348 = vmatprep.subr.mxu0 0.0
      %1349 = vmatpush2.msra.mxu0 0.0
      %1350 = vmatprep.subr.mxu0 0.0
      %1351 = vmatpush2.msra.mxu0 0.0
      %1352 = vmatprep.subr.mxu0 0.0
      %1353 = vmatpush2.msra.mxu0 0.0
      %1354 = vmatprep.subr.mxu0 0.0
      %1355 = vmatpush2.msra.mxu0 0.0
      %1356 = vmatprep.subr.mxu0 0.0
      %1357 = vmatpush2.msra.mxu0 0.0
      %1358 = vmatprep.subr.mxu0 0.0
      %1359 = vmatpush2.msra.mxu0 0.0
      %1360 = vmatprep.subr.mxu0 0.0
      %1361 = vmatpush2.msra.mxu0 0.0
      %1362 = vmatprep.mubr.f32.mxu0 0.0
      %1363 = vmatmul.mubr.f32.gmra.mxu0 %v1292
      %v1364 = vpop.f32.mrf.mxu0
      %v1365 = vadd.f32 0.0, %v1364
      %v1366 = vpop.f32.mrf.mxu0
      %1367 = vmatprep.mubr.f32.mxu0 0.0
      %1368 = vmatmul.mubr.f32.gmra.mxu0 %v1294
      %v1369 = vpop.f32.mrf.mxu0
      %v1370 = vadd.f32 0.0, %v1369
      %v1371 = vpop.f32.mrf.mxu0
      %1372 = vmatprep.mubr.f32.mxu0 0.0
      %1373 = vmatmul.mubr.f32.gmra.mxu0 %v1296
      %v1374 = vpop.f32.mrf.mxu0
      %v1375 = vadd.f32 0.0, %v1374
      %v1376 = vpop.f32.mrf.mxu0
      %1377 = vdwg.mxu0
      %v1378 = vsel %vm1263, %v1272, 0
      %v1380 = vsel %vm1263, %v1273, 0
      %v1382 = vsel %vm1263, %v1274, 0
      %1384 = vmatprep.subr.mxu0 0.0
      %1385 = vmatpush1.msra.mxu0 0.0
      %1386 = vmatprep.subr.mxu0 0.0
      %1387 = vmatpush1.msra.mxu0 0.0
      %1388 = vmatprep.subr.mxu0 0.0
      %1389 = vmatpush1.msra.mxu0 0.0
      %1390 = vmatprep.subr.mxu0 0.0
      %1391 = vmatpush1.msra.mxu0 0.0
      %1392 = vmatprep.subr.mxu0 0.0
      %1393 = vmatpush1.msra.mxu0 0.0
      %1394 = vmatprep.subr.mxu0 0.0
      %1395 = vmatpush1.msra.mxu0 0.0
      %1396 = vmatprep.subr.mxu0 0.0
      %1397 = vmatpush1.msra.mxu0 0.0
      %1398 = vmatprep.subr.mxu0 0.0
      %1399 = vmatpush1.msra.mxu0 0.0
      %1400 = vmatprep.subr.mxu0 0.0
      %1401 = vmatpush1.msra.mxu0 0.0
      %1402 = vmatprep.subr.mxu0 0.0
      %1403 = vmatpush1.msra.mxu0 0.0
      %1404 = vmatprep.subr.mxu0 0.0
      %1405 = vmatpush1.msra.mxu0 0.0
      %1406 = vmatprep.subr.mxu0 0.0
      %1407 = vmatpush1.msra.mxu0 0.0
      %1408 = vmatprep.subr.mxu0 0.0
      %1409 = vmatpush1.msra.mxu0 0.0
      %1410 = vmatprep.subr.mxu0 0.0
      %1411 = vmatpush1.msra.mxu0 0.0
      %1412 = vmatprep.subr.mxu0 0.0
      %1413 = vmatpush1.msra.mxu0 %v1277
      %1414 = vmatprep.subr.mxu0 0.0
      %1415 = vmatpush1.msra.mxu0 %v1276
      %1416 = vmatprep.subr.mxu0 0.0
      %1417 = vmatpush2.msra.mxu0 0.0
      %1418 = vmatprep.subr.mxu0 0.0
      %1419 = vmatpush2.msra.mxu0 0.0
      %1420 = vmatprep.subr.mxu0 0.0
      %1421 = vmatpush2.msra.mxu0 0.0
      %1422 = vmatprep.subr.mxu0 0.0
      %1423 = vmatpush2.msra.mxu0 0.0
      %1424 = vmatprep.subr.mxu0 0.0
      %1425 = vmatpush2.msra.mxu0 0.0
      %1426 = vmatprep.subr.mxu0 0.0
      %1427 = vmatpush2.msra.mxu0 0.0
      %1428 = vmatprep.subr.mxu0 0.0
      %1429 = vmatpush2.msra.mxu0 0.0
      %1430 = vmatprep.subr.mxu0 0.0
      %1431 = vmatpush2.msra.mxu0 0.0
      %1432 = vmatprep.subr.mxu0 0.0
      %1433 = vmatpush2.msra.mxu0 0.0
      %1434 = vmatprep.subr.mxu0 0.0
      %1435 = vmatpush2.msra.mxu0 0.0
      %1436 = vmatprep.subr.mxu0 0.0
      %1437 = vmatpush2.msra.mxu0 0.0
      %1438 = vmatprep.subr.mxu0 0.0
      %1439 = vmatpush2.msra.mxu0 0.0
      %1440 = vmatprep.subr.mxu0 0.0
      %1441 = vmatpush2.msra.mxu0 0.0
      %1442 = vmatprep.subr.mxu0 0.0
      %1443 = vmatpush2.msra.mxu0 0.0
      %1444 = vmatprep.subr.mxu0 0.0
      %1445 = vmatpush2.msra.mxu0 0.0
      %1446 = vmatprep.subr.mxu0 0.0
      %1447 = vmatpush2.msra.mxu0 0.0
      %1448 = vmatprep.mubr.f32.mxu0 0.0
      %1449 = vmatmul.mubr.f32.gmra.mxu0 %v1378
      %v1450 = vpop.f32.mrf.mxu0
      %v1451 = vadd.f32 %v1365, %v1450
      %v1452 = vpop.f32.mrf.mxu0
      %1453 = vmatprep.mubr.f32.mxu0 0.0
      %1454 = vmatmul.mubr.f32.gmra.mxu0 %v1380
      %v1455 = vpop.f32.mrf.mxu0
      %v1456 = vadd.f32 %v1370, %v1455
      %v1457 = vpop.f32.mrf.mxu0
      %1458 = vmatprep.mubr.f32.mxu0 0.0
      %1459 = vmatmul.mubr.f32.gmra.mxu0 %v1382
      %v1460 = vpop.f32.mrf.mxu0
      %v1461 = vadd.f32 %v1375, %v1460
      %v1462 = vpop.f32.mrf.mxu0
      %1463 = vdwg.mxu0
      %s1464 = scalar_lea.vmem %s9, 32
      %v1465 = vld [vmem:[%s1464] sm:$0xff]
      %v1466 = vld [vmem:[%s1464 + $0x8] sm:$0xff]
      %v1467 = vrot.slane %v1272, 2
      %v1468 = vrot.slane %v1273, 2
      %v1469 = vsel %vm1070, %v1467, %v1468
      %v1470 = vrot.slane %v1274, 2
      %v1471 = vsel %vm1070, %v1468, %v1470
      %v1472 = vrot.slane %v1275, 2
      %v1473 = vsel %vm1070, %v1470, %v1472
      %v1474 = vsel %vm1263, %v1469, 0
      %v1476 = vsel %vm1263, %v1471, 0
      %v1478 = vsel %vm1263, %v1473, 0
      %1480 = vmatprep.subr.mxu0 0.0
      %1481 = vmatpush1.msra.mxu0 0.0
      %1482 = vmatprep.subr.mxu0 0.0
      %1483 = vmatpush1.msra.mxu0 0.0
      %1484 = vmatprep.subr.mxu0 0.0
      %1485 = vmatpush1.msra.mxu0 0.0
      %1486 = vmatprep.subr.mxu0 0.0
      %1487 = vmatpush1.msra.mxu0 0.0
      %1488 = vmatprep.subr.mxu0 0.0
      %1489 = vmatpush1.msra.mxu0 0.0
      %1490 = vmatprep.subr.mxu0 0.0
      %1491 = vmatpush1.msra.mxu0 0.0
      %1492 = vmatprep.subr.mxu0 0.0
      %1493 = vmatpush1.msra.mxu0 0.0
      %1494 = vmatprep.subr.mxu0 0.0
      %1495 = vmatpush1.msra.mxu0 0.0
      %1496 = vmatprep.subr.mxu0 0.0
      %1497 = vmatpush1.msra.mxu0 0.0
      %1498 = vmatprep.subr.mxu0 0.0
      %1499 = vmatpush1.msra.mxu0 0.0
      %1500 = vmatprep.subr.mxu0 0.0
      %1501 = vmatpush1.msra.mxu0 0.0
      %1502 = vmatprep.subr.mxu0 0.0
      %1503 = vmatpush1.msra.mxu0 0.0
      %1504 = vmatprep.subr.mxu0 0.0
      %1505 = vmatpush1.msra.mxu0 0.0
      %1506 = vmatprep.subr.mxu0 0.0
      %1507 = vmatpush1.msra.mxu0 0.0
      %1508 = vmatprep.subr.mxu0 0.0
      %1509 = vmatpush1.msra.mxu0 %v1466
      %1510 = vmatprep.subr.mxu0 0.0
      %1511 = vmatpush1.msra.mxu0 %v1465
      %1512 = vmatprep.subr.mxu0 0.0
      %1513 = vmatpush2.msra.mxu0 0.0
      %1514 = vmatprep.subr.mxu0 0.0
      %1515 = vmatpush2.msra.mxu0 0.0
      %1516 = vmatprep.subr.mxu0 0.0
      %1517 = vmatpush2.msra.mxu0 0.0
      %1518 = vmatprep.subr.mxu0 0.0
      %1519 = vmatpush2.msra.mxu0 0.0
      %1520 = vmatprep.subr.mxu0 0.0
      %1521 = vmatpush2.msra.mxu0 0.0
      %1522 = vmatprep.subr.mxu0 0.0
      %1523 = vmatpush2.msra.mxu0 0.0
      %1524 = vmatprep.subr.mxu0 0.0
      %1525 = vmatpush2.msra.mxu0 0.0
      %1526 = vmatprep.subr.mxu0 0.0
      %1527 = vmatpush2.msra.mxu0 0.0
      %1528 = vmatprep.subr.mxu0 0.0
      %1529 = vmatpush2.msra.mxu0 0.0
      %1530 = vmatprep.subr.mxu0 0.0
      %1531 = vmatpush2.msra.mxu0 0.0
      %1532 = vmatprep.subr.mxu0 0.0
      %1533 = vmatpush2.msra.mxu0 0.0
      %1534 = vmatprep.subr.mxu0 0.0
      %1535 = vmatpush2.msra.mxu0 0.0
      %1536 = vmatprep.subr.mxu0 0.0
      %1537 = vmatpush2.msra.mxu0 0.0
      %1538 = vmatprep.subr.mxu0 0.0
      %1539 = vmatpush2.msra.mxu0 0.0
      %1540 = vmatprep.subr.mxu0 0.0
      %1541 = vmatpush2.msra.mxu0 0.0
      %1542 = vmatprep.subr.mxu0 0.0
      %1543 = vmatpush2.msra.mxu0 0.0
      %1544 = vmatprep.mubr.f32.mxu0 0.0
      %1545 = vmatmul.mubr.f32.gmra.mxu0 %v1474
      %v1546 = vpop.f32.mrf.mxu0
      %v1547 = vadd.f32 0.0, %v1546
      %v1548 = vpop.f32.mrf.mxu0
      %1549 = vmatprep.mubr.f32.mxu0 0.0
      %1550 = vmatmul.mubr.f32.gmra.mxu0 %v1476
      %v1551 = vpop.f32.mrf.mxu0
      %v1552 = vadd.f32 0.0, %v1551
      %v1553 = vpop.f32.mrf.mxu0
      %1554 = vmatprep.mubr.f32.mxu0 0.0
      %1555 = vmatmul.mubr.f32.gmra.mxu0 %v1478
      %v1556 = vpop.f32.mrf.mxu0
      %v1557 = vadd.f32 0.0, %v1556
      %v1558 = vpop.f32.mrf.mxu0
      %1559 = vdwg.mxu0
      %v1560 = vadd.f32 %v1451, %v1547
      %v1561 = vadd.f32 %v1456, %v1552
      %v1562 = vadd.f32 %v1461, %v1557
      %v1563 = vld [vmem:[%s10] sm:$0x1]
      %v1565 = vlaneseq
      %v1566 = vshrl.u32 %v1565, 7
      %v1567 = vsub.s32 0, %v1566
      %v1568 = vrot.slane %v1563, %v1567
      %v1570 = vadd.f32 %v1560, %v1568
      %v1571 = vadd.f32 %v1561, %v1568
      %v1572 = vadd.f32 %v1562, %v1568
      %v1573 = vmax.f32 %v1570, 0.0
      %v1574 = vmax.f32 %v1571, 0.0
      %v1575 = vmax.f32 %v1572, 0.0
      %v1576 = vld [vmem:[%s11] sm:$0xff]
      %v1577 = vld [vmem:[%s11 + $0x8] sm:$0xff]
      %v1578 = vld [vmem:[%s11 + $0x10] sm:$0xff]
      %v1579 = vld [vmem:[%s11 + $0x18] sm:$0xff]
      %v1580 = vld [vmem:[%s12] sm:$0x1]
      %v1582 = vlaneseq
      %v1583 = vshrl.u32 %v1582, 7
      %v1584 = vsub.s32 0, %v1583
      %v1585 = vrot.slane %v1580, %v1584
      %v1588 = vsel %vm722, %v1573, 0
      %v1591 = vsel %vm722, %v1574, 0
      %v1594 = vsel %vm722, %v1575, 0
      %1596 = vmatprep.subr.mxu0 0.0
      %1597 = vmatpush1.msra.mxu0 0.0
      %1598 = vmatprep.subr.mxu0 0.0
      %1599 = vmatpush1.msra.mxu0 0.0
      %1600 = vmatprep.subr.mxu0 0.0
      %1601 = vmatpush1.msra.mxu0 0.0
      %1602 = vmatprep.subr.mxu0 0.0
      %1603 = vmatpush1.msra.mxu0 0.0
      %1604 = vmatprep.subr.mxu0 0.0
      %1605 = vmatpush1.msra.mxu0 0.0
      %1606 = vmatprep.subr.mxu0 0.0
      %1607 = vmatpush1.msra.mxu0 0.0
      %1608 = vmatprep.subr.mxu0 0.0
      %1609 = vmatpush1.msra.mxu0 0.0
      %1610 = vmatprep.subr.mxu0 0.0
      %1611 = vmatpush1.msra.mxu0 0.0
      %1612 = vmatprep.subr.mxu0 0.0
      %1613 = vmatpush1.msra.mxu0 0.0
      %1614 = vmatprep.subr.mxu0 0.0
      %1615 = vmatpush1.msra.mxu0 0.0
      %1616 = vmatprep.subr.mxu0 0.0
      %1617 = vmatpush1.msra.mxu0 0.0
      %1618 = vmatprep.subr.mxu0 0.0
      %1619 = vmatpush1.msra.mxu0 0.0
      %1620 = vmatprep.subr.mxu0 0.0
      %1621 = vmatpush1.msra.mxu0 %v1579
      %1622 = vmatprep.subr.mxu0 0.0
      %1623 = vmatpush1.msra.mxu0 %v1578
      %1624 = vmatprep.subr.mxu0 0.0
      %1625 = vmatpush1.msra.mxu0 %v1577
      %1626 = vmatprep.subr.mxu0 0.0
      %1627 = vmatpush1.msra.mxu0 %v1576
      %1628 = vmatprep.subr.mxu0 0.0
      %1629 = vmatpush2.msra.mxu0 0.0
      %1630 = vmatprep.subr.mxu0 0.0
      %1631 = vmatpush2.msra.mxu0 0.0
      %1632 = vmatprep.subr.mxu0 0.0
      %1633 = vmatpush2.msra.mxu0 0.0
      %1634 = vmatprep.subr.mxu0 0.0
      %1635 = vmatpush2.msra.mxu0 0.0
      %1636 = vmatprep.subr.mxu0 0.0
      %1637 = vmatpush2.msra.mxu0 0.0
      %1638 = vmatprep.subr.mxu0 0.0
      %1639 = vmatpush2.msra.mxu0 0.0
      %1640 = vmatprep.subr.mxu0 0.0
      %1641 = vmatpush2.msra.mxu0 0.0
      %1642 = vmatprep.subr.mxu0 0.0
      %1643 = vmatpush2.msra.mxu0 0.0
      %1644 = vmatprep.subr.mxu0 0.0
      %1645 = vmatpush2.msra.mxu0 0.0
      %1646 = vmatprep.subr.mxu0 0.0
      %1647 = vmatpush2.msra.mxu0 0.0
      %1648 = vmatprep.subr.mxu0 0.0
      %1649 = vmatpush2.msra.mxu0 0.0
      %1650 = vmatprep.subr.mxu0 0.0
      %1651 = vmatpush2.msra.mxu0 0.0
      %1652 = vmatprep.subr.mxu0 0.0
      %1653 = vmatpush2.msra.mxu0 0.0
      %1654 = vmatprep.subr.mxu0 0.0
      %1655 = vmatpush2.msra.mxu0 0.0
      %1656 = vmatprep.subr.mxu0 0.0
      %1657 = vmatpush2.msra.mxu0 0.0
      %1658 = vmatprep.subr.mxu0 0.0
      %1659 = vmatpush2.msra.mxu0 0.0
      %1660 = vmatprep.mubr.f32.mxu0 0.0
      %1661 = vmatmul.mubr.f32.gmra.mxu0 %v1588
      %v1662 = vpop.f32.mrf.mxu0
      %v1663 = vadd.f32 %v1585, %v1662
      %v1664 = vpop.f32.mrf.mxu0
      %1665 = vmatprep.mubr.f32.mxu0 0.0
      %1666 = vmatmul.mubr.f32.gmra.mxu0 %v1591
      %v1667 = vpop.f32.mrf.mxu0
      %v1668 = vadd.f32 %v1585, %v1667
      %v1669 = vpop.f32.mrf.mxu0
      %1670 = vmatprep.mubr.f32.mxu0 0.0
      %1671 = vmatmul.mubr.f32.gmra.mxu0 %v1594
      %v1672 = vpop.f32.mrf.mxu0
      %v1673 = vadd.f32 %v1585, %v1672
      %v1674 = vpop.f32.mrf.mxu0
      %1675 = vdwg.mxu0
      %v1676 = vmax.f32 %v1663, 0.0
      %v1677 = vmax.f32 %v1668, 0.0
      %v1678 = vmax.f32 %v1673, 0.0
      %v1679 = vld [vmem:[%s13] sm:$0xff]
      %v1680 = vld [vmem:[%s13 + $0x8] sm:$0xff]
      %v1681 = vld [vmem:[%s14] sm:$0x1]
      %v1683 = vlaneseq
      %v1684 = vshrl.u32 %v1683, 7
      %v1685 = vsub.s32 0, %v1684
      %v1686 = vrot.slane %v1681, %v1685
      %v1689 = vsel %vm1263, %v1676, 0
      %v1692 = vsel %vm1263, %v1677, 0
      %v1695 = vsel %vm1263, %v1678, 0
      %1697 = vmatprep.subr.mxu0 0.0
      %1698 = vmatpush1.msra.mxu0 0.0
      %1699 = vmatprep.subr.mxu0 0.0
      %1700 = vmatpush1.msra.mxu0 0.0
      %1701 = vmatprep.subr.mxu0 0.0
      %1702 = vmatpush1.msra.mxu0 0.0
      %1703 = vmatprep.subr.mxu0 0.0
      %1704 = vmatpush1.msra.mxu0 0.0
      %1705 = vmatprep.subr.mxu0 0.0
      %1706 = vmatpush1.msra.mxu0 0.0
      %1707 = vmatprep.subr.mxu0 0.0
      %1708 = vmatpush1.msra.mxu0 0.0
      %1709 = vmatprep.subr.mxu0 0.0
      %1710 = vmatpush1.msra.mxu0 0.0
      %1711 = vmatprep.subr.mxu0 0.0
      %1712 = vmatpush1.msra.mxu0 0.0
      %1713 = vmatprep.subr.mxu0 0.0
      %1714 = vmatpush1.msra.mxu0 0.0
      %1715 = vmatprep.subr.mxu0 0.0
      %1716 = vmatpush1.msra.mxu0 0.0
      %1717 = vmatprep.subr.mxu0 0.0
      %1718 = vmatpush1.msra.mxu0 0.0
      %1719 = vmatprep.subr.mxu0 0.0
      %1720 = vmatpush1.msra.mxu0 0.0
      %1721 = vmatprep.subr.mxu0 0.0
      %1722 = vmatpush1.msra.mxu0 0.0
      %1723 = vmatprep.subr.mxu0 0.0
      %1724 = vmatpush1.msra.mxu0 0.0
      %1725 = vmatprep.subr.mxu0 0.0
      %1726 = vmatpush1.msra.mxu0 %v1680
      %1727 = vmatprep.subr.mxu0 0.0
      %1728 = vmatpush1.msra.mxu0 %v1679
      %1729 = vmatprep.subr.mxu0 0.0
      %1730 = vmatpush2.msra.mxu0 0.0
      %1731 = vmatprep.subr.mxu0 0.0
      %1732 = vmatpush2.msra.mxu0 0.0
      %1733 = vmatprep.subr.mxu0 0.0
      %1734 = vmatpush2.msra.mxu0 0.0
      %1735 = vmatprep.subr.mxu0 0.0
      %1736 = vmatpush2.msra.mxu0 0.0
      %1737 = vmatprep.subr.mxu0 0.0
      %1738 = vmatpush2.msra.mxu0 0.0
      %1739 = vmatprep.subr.mxu0 0.0
      %1740 = vmatpush2.msra.mxu0 0.0
      %1741 = vmatprep.subr.mxu0 0.0
      %1742 = vmatpush2.msra.mxu0 0.0
      %1743 = vmatprep.subr.mxu0 0.0
      %1744 = vmatpush2.msra.mxu0 0.0
      %1745 = vmatprep.subr.mxu0 0.0
      %1746 = vmatpush2.msra.mxu0 0.0
      %1747 = vmatprep.subr.mxu0 0.0
      %1748 = vmatpush2.msra.mxu0 0.0
      %1749 = vmatprep.subr.mxu0 0.0
      %1750 = vmatpush2.msra.mxu0 0.0
      %1751 = vmatprep.subr.mxu0 0.0
      %1752 = vmatpush2.msra.mxu0 0.0
      %1753 = vmatprep.subr.mxu0 0.0
      %1754 = vmatpush2.msra.mxu0 0.0
      %1755 = vmatprep.subr.mxu0 0.0
      %1756 = vmatpush2.msra.mxu0 0.0
      %1757 = vmatprep.subr.mxu0 0.0
      %1758 = vmatpush2.msra.mxu0 0.0
      %1759 = vmatprep.subr.mxu0 0.0
      %1760 = vmatpush2.msra.mxu0 0.0
      %1761 = vmatprep.mubr.f32.mxu0 0.0
      %1762 = vmatmul.mubr.f32.gmra.mxu0 %v1689
      %v1763 = vpop.f32.mrf.mxu0
      %v1764 = vadd.f32 %v1686, %v1763
      %v1765 = vpop.f32.mrf.mxu0
      %1766 = vmatprep.mubr.f32.mxu0 0.0
      %1767 = vmatmul.mubr.f32.gmra.mxu0 %v1692
      %v1768 = vpop.f32.mrf.mxu0
      %v1769 = vadd.f32 %v1686, %v1768
      %v1770 = vpop.f32.mrf.mxu0
      %1771 = vmatprep.mubr.f32.mxu0 0.0
      %1772 = vmatmul.mubr.f32.gmra.mxu0 %v1695
      %v1773 = vpop.f32.mrf.mxu0
      %v1774 = vadd.f32 %v1686, %v1773
      %v1775 = vpop.f32.mrf.mxu0
      %1776 = vdwg.mxu0
      %v1778 = vsel %vm1263, %v1764, 0
      %v1781 = vsel %vm1263, %v1769, 0
      %v1784 = vsel %vm1263, %v1774, 0
      %v1787 = vsel %vm1263, %v1255, 0
      %v1790 = vsel %vm1263, %v1260, 0
      %1792 = vmatprep.subr.mxu0 0.0
      %1793 = vmatpush1.xpose.msra.mxu0 0.0
      %1794 = vmatprep.subr.mxu0 0.0
      %1795 = vmatpush1.xpose.msra.mxu0 0.0
      %1796 = vmatprep.subr.mxu0 0.0
      %1797 = vmatpush1.xpose.msra.mxu0 0.0
      %1798 = vmatprep.subr.mxu0 0.0
      %1799 = vmatpush1.xpose.msra.mxu0 0.0
      %1800 = vmatprep.subr.mxu0 0.0
      %1801 = vmatpush1.xpose.msra.mxu0 0.0
      %1802 = vmatprep.subr.mxu0 0.0
      %1803 = vmatpush1.xpose.msra.mxu0 0.0
      %1804 = vmatprep.subr.mxu0 0.0
      %1805 = vmatpush1.xpose.msra.mxu0 0.0
      %1806 = vmatprep.subr.mxu0 0.0
      %1807 = vmatpush1.xpose.msra.mxu0 0.0
      %1808 = vmatprep.subr.mxu0 0.0
      %1809 = vmatpush1.xpose.msra.mxu0 0.0
      %1810 = vmatprep.subr.mxu0 0.0
      %1811 = vmatpush1.xpose.msra.mxu0 0.0
      %1812 = vmatprep.subr.mxu0 0.0
      %1813 = vmatpush1.xpose.msra.mxu0 0.0
      %1814 = vmatprep.subr.mxu0 0.0
      %1815 = vmatpush1.xpose.msra.mxu0 0.0
      %1816 = vmatprep.subr.mxu0 0.0
      %1817 = vmatpush1.xpose.msra.mxu0 0.0
      %1818 = vmatprep.subr.mxu0 0.0
      %1819 = vmatpush1.xpose.msra.mxu0 0.0
      %1820 = vmatprep.subr.mxu0 0.0
      %v1821 = vand.u32 %v1790, 4294901760
      %1822 = vmatpush1.xpose.msra.mxu0 %v1821
      %1823 = vmatprep.subr.mxu0 0.0
      %v1824 = vand.u32 %v1787, 4294901760
      %1825 = vmatpush1.xpose.msra.mxu0 %v1824
      %1826 = vmatprep.subr.mxu0 0.0
      %1827 = vmatpush2.xpose.msra.mxu0 0.0
      %1828 = vmatprep.subr.mxu0 0.0
      %1829 = vmatpush2.xpose.msra.mxu0 0.0
      %1830 = vmatprep.subr.mxu0 0.0
      %1831 = vmatpush2.xpose.msra.mxu0 0.0
      %1832 = vmatprep.subr.mxu0 0.0
      %1833 = vmatpush2.xpose.msra.mxu0 0.0
      %1834 = vmatprep.subr.mxu0 0.0
      %1835 = vmatpush2.xpose.msra.mxu0 0.0
      %1836 = vmatprep.subr.mxu0 0.0
      %1837 = vmatpush2.xpose.msra.mxu0 0.0
      %1838 = vmatprep.subr.mxu0 0.0
      %1839 = vmatpush2.xpose.msra.mxu0 0.0
      %1840 = vmatprep.subr.mxu0 0.0
      %1841 = vmatpush2.xpose.msra.mxu0 0.0
      %1842 = vmatprep.subr.mxu0 0.0
      %1843 = vmatpush2.xpose.msra.mxu0 0.0
      %1844 = vmatprep.subr.mxu0 0.0
      %1845 = vmatpush2.xpose.msra.mxu0 0.0
      %1846 = vmatprep.subr.mxu0 0.0
      %1847 = vmatpush2.xpose.msra.mxu0 0.0
      %1848 = vmatprep.subr.mxu0 0.0
      %1849 = vmatpush2.xpose.msra.mxu0 0.0
      %1850 = vmatprep.subr.mxu0 0.0
      %1851 = vmatpush2.xpose.msra.mxu0 0.0
      %1852 = vmatprep.subr.mxu0 0.0
      %1853 = vmatpush2.xpose.msra.mxu0 0.0
      %1854 = vmatprep.subr.mxu0 0.0
      %1855 = vmatpush2.xpose.msra.mxu0 0.0
      %1856 = vmatprep.subr.mxu0 0.0
      %1857 = vmatpush2.xpose.msra.mxu0 0.0
      %1858 = vmatprep.mubr.f32.mxu0 0.0
      %v1859 = vand.u32 %v1778, 4294901760
      %v1860 = vsub.f32 %v1778, %v1859
      %v1861 = vand.u32 %v1860, 4294901760
      %v1862 = vsub.f32 %v1860, %v1861
      %v1863 = vand.u32 %v1862, 4294901760
      %1864 = vmatmul.mubr.f32.gmra.mxu0 %v1863
      %v1865 = vpop.f32.mrf.mxu0
      %v1866 = vadd.f32 0.0, %v1865
      %v1867 = vpop.f32.mrf.mxu0
      %1868 = vmatprep.mubr.f32.mxu0 0.0
      %v1869 = vand.u32 %v1781, 4294901760
      %v1870 = vsub.f32 %v1781, %v1869
      %v1871 = vand.u32 %v1870, 4294901760
      %v1872 = vsub.f32 %v1870, %v1871
      %v1873 = vand.u32 %v1872, 4294901760
      %1874 = vmatmul.mubr.f32.gmra.mxu0 %v1873
      %v1875 = vpop.f32.mrf.mxu0
      %v1876 = vadd.f32 0.0, %v1875
      %v1877 = vpop.f32.mrf.mxu0
      %1878 = vmatprep.mubr.f32.mxu0 0.0
      %v1879 = vand.u32 %v1784, 4294901760
      %v1880 = vsub.f32 %v1784, %v1879
      %v1881 = vand.u32 %v1880, 4294901760
      %v1882 = vsub.f32 %v1880, %v1881
      %v1883 = vand.u32 %v1882, 4294901760
      %1884 = vmatmul.mubr.f32.gmra.mxu0 %v1883
      %v1885 = vpop.f32.mrf.mxu0
      %v1886 = vadd.f32 0.0, %v1885
      %v1887 = vpop.f32.mrf.mxu0
      %1888 = vdwg.mxu0
      %1889 = vmatprep.subr.mxu0 0.0
      %1890 = vmatpush1.xpose.msra.mxu0 0.0
      %1891 = vmatprep.subr.mxu0 0.0
      %1892 = vmatpush1.xpose.msra.mxu0 0.0
      %1893 = vmatprep.subr.mxu0 0.0
      %1894 = vmatpush1.xpose.msra.mxu0 0.0
      %1895 = vmatprep.subr.mxu0 0.0
      %1896 = vmatpush1.xpose.msra.mxu0 0.0
      %1897 = vmatprep.subr.mxu0 0.0
      %1898 = vmatpush1.xpose.msra.mxu0 0.0
      %1899 = vmatprep.subr.mxu0 0.0
      %1900 = vmatpush1.xpose.msra.mxu0 0.0
      %1901 = vmatprep.subr.mxu0 0.0
      %1902 = vmatpush1.xpose.msra.mxu0 0.0
      %1903 = vmatprep.subr.mxu0 0.0
      %1904 = vmatpush1.xpose.msra.mxu0 0.0
      %1905 = vmatprep.subr.mxu0 0.0
      %1906 = vmatpush1.xpose.msra.mxu0 0.0
      %1907 = vmatprep.subr.mxu0 0.0
      %1908 = vmatpush1.xpose.msra.mxu0 0.0
      %1909 = vmatprep.subr.mxu0 0.0
      %1910 = vmatpush1.xpose.msra.mxu0 0.0
      %1911 = vmatprep.subr.mxu0 0.0
      %1912 = vmatpush1.xpose.msra.mxu0 0.0
      %1913 = vmatprep.subr.mxu0 0.0
      %1914 = vmatpush1.xpose.msra.mxu0 0.0
      %1915 = vmatprep.subr.mxu0 0.0
      %1916 = vmatpush1.xpose.msra.mxu0 0.0
      %1917 = vmatprep.subr.mxu0 0.0
      %v1918 = vand.u32 %v1790, 4294901760
      %v1919 = vsub.f32 %v1790, %v1918
      %v1920 = vand.u32 %v1919, 4294901760
      %v1921 = vsub.f32 %v1919, %v1920
      %v1922 = vand.u32 %v1921, 4294901760
      %1923 = vmatpush1.xpose.msra.mxu0 %v1922
      %1924 = vmatprep.subr.mxu0 0.0
      %v1925 = vand.u32 %v1787, 4294901760
      %v1926 = vsub.f32 %v1787, %v1925
      %v1927 = vand.u32 %v1926, 4294901760
      %v1928 = vsub.f32 %v1926, %v1927
      %v1929 = vand.u32 %v1928, 4294901760
      %1930 = vmatpush1.xpose.msra.mxu0 %v1929
      %1931 = vmatprep.subr.mxu0 0.0
      %1932 = vmatpush2.xpose.msra.mxu0 0.0
      %1933 = vmatprep.subr.mxu0 0.0
      %1934 = vmatpush2.xpose.msra.mxu0 0.0
      %1935 = vmatprep.subr.mxu0 0.0
      %1936 = vmatpush2.xpose.msra.mxu0 0.0
      %1937 = vmatprep.subr.mxu0 0.0
      %1938 = vmatpush2.xpose.msra.mxu0 0.0
      %1939 = vmatprep.subr.mxu0 0.0
      %1940 = vmatpush2.xpose.msra.mxu0 0.0
      %1941 = vmatprep.subr.mxu0 0.0
      %1942 = vmatpush2.xpose.msra.mxu0 0.0
      %1943 = vmatprep.subr.mxu0 0.0
      %1944 = vmatpush2.xpose.msra.mxu0 0.0
      %1945 = vmatprep.subr.mxu0 0.0
      %1946 = vmatpush2.xpose.msra.mxu0 0.0
      %1947 = vmatprep.subr.mxu0 0.0
      %1948 = vmatpush2.xpose.msra.mxu0 0.0
      %1949 = vmatprep.subr.mxu0 0.0
      %1950 = vmatpush2.xpose.msra.mxu0 0.0
      %1951 = vmatprep.subr.mxu0 0.0
      %1952 = vmatpush2.xpose.msra.mxu0 0.0
      %1953 = vmatprep.subr.mxu0 0.0
      %1954 = vmatpush2.xpose.msra.mxu0 0.0
      %1955 = vmatprep.subr.mxu0 0.0
      %1956 = vmatpush2.xpose.msra.mxu0 0.0
      %1957 = vmatprep.subr.mxu0 0.0
      %1958 = vmatpush2.xpose.msra.mxu0 0.0
      %1959 = vmatprep.subr.mxu0 0.0
      %1960 = vmatpush2.xpose.msra.mxu0 0.0
      %1961 = vmatprep.subr.mxu0 0.0
      %1962 = vmatpush2.xpose.msra.mxu0 0.0
      %1963 = vmatprep.mubr.f32.mxu0 0.0
      %v1964 = vand.u32 %v1778, 4294901760
      %1965 = vmatmul.mubr.f32.gmra.mxu0 %v1964
      %v1966 = vpop.f32.mrf.mxu0
      %v1967 = vadd.f32 %v1866, %v1966
      %v1968 = vpop.f32.mrf.mxu0
      %1969 = vmatprep.mubr.f32.mxu0 0.0
      %v1970 = vand.u32 %v1781, 4294901760
      %1971 = vmatmul.mubr.f32.gmra.mxu0 %v1970
      %v1972 = vpop.f32.mrf.mxu0
      %v1973 = vadd.f32 %v1876, %v1972
      %v1974 = vpop.f32.mrf.mxu0
      %1975 = vmatprep.mubr.f32.mxu0 0.0
      %v1976 = vand.u32 %v1784, 4294901760
      %1977 = vmatmul.mubr.f32.gmra.mxu0 %v1976
      %v1978 = vpop.f32.mrf.mxu0
      %v1979 = vadd.f32 %v1886, %v1978
      %v1980 = vpop.f32.mrf.mxu0
      %1981 = vdwg.mxu0
      %1982 = vmatprep.subr.mxu0 0.0
      %1983 = vmatpush1.xpose.msra.mxu0 0.0
      %1984 = vmatprep.subr.mxu0 0.0
      %1985 = vmatpush1.xpose.msra.mxu0 0.0
      %1986 = vmatprep.subr.mxu0 0.0
      %1987 = vmatpush1.xpose.msra.mxu0 0.0
      %1988 = vmatprep.subr.mxu0 0.0
      %1989 = vmatpush1.xpose.msra.mxu0 0.0
      %1990 = vmatprep.subr.mxu0 0.0
      %1991 = vmatpush1.xpose.msra.mxu0 0.0
      %1992 = vmatprep.subr.mxu0 0.0
      %1993 = vmatpush1.xpose.msra.mxu0 0.0
      %1994 = vmatprep.subr.mxu0 0.0
      %1995 = vmatpush1.xpose.msra.mxu0 0.0
      %1996 = vmatprep.subr.mxu0 0.0
      %1997 = vmatpush1.xpose.msra.mxu0 0.0
      %1998 = vmatprep.subr.mxu0 0.0
      %1999 = vmatpush1.xpose.msra.mxu0 0.0
      %2000 = vmatprep.subr.mxu0 0.0
      %2001 = vmatpush1.xpose.msra.mxu0 0.0
      %2002 = vmatprep.subr.mxu0 0.0
      %2003 = vmatpush1.xpose.msra.mxu0 0.0
      %2004 = vmatprep.subr.mxu0 0.0
      %2005 = vmatpush1.xpose.msra.mxu0 0.0
      %2006 = vmatprep.subr.mxu0 0.0
      %2007 = vmatpush1.xpose.msra.mxu0 0.0
      %2008 = vmatprep.subr.mxu0 0.0
      %2009 = vmatpush1.xpose.msra.mxu0 0.0
      %2010 = vmatprep.subr.mxu0 0.0
      %v2011 = vand.u32 %v1790, 4294901760
      %v2012 = vsub.f32 %v1790, %v2011
      %2013 = vmatpush1.xpose.msra.mxu0 %v2012
      %2014 = vmatprep.subr.mxu0 0.0
      %v2015 = vand.u32 %v1787, 4294901760
      %v2016 = vsub.f32 %v1787, %v2015
      %2017 = vmatpush1.xpose.msra.mxu0 %v2016
      %2018 = vmatprep.subr.mxu0 0.0
      %2019 = vmatpush2.xpose.msra.mxu0 0.0
      %2020 = vmatprep.subr.mxu0 0.0
      %2021 = vmatpush2.xpose.msra.mxu0 0.0
      %2022 = vmatprep.subr.mxu0 0.0
      %2023 = vmatpush2.xpose.msra.mxu0 0.0
      %2024 = vmatprep.subr.mxu0 0.0
      %2025 = vmatpush2.xpose.msra.mxu0 0.0
      %2026 = vmatprep.subr.mxu0 0.0
      %2027 = vmatpush2.xpose.msra.mxu0 0.0
      %2028 = vmatprep.subr.mxu0 0.0
      %2029 = vmatpush2.xpose.msra.mxu0 0.0
      %2030 = vmatprep.subr.mxu0 0.0
      %2031 = vmatpush2.xpose.msra.mxu0 0.0
      %2032 = vmatprep.subr.mxu0 0.0
      %2033 = vmatpush2.xpose.msra.mxu0 0.0
      %2034 = vmatprep.subr.mxu0 0.0
      %2035 = vmatpush2.xpose.msra.mxu0 0.0
      %2036 = vmatprep.subr.mxu0 0.0
      %2037 = vmatpush2.xpose.msra.mxu0 0.0
      %2038 = vmatprep.subr.mxu0 0.0
      %2039 = vmatpush2.xpose.msra.mxu0 0.0
      %2040 = vmatprep.subr.mxu0 0.0
      %2041 = vmatpush2.xpose.msra.mxu0 0.0
      %2042 = vmatprep.subr.mxu0 0.0
      %2043 = vmatpush2.xpose.msra.mxu0 0.0
      %2044 = vmatprep.subr.mxu0 0.0
      %2045 = vmatpush2.xpose.msra.mxu0 0.0
      %2046 = vmatprep.subr.mxu0 0.0
      %2047 = vmatpush2.xpose.msra.mxu0 0.0
      %2048 = vmatprep.subr.mxu0 0.0
      %2049 = vmatpush2.xpose.msra.mxu0 0.0
      %2050 = vmatprep.mubr.f32.mxu0 0.0
      %v2051 = vand.u32 %v1778, 4294901760
      %v2052 = vsub.f32 %v1778, %v2051
      %2053 = vmatmul.mubr.f32.gmra.mxu0 %v2052
      %v2054 = vpop.f32.mrf.mxu0
      %v2055 = vadd.f32 %v1967, %v2054
      %v2056 = vpop.f32.mrf.mxu0
      %2057 = vmatprep.mubr.f32.mxu0 0.0
      %v2058 = vand.u32 %v1781, 4294901760
      %v2059 = vsub.f32 %v1781, %v2058
      %2060 = vmatmul.mubr.f32.gmra.mxu0 %v2059
      %v2061 = vpop.f32.mrf.mxu0
      %v2062 = vadd.f32 %v1973, %v2061
      %v2063 = vpop.f32.mrf.mxu0
      %2064 = vmatprep.mubr.f32.mxu0 0.0
      %v2065 = vand.u32 %v1784, 4294901760
      %v2066 = vsub.f32 %v1784, %v2065
      %2067 = vmatmul.mubr.f32.gmra.mxu0 %v2066
      %v2068 = vpop.f32.mrf.mxu0
      %v2069 = vadd.f32 %v1979, %v2068
      %v2070 = vpop.f32.mrf.mxu0
      %2071 = vdwg.mxu0
      %2072 = vmatprep.subr.mxu0 0.0
      %2073 = vmatpush1.xpose.msra.mxu0 0.0
      %2074 = vmatprep.subr.mxu0 0.0
      %2075 = vmatpush1.xpose.msra.mxu0 0.0
      %2076 = vmatprep.subr.mxu0 0.0
      %2077 = vmatpush1.xpose.msra.mxu0 0.0
      %2078 = vmatprep.subr.mxu0 0.0
      %2079 = vmatpush1.xpose.msra.mxu0 0.0
      %2080 = vmatprep.subr.mxu0 0.0
      %2081 = vmatpush1.xpose.msra.mxu0 0.0
      %2082 = vmatprep.subr.mxu0 0.0
      %2083 = vmatpush1.xpose.msra.mxu0 0.0
      %2084 = vmatprep.subr.mxu0 0.0
      %2085 = vmatpush1.xpose.msra.mxu0 0.0
      %2086 = vmatprep.subr.mxu0 0.0
      %2087 = vmatpush1.xpose.msra.mxu0 0.0
      %2088 = vmatprep.subr.mxu0 0.0
      %2089 = vmatpush1.xpose.msra.mxu0 0.0
      %2090 = vmatprep.subr.mxu0 0.0
      %2091 = vmatpush1.xpose.msra.mxu0 0.0
      %2092 = vmatprep.subr.mxu0 0.0
      %2093 = vmatpush1.xpose.msra.mxu0 0.0
      %2094 = vmatprep.subr.mxu0 0.0
      %2095 = vmatpush1.xpose.msra.mxu0 0.0
      %2096 = vmatprep.subr.mxu0 0.0
      %2097 = vmatpush1.xpose.msra.mxu0 0.0
      %2098 = vmatprep.subr.mxu0 0.0
      %2099 = vmatpush1.xpose.msra.mxu0 0.0
      %2100 = vmatprep.subr.mxu0 0.0
      %v2101 = vand.u32 %v1790, 4294901760
      %2102 = vmatpush1.xpose.msra.mxu0 %v2101
      %2103 = vmatprep.subr.mxu0 0.0
      %v2104 = vand.u32 %v1787, 4294901760
      %2105 = vmatpush1.xpose.msra.mxu0 %v2104
      %2106 = vmatprep.subr.mxu0 0.0
      %2107 = vmatpush2.xpose.msra.mxu0 0.0
      %2108 = vmatprep.subr.mxu0 0.0
      %2109 = vmatpush2.xpose.msra.mxu0 0.0
      %2110 = vmatprep.subr.mxu0 0.0
      %2111 = vmatpush2.xpose.msra.mxu0 0.0
      %2112 = vmatprep.subr.mxu0 0.0
      %2113 = vmatpush2.xpose.msra.mxu0 0.0
      %2114 = vmatprep.subr.mxu0 0.0
      %2115 = vmatpush2.xpose.msra.mxu0 0.0
      %2116 = vmatprep.subr.mxu0 0.0
      %2117 = vmatpush2.xpose.msra.mxu0 0.0
      %2118 = vmatprep.subr.mxu0 0.0
      %2119 = vmatpush2.xpose.msra.mxu0 0.0
      %2120 = vmatprep.subr.mxu0 0.0
      %2121 = vmatpush2.xpose.msra.mxu0 0.0
      %2122 = vmatprep.subr.mxu0 0.0
      %2123 = vmatpush2.xpose.msra.mxu0 0.0
      %2124 = vmatprep.subr.mxu0 0.0
      %2125 = vmatpush2.xpose.msra.mxu0 0.0
      %2126 = vmatprep.subr.mxu0 0.0
      %2127 = vmatpush2.xpose.msra.mxu0 0.0
      %2128 = vmatprep.subr.mxu0 0.0
      %2129 = vmatpush2.xpose.msra.mxu0 0.0
      %2130 = vmatprep.subr.mxu0 0.0
      %2131 = vmatpush2.xpose.msra.mxu0 0.0
      %2132 = vmatprep.subr.mxu0 0.0
      %2133 = vmatpush2.xpose.msra.mxu0 0.0
      %2134 = vmatprep.subr.mxu0 0.0
      %2135 = vmatpush2.xpose.msra.mxu0 0.0
      %2136 = vmatprep.subr.mxu0 0.0
      %2137 = vmatpush2.xpose.msra.mxu0 0.0
      %2138 = vmatprep.mubr.f32.mxu0 0.0
      %v2139 = vand.u32 %v1778, 4294901760
      %v2140 = vsub.f32 %v1778, %v2139
      %v2141 = vand.u32 %v2140, 4294901760
      %2142 = vmatmul.mubr.f32.gmra.mxu0 %v2141
      %v2143 = vpop.f32.mrf.mxu0
      %v2144 = vadd.f32 %v2055, %v2143
      %v2145 = vpop.f32.mrf.mxu0
      %2146 = vmatprep.mubr.f32.mxu0 0.0
      %v2147 = vand.u32 %v1781, 4294901760
      %v2148 = vsub.f32 %v1781, %v2147
      %v2149 = vand.u32 %v2148, 4294901760
      %2150 = vmatmul.mubr.f32.gmra.mxu0 %v2149
      %v2151 = vpop.f32.mrf.mxu0
      %v2152 = vadd.f32 %v2062, %v2151
      %v2153 = vpop.f32.mrf.mxu0
      %2154 = vmatprep.mubr.f32.mxu0 0.0
      %v2155 = vand.u32 %v1784, 4294901760
      %v2156 = vsub.f32 %v1784, %v2155
      %v2157 = vand.u32 %v2156, 4294901760
      %2158 = vmatmul.mubr.f32.gmra.mxu0 %v2157
      %v2159 = vpop.f32.mrf.mxu0
      %v2160 = vadd.f32 %v2069, %v2159
      %v2161 = vpop.f32.mrf.mxu0
      %2162 = vdwg.mxu0
      %2163 = vmatprep.subr.mxu0 0.0
      %2164 = vmatpush1.xpose.msra.mxu0 0.0
      %2165 = vmatprep.subr.mxu0 0.0
      %2166 = vmatpush1.xpose.msra.mxu0 0.0
      %2167 = vmatprep.subr.mxu0 0.0
      %2168 = vmatpush1.xpose.msra.mxu0 0.0
      %2169 = vmatprep.subr.mxu0 0.0
      %2170 = vmatpush1.xpose.msra.mxu0 0.0
      %2171 = vmatprep.subr.mxu0 0.0
      %2172 = vmatpush1.xpose.msra.mxu0 0.0
      %2173 = vmatprep.subr.mxu0 0.0
      %2174 = vmatpush1.xpose.msra.mxu0 0.0
      %2175 = vmatprep.subr.mxu0 0.0
      %2176 = vmatpush1.xpose.msra.mxu0 0.0
      %2177 = vmatprep.subr.mxu0 0.0
      %2178 = vmatpush1.xpose.msra.mxu0 0.0
      %2179 = vmatprep.subr.mxu0 0.0
      %2180 = vmatpush1.xpose.msra.mxu0 0.0
      %2181 = vmatprep.subr.mxu0 0.0
      %2182 = vmatpush1.xpose.msra.mxu0 0.0
      %2183 = vmatprep.subr.mxu0 0.0
      %2184 = vmatpush1.xpose.msra.mxu0 0.0
      %2185 = vmatprep.subr.mxu0 0.0
      %2186 = vmatpush1.xpose.msra.mxu0 0.0
      %2187 = vmatprep.subr.mxu0 0.0
      %2188 = vmatpush1.xpose.msra.mxu0 0.0
      %2189 = vmatprep.subr.mxu0 0.0
      %2190 = vmatpush1.xpose.msra.mxu0 0.0
      %2191 = vmatprep.subr.mxu0 0.0
      %v2192 = vand.u32 %v1790, 4294901760
      %v2193 = vsub.f32 %v1790, %v2192
      %v2194 = vand.u32 %v2193, 4294901760
      %2195 = vmatpush1.xpose.msra.mxu0 %v2194
      %2196 = vmatprep.subr.mxu0 0.0
      %v2197 = vand.u32 %v1787, 4294901760
      %v2198 = vsub.f32 %v1787, %v2197
      %v2199 = vand.u32 %v2198, 4294901760
      %2200 = vmatpush1.xpose.msra.mxu0 %v2199
      %2201 = vmatprep.subr.mxu0 0.0
      %2202 = vmatpush2.xpose.msra.mxu0 0.0
      %2203 = vmatprep.subr.mxu0 0.0
      %2204 = vmatpush2.xpose.msra.mxu0 0.0
      %2205 = vmatprep.subr.mxu0 0.0
      %2206 = vmatpush2.xpose.msra.mxu0 0.0
      %2207 = vmatprep.subr.mxu0 0.0
      %2208 = vmatpush2.xpose.msra.mxu0 0.0
      %2209 = vmatprep.subr.mxu0 0.0
      %2210 = vmatpush2.xpose.msra.mxu0 0.0
      %2211 = vmatprep.subr.mxu0 0.0
      %2212 = vmatpush2.xpose.msra.mxu0 0.0
      %2213 = vmatprep.subr.mxu0 0.0
      %2214 = vmatpush2.xpose.msra.mxu0 0.0
      %2215 = vmatprep.subr.mxu0 0.0
      %2216 = vmatpush2.xpose.msra.mxu0 0.0
      %2217 = vmatprep.subr.mxu0 0.0
      %2218 = vmatpush2.xpose.msra.mxu0 0.0
      %2219 = vmatprep.subr.mxu0 0.0
      %2220 = vmatpush2.xpose.msra.mxu0 0.0
      %2221 = vmatprep.subr.mxu0 0.0
      %2222 = vmatpush2.xpose.msra.mxu0 0.0
      %2223 = vmatprep.subr.mxu0 0.0
      %2224 = vmatpush2.xpose.msra.mxu0 0.0
      %2225 = vmatprep.subr.mxu0 0.0
      %2226 = vmatpush2.xpose.msra.mxu0 0.0
      %2227 = vmatprep.subr.mxu0 0.0
      %2228 = vmatpush2.xpose.msra.mxu0 0.0
      %2229 = vmatprep.subr.mxu0 0.0
      %2230 = vmatpush2.xpose.msra.mxu0 0.0
      %2231 = vmatprep.subr.mxu0 0.0
      %2232 = vmatpush2.xpose.msra.mxu0 0.0
      %2233 = vmatprep.mubr.f32.mxu0 0.0
      %v2234 = vand.u32 %v1778, 4294901760
      %2235 = vmatmul.mubr.f32.gmra.mxu0 %v2234
      %v2236 = vpop.f32.mrf.mxu0
      %v2237 = vadd.f32 %v2144, %v2236
      %v2238 = vpop.f32.mrf.mxu0
      %2239 = vmatprep.mubr.f32.mxu0 0.0
      %v2240 = vand.u32 %v1781, 4294901760
      %2241 = vmatmul.mubr.f32.gmra.mxu0 %v2240
      %v2242 = vpop.f32.mrf.mxu0
      %v2243 = vadd.f32 %v2152, %v2242
      %v2244 = vpop.f32.mrf.mxu0
      %2245 = vmatprep.mubr.f32.mxu0 0.0
      %v2246 = vand.u32 %v1784, 4294901760
      %2247 = vmatmul.mubr.f32.gmra.mxu0 %v2246
      %v2248 = vpop.f32.mrf.mxu0
      %v2249 = vadd.f32 %v2160, %v2248
      %v2250 = vpop.f32.mrf.mxu0
      %2251 = vdwg.mxu0
      %2252 = vmatprep.subr.mxu0 0.0
      %2253 = vmatpush1.xpose.msra.mxu0 0.0
      %2254 = vmatprep.subr.mxu0 0.0
      %2255 = vmatpush1.xpose.msra.mxu0 0.0
      %2256 = vmatprep.subr.mxu0 0.0
      %2257 = vmatpush1.xpose.msra.mxu0 0.0
      %2258 = vmatprep.subr.mxu0 0.0
      %2259 = vmatpush1.xpose.msra.mxu0 0.0
      %2260 = vmatprep.subr.mxu0 0.0
      %2261 = vmatpush1.xpose.msra.mxu0 0.0
      %2262 = vmatprep.subr.mxu0 0.0
      %2263 = vmatpush1.xpose.msra.mxu0 0.0
      %2264 = vmatprep.subr.mxu0 0.0
      %2265 = vmatpush1.xpose.msra.mxu0 0.0
      %2266 = vmatprep.subr.mxu0 0.0
      %2267 = vmatpush1.xpose.msra.mxu0 0.0
      %2268 = vmatprep.subr.mxu0 0.0
      %2269 = vmatpush1.xpose.msra.mxu0 0.0
      %2270 = vmatprep.subr.mxu0 0.0
      %2271 = vmatpush1.xpose.msra.mxu0 0.0
      %2272 = vmatprep.subr.mxu0 0.0
      %2273 = vmatpush1.xpose.msra.mxu0 0.0
      %2274 = vmatprep.subr.mxu0 0.0
      %2275 = vmatpush1.xpose.msra.mxu0 0.0
      %2276 = vmatprep.subr.mxu0 0.0
      %2277 = vmatpush1.xpose.msra.mxu0 0.0
      %2278 = vmatprep.subr.mxu0 0.0
      %2279 = vmatpush1.xpose.msra.mxu0 0.0
      %2280 = vmatprep.subr.mxu0 0.0
      %v2281 = vand.u32 %v1790, 4294901760
      %2282 = vmatpush1.xpose.msra.mxu0 %v2281
      %2283 = vmatprep.subr.mxu0 0.0
      %v2284 = vand.u32 %v1787, 4294901760
      %2285 = vmatpush1.xpose.msra.mxu0 %v2284
      %2286 = vmatprep.subr.mxu0 0.0
      %2287 = vmatpush2.xpose.msra.mxu0 0.0
      %2288 = vmatprep.subr.mxu0 0.0
      %2289 = vmatpush2.xpose.msra.mxu0 0.0
      %2290 = vmatprep.subr.mxu0 0.0
      %2291 = vmatpush2.xpose.msra.mxu0 0.0
      %2292 = vmatprep.subr.mxu0 0.0
      %2293 = vmatpush2.xpose.msra.mxu0 0.0
      %2294 = vmatprep.subr.mxu0 0.0
      %2295 = vmatpush2.xpose.msra.mxu0 0.0
      %2296 = vmatprep.subr.mxu0 0.0
      %2297 = vmatpush2.xpose.msra.mxu0 0.0
      %2298 = vmatprep.subr.mxu0 0.0
      %2299 = vmatpush2.xpose.msra.mxu0 0.0
      %2300 = vmatprep.subr.mxu0 0.0
      %2301 = vmatpush2.xpose.msra.mxu0 0.0
      %2302 = vmatprep.subr.mxu0 0.0
      %2303 = vmatpush2.xpose.msra.mxu0 0.0
      %2304 = vmatprep.subr.mxu0 0.0
      %2305 = vmatpush2.xpose.msra.mxu0 0.0
      %2306 = vmatprep.subr.mxu0 0.0
      %2307 = vmatpush2.xpose.msra.mxu0 0.0
      %2308 = vmatprep.subr.mxu0 0.0
      %2309 = vmatpush2.xpose.msra.mxu0 0.0
      %2310 = vmatprep.subr.mxu0 0.0
      %2311 = vmatpush2.xpose.msra.mxu0 0.0
      %2312 = vmatprep.subr.mxu0 0.0
      %2313 = vmatpush2.xpose.msra.mxu0 0.0
      %2314 = vmatprep.subr.mxu0 0.0
      %2315 = vmatpush2.xpose.msra.mxu0 0.0
      %2316 = vmatprep.subr.mxu0 0.0
      %2317 = vmatpush2.xpose.msra.mxu0 0.0
      %2318 = vmatprep.mubr.f32.mxu0 0.0
      %v2319 = vand.u32 %v1778, 4294901760
      %2320 = vmatmul.mubr.f32.gmra.mxu0 %v2319
      %v2321 = vpop.f32.mrf.mxu0
      %v2322 = vadd.f32 %v2237, %v2321
      %v2323 = vpop.f32.mrf.mxu0
      %2324 = vmatprep.mubr.f32.mxu0 0.0
      %v2325 = vand.u32 %v1781, 4294901760
      %2326 = vmatmul.mubr.f32.gmra.mxu0 %v2325
      %v2327 = vpop.f32.mrf.mxu0
      %v2328 = vadd.f32 %v2243, %v2327
      %v2329 = vpop.f32.mrf.mxu0
      %2330 = vmatprep.mubr.f32.mxu0 0.0
      %v2331 = vand.u32 %v1784, 4294901760
      %2332 = vmatmul.mubr.f32.gmra.mxu0 %v2331
      %v2333 = vpop.f32.mrf.mxu0
      %v2334 = vadd.f32 %v2249, %v2333
      %v2335 = vpop.f32.mrf.mxu0
      %2336 = vdwg.mxu0
      %v2337 = vmul.f32 %v1255, %v1255
      %v2338 = vmul.f32 %v1260, %v1260
      %v2340 = vsel %vm1263, 1.0, 0
      %v2343 = vsel %vm1263, %v2337, 0
      %v2346 = vsel %vm1263, %v2338, 0
      %2348 = vmatprep.subr.mxu0 0.0
      %2349 = vmatpush1.xpose.msra.mxu0 0.0
      %2350 = vmatprep.subr.mxu0 0.0
      %2351 = vmatpush1.xpose.msra.mxu0 0.0
      %2352 = vmatprep.subr.mxu0 0.0
      %2353 = vmatpush1.xpose.msra.mxu0 0.0
      %2354 = vmatprep.subr.mxu0 0.0
      %2355 = vmatpush1.xpose.msra.mxu0 0.0
      %2356 = vmatprep.subr.mxu0 0.0
      %2357 = vmatpush1.xpose.msra.mxu0 0.0
      %2358 = vmatprep.subr.mxu0 0.0
      %2359 = vmatpush1.xpose.msra.mxu0 0.0
      %2360 = vmatprep.subr.mxu0 0.0
      %2361 = vmatpush1.xpose.msra.mxu0 0.0
      %2362 = vmatprep.subr.mxu0 0.0
      %2363 = vmatpush1.xpose.msra.mxu0 0.0
      %2364 = vmatprep.subr.mxu0 0.0
      %2365 = vmatpush1.xpose.msra.mxu0 0.0
      %2366 = vmatprep.subr.mxu0 0.0
      %2367 = vmatpush1.xpose.msra.mxu0 0.0
      %2368 = vmatprep.subr.mxu0 0.0
      %2369 = vmatpush1.xpose.msra.mxu0 0.0
      %2370 = vmatprep.subr.mxu0 0.0
      %2371 = vmatpush1.xpose.msra.mxu0 0.0
      %2372 = vmatprep.subr.mxu0 0.0
      %2373 = vmatpush1.xpose.msra.mxu0 0.0
      %2374 = vmatprep.subr.mxu0 0.0
      %2375 = vmatpush1.xpose.msra.mxu0 0.0
      %2376 = vmatprep.subr.mxu0 0.0
      %v2377 = vand.u32 %v2346, 4294901760
      %2378 = vmatpush1.xpose.msra.mxu0 %v2377
      %2379 = vmatprep.subr.mxu0 0.0
      %v2380 = vand.u32 %v2343, 4294901760
      %2381 = vmatpush1.xpose.msra.mxu0 %v2380
      %2382 = vmatprep.subr.mxu0 0.0
      %2383 = vmatpush2.xpose.msra.mxu0 0.0
      %2384 = vmatprep.subr.mxu0 0.0
      %2385 = vmatpush2.xpose.msra.mxu0 0.0
      %2386 = vmatprep.subr.mxu0 0.0
      %2387 = vmatpush2.xpose.msra.mxu0 0.0
      %2388 = vmatprep.subr.mxu0 0.0
      %2389 = vmatpush2.xpose.msra.mxu0 0.0
      %2390 = vmatprep.subr.mxu0 0.0
      %2391 = vmatpush2.xpose.msra.mxu0 0.0
      %2392 = vmatprep.subr.mxu0 0.0
      %2393 = vmatpush2.xpose.msra.mxu0 0.0
      %2394 = vmatprep.subr.mxu0 0.0
      %2395 = vmatpush2.xpose.msra.mxu0 0.0
      %2396 = vmatprep.subr.mxu0 0.0
      %2397 = vmatpush2.xpose.msra.mxu0 0.0
      %2398 = vmatprep.subr.mxu0 0.0
      %2399 = vmatpush2.xpose.msra.mxu0 0.0
      %2400 = vmatprep.subr.mxu0 0.0
      %2401 = vmatpush2.xpose.msra.mxu0 0.0
      %2402 = vmatprep.subr.mxu0 0.0
      %2403 = vmatpush2.xpose.msra.mxu0 0.0
      %2404 = vmatprep.subr.mxu0 0.0
      %2405 = vmatpush2.xpose.msra.mxu0 0.0
      %2406 = vmatprep.subr.mxu0 0.0
      %2407 = vmatpush2.xpose.msra.mxu0 0.0
      %2408 = vmatprep.subr.mxu0 0.0
      %2409 = vmatpush2.xpose.msra.mxu0 0.0
      %2410 = vmatprep.subr.mxu0 0.0
      %2411 = vmatpush2.xpose.msra.mxu0 0.0
      %2412 = vmatprep.subr.mxu0 0.0
      %2413 = vmatpush2.xpose.msra.mxu0 0.0
      %2414 = vmatprep.mubr.f32.mxu0 0.0
      %v2415 = vand.u32 %v2340, 4294901760
      %v2416 = vsub.f32 %v2340, %v2415
      %v2417 = vand.u32 %v2416, 4294901760
      %v2418 = vsub.f32 %v2416, %v2417
      %v2419 = vand.u32 %v2418, 4294901760
      %2420 = vmatmul.mubr.f32.gmra.mxu0 %v2419
      %v2421 = vpop.f32.mrf.mxu0
      %v2422 = vadd.f32 0.0, %v2421
      %v2423 = vpop.f32.mrf.mxu0
      %2424 = vdwg.mxu0
      %2425 = vmatprep.subr.mxu0 0.0
      %2426 = vmatpush1.xpose.msra.mxu0 0.0
      %2427 = vmatprep.subr.mxu0 0.0
      %2428 = vmatpush1.xpose.msra.mxu0 0.0
      %2429 = vmatprep.subr.mxu0 0.0
      %2430 = vmatpush1.xpose.msra.mxu0 0.0
      %2431 = vmatprep.subr.mxu0 0.0
      %2432 = vmatpush1.xpose.msra.mxu0 0.0
      %2433 = vmatprep.subr.mxu0 0.0
      %2434 = vmatpush1.xpose.msra.mxu0 0.0
      %2435 = vmatprep.subr.mxu0 0.0
      %2436 = vmatpush1.xpose.msra.mxu0 0.0
      %2437 = vmatprep.subr.mxu0 0.0
      %2438 = vmatpush1.xpose.msra.mxu0 0.0
      %2439 = vmatprep.subr.mxu0 0.0
      %2440 = vmatpush1.xpose.msra.mxu0 0.0
      %2441 = vmatprep.subr.mxu0 0.0
      %2442 = vmatpush1.xpose.msra.mxu0 0.0
      %2443 = vmatprep.subr.mxu0 0.0
      %2444 = vmatpush1.xpose.msra.mxu0 0.0
      %2445 = vmatprep.subr.mxu0 0.0
      %2446 = vmatpush1.xpose.msra.mxu0 0.0
      %2447 = vmatprep.subr.mxu0 0.0
      %2448 = vmatpush1.xpose.msra.mxu0 0.0
      %2449 = vmatprep.subr.mxu0 0.0
      %2450 = vmatpush1.xpose.msra.mxu0 0.0
      %2451 = vmatprep.subr.mxu0 0.0
      %2452 = vmatpush1.xpose.msra.mxu0 0.0
      %2453 = vmatprep.subr.mxu0 0.0
      %v2454 = vand.u32 %v2346, 4294901760
      %v2455 = vsub.f32 %v2346, %v2454
      %v2456 = vand.u32 %v2455, 4294901760
      %v2457 = vsub.f32 %v2455, %v2456
      %v2458 = vand.u32 %v2457, 4294901760
      %2459 = vmatpush1.xpose.msra.mxu0 %v2458
      %2460 = vmatprep.subr.mxu0 0.0
      %v2461 = vand.u32 %v2343, 4294901760
      %v2462 = vsub.f32 %v2343, %v2461
      %v2463 = vand.u32 %v2462, 4294901760
      %v2464 = vsub.f32 %v2462, %v2463
      %v2465 = vand.u32 %v2464, 4294901760
      %2466 = vmatpush1.xpose.msra.mxu0 %v2465
      %2467 = vmatprep.subr.mxu0 0.0
      %2468 = vmatpush2.xpose.msra.mxu0 0.0
      %2469 = vmatprep.subr.mxu0 0.0
      %2470 = vmatpush2.xpose.msra.mxu0 0.0
      %2471 = vmatprep.subr.mxu0 0.0
      %2472 = vmatpush2.xpose.msra.mxu0 0.0
      %2473 = vmatprep.subr.mxu0 0.0
      %2474 = vmatpush2.xpose.msra.mxu0 0.0
      %2475 = vmatprep.subr.mxu0 0.0
      %2476 = vmatpush2.xpose.msra.mxu0 0.0
      %2477 = vmatprep.subr.mxu0 0.0
      %2478 = vmatpush2.xpose.msra.mxu0 0.0
      %2479 = vmatprep.subr.mxu0 0.0
      %2480 = vmatpush2.xpose.msra.mxu0 0.0
      %2481 = vmatprep.subr.mxu0 0.0
      %2482 = vmatpush2.xpose.msra.mxu0 0.0
      %2483 = vmatprep.subr.mxu0 0.0
      %2484 = vmatpush2.xpose.msra.mxu0 0.0
      %2485 = vmatprep.subr.mxu0 0.0
      %2486 = vmatpush2.xpose.msra.mxu0 0.0
      %2487 = vmatprep.subr.mxu0 0.0
      %2488 = vmatpush2.xpose.msra.mxu0 0.0
      %2489 = vmatprep.subr.mxu0 0.0
      %2490 = vmatpush2.xpose.msra.mxu0 0.0
      %2491 = vmatprep.subr.mxu0 0.0
      %2492 = vmatpush2.xpose.msra.mxu0 0.0
      %2493 = vmatprep.subr.mxu0 0.0
      %2494 = vmatpush2.xpose.msra.mxu0 0.0
      %2495 = vmatprep.subr.mxu0 0.0
      %2496 = vmatpush2.xpose.msra.mxu0 0.0
      %2497 = vmatprep.subr.mxu0 0.0
      %2498 = vmatpush2.xpose.msra.mxu0 0.0
      %2499 = vmatprep.mubr.f32.mxu0 0.0
      %v2500 = vand.u32 %v2340, 4294901760
      %2501 = vmatmul.mubr.f32.gmra.mxu0 %v2500
      %v2502 = vpop.f32.mrf.mxu0
      %v2503 = vadd.f32 %v2422, %v2502
      %v2504 = vpop.f32.mrf.mxu0
      %2505 = vdwg.mxu0
      %2506 = vmatprep.subr.mxu0 0.0
      %2507 = vmatpush1.xpose.msra.mxu0 0.0
      %2508 = vmatprep.subr.mxu0 0.0
      %2509 = vmatpush1.xpose.msra.mxu0 0.0
      %2510 = vmatprep.subr.mxu0 0.0
      %2511 = vmatpush1.xpose.msra.mxu0 0.0
      %2512 = vmatprep.subr.mxu0 0.0
      %2513 = vmatpush1.xpose.msra.mxu0 0.0
      %2514 = vmatprep.subr.mxu0 0.0
      %2515 = vmatpush1.xpose.msra.mxu0 0.0
      %2516 = vmatprep.subr.mxu0 0.0
      %2517 = vmatpush1.xpose.msra.mxu0 0.0
      %2518 = vmatprep.subr.mxu0 0.0
      %2519 = vmatpush1.xpose.msra.mxu0 0.0
      %2520 = vmatprep.subr.mxu0 0.0
      %2521 = vmatpush1.xpose.msra.mxu0 0.0
      %2522 = vmatprep.subr.mxu0 0.0
      %2523 = vmatpush1.xpose.msra.mxu0 0.0
      %2524 = vmatprep.subr.mxu0 0.0
      %2525 = vmatpush1.xpose.msra.mxu0 0.0
      %2526 = vmatprep.subr.mxu0 0.0
      %2527 = vmatpush1.xpose.msra.mxu0 0.0
      %2528 = vmatprep.subr.mxu0 0.0
      %2529 = vmatpush1.xpose.msra.mxu0 0.0
      %2530 = vmatprep.subr.mxu0 0.0
      %2531 = vmatpush1.xpose.msra.mxu0 0.0
      %2532 = vmatprep.subr.mxu0 0.0
      %2533 = vmatpush1.xpose.msra.mxu0 0.0
      %2534 = vmatprep.subr.mxu0 0.0
      %v2535 = vand.u32 %v2346, 4294901760
      %v2536 = vsub.f32 %v2346, %v2535
      %2537 = vmatpush1.xpose.msra.mxu0 %v2536
      %2538 = vmatprep.subr.mxu0 0.0
      %v2539 = vand.u32 %v2343, 4294901760
      %v2540 = vsub.f32 %v2343, %v2539
      %2541 = vmatpush1.xpose.msra.mxu0 %v2540
      %2542 = vmatprep.subr.mxu0 0.0
      %2543 = vmatpush2.xpose.msra.mxu0 0.0
      %2544 = vmatprep.subr.mxu0 0.0
      %2545 = vmatpush2.xpose.msra.mxu0 0.0
      %2546 = vmatprep.subr.mxu0 0.0
      %2547 = vmatpush2.xpose.msra.mxu0 0.0
      %2548 = vmatprep.subr.mxu0 0.0
      %2549 = vmatpush2.xpose.msra.mxu0 0.0
      %2550 = vmatprep.subr.mxu0 0.0
      %2551 = vmatpush2.xpose.msra.mxu0 0.0
      %2552 = vmatprep.subr.mxu0 0.0
      %2553 = vmatpush2.xpose.msra.mxu0 0.0
      %2554 = vmatprep.subr.mxu0 0.0
      %2555 = vmatpush2.xpose.msra.mxu0 0.0
      %2556 = vmatprep.subr.mxu0 0.0
      %2557 = vmatpush2.xpose.msra.mxu0 0.0
      %2558 = vmatprep.subr.mxu0 0.0
      %2559 = vmatpush2.xpose.msra.mxu0 0.0
      %2560 = vmatprep.subr.mxu0 0.0
      %2561 = vmatpush2.xpose.msra.mxu0 0.0
      %2562 = vmatprep.subr.mxu0 0.0
      %2563 = vmatpush2.xpose.msra.mxu0 0.0
      %2564 = vmatprep.subr.mxu0 0.0
      %2565 = vmatpush2.xpose.msra.mxu0 0.0
      %2566 = vmatprep.subr.mxu0 0.0
      %2567 = vmatpush2.xpose.msra.mxu0 0.0
      %2568 = vmatprep.subr.mxu0 0.0
      %2569 = vmatpush2.xpose.msra.mxu0 0.0
      %2570 = vmatprep.subr.mxu0 0.0
      %2571 = vmatpush2.xpose.msra.mxu0 0.0
      %2572 = vmatprep.subr.mxu0 0.0
      %2573 = vmatpush2.xpose.msra.mxu0 0.0
      %2574 = vmatprep.mubr.f32.mxu0 0.0
      %v2575 = vand.u32 %v2340, 4294901760
      %v2576 = vsub.f32 %v2340, %v2575
      %2577 = vmatmul.mubr.f32.gmra.mxu0 %v2576
      %v2578 = vpop.f32.mrf.mxu0
      %v2579 = vadd.f32 %v2503, %v2578
      %v2580 = vpop.f32.mrf.mxu0
      %2581 = vdwg.mxu0
      %2582 = vmatprep.subr.mxu0 0.0
      %2583 = vmatpush1.xpose.msra.mxu0 0.0
      %2584 = vmatprep.subr.mxu0 0.0
      %2585 = vmatpush1.xpose.msra.mxu0 0.0
      %2586 = vmatprep.subr.mxu0 0.0
      %2587 = vmatpush1.xpose.msra.mxu0 0.0
      %2588 = vmatprep.subr.mxu0 0.0
      %2589 = vmatpush1.xpose.msra.mxu0 0.0
      %2590 = vmatprep.subr.mxu0 0.0
      %2591 = vmatpush1.xpose.msra.mxu0 0.0
      %2592 = vmatprep.subr.mxu0 0.0
      %2593 = vmatpush1.xpose.msra.mxu0 0.0
      %2594 = vmatprep.subr.mxu0 0.0
      %2595 = vmatpush1.xpose.msra.mxu0 0.0
      %2596 = vmatprep.subr.mxu0 0.0
      %2597 = vmatpush1.xpose.msra.mxu0 0.0
      %2598 = vmatprep.subr.mxu0 0.0
      %2599 = vmatpush1.xpose.msra.mxu0 0.0
      %2600 = vmatprep.subr.mxu0 0.0
      %2601 = vmatpush1.xpose.msra.mxu0 0.0
      %2602 = vmatprep.subr.mxu0 0.0
      %2603 = vmatpush1.xpose.msra.mxu0 0.0
      %2604 = vmatprep.subr.mxu0 0.0
      %2605 = vmatpush1.xpose.msra.mxu0 0.0
      %2606 = vmatprep.subr.mxu0 0.0
      %2607 = vmatpush1.xpose.msra.mxu0 0.0
      %2608 = vmatprep.subr.mxu0 0.0
      %2609 = vmatpush1.xpose.msra.mxu0 0.0
      %2610 = vmatprep.subr.mxu0 0.0
      %v2611 = vand.u32 %v2346, 4294901760
      %2612 = vmatpush1.xpose.msra.mxu0 %v2611
      %2613 = vmatprep.subr.mxu0 0.0
      %v2614 = vand.u32 %v2343, 4294901760
      %2615 = vmatpush1.xpose.msra.mxu0 %v2614
      %2616 = vmatprep.subr.mxu0 0.0
      %2617 = vmatpush2.xpose.msra.mxu0 0.0
      %2618 = vmatprep.subr.mxu0 0.0
      %2619 = vmatpush2.xpose.msra.mxu0 0.0
      %2620 = vmatprep.subr.mxu0 0.0
      %2621 = vmatpush2.xpose.msra.mxu0 0.0
      %2622 = vmatprep.subr.mxu0 0.0
      %2623 = vmatpush2.xpose.msra.mxu0 0.0
      %2624 = vmatprep.subr.mxu0 0.0
      %2625 = vmatpush2.xpose.msra.mxu0 0.0
      %2626 = vmatprep.subr.mxu0 0.0
      %2627 = vmatpush2.xpose.msra.mxu0 0.0
      %2628 = vmatprep.subr.mxu0 0.0
      %2629 = vmatpush2.xpose.msra.mxu0 0.0
      %2630 = vmatprep.subr.mxu0 0.0
      %2631 = vmatpush2.xpose.msra.mxu0 0.0
      %2632 = vmatprep.subr.mxu0 0.0
      %2633 = vmatpush2.xpose.msra.mxu0 0.0
      %2634 = vmatprep.subr.mxu0 0.0
      %2635 = vmatpush2.xpose.msra.mxu0 0.0
      %2636 = vmatprep.subr.mxu0 0.0
      %2637 = vmatpush2.xpose.msra.mxu0 0.0
      %2638 = vmatprep.subr.mxu0 0.0
      %2639 = vmatpush2.xpose.msra.mxu0 0.0
      %2640 = vmatprep.subr.mxu0 0.0
      %2641 = vmatpush2.xpose.msra.mxu0 0.0
      %2642 = vmatprep.subr.mxu0 0.0
      %2643 = vmatpush2.xpose.msra.mxu0 0.0
      %2644 = vmatprep.subr.mxu0 0.0
      %2645 = vmatpush2.xpose.msra.mxu0 0.0
      %2646 = vmatprep.subr.mxu0 0.0
      %2647 = vmatpush2.xpose.msra.mxu0 0.0
      %2648 = vmatprep.mubr.f32.mxu0 0.0
      %v2649 = vand.u32 %v2340, 4294901760
      %v2650 = vsub.f32 %v2340, %v2649
      %v2651 = vand.u32 %v2650, 4294901760
      %2652 = vmatmul.mubr.f32.gmra.mxu0 %v2651
      %v2653 = vpop.f32.mrf.mxu0
      %v2654 = vadd.f32 %v2579, %v2653
      %v2655 = vpop.f32.mrf.mxu0
      %2656 = vdwg.mxu0
      %2657 = vmatprep.subr.mxu0 0.0
      %2658 = vmatpush1.xpose.msra.mxu0 0.0
      %2659 = vmatprep.subr.mxu0 0.0
      %2660 = vmatpush1.xpose.msra.mxu0 0.0
      %2661 = vmatprep.subr.mxu0 0.0
      %2662 = vmatpush1.xpose.msra.mxu0 0.0
      %2663 = vmatprep.subr.mxu0 0.0
      %2664 = vmatpush1.xpose.msra.mxu0 0.0
      %2665 = vmatprep.subr.mxu0 0.0
      %2666 = vmatpush1.xpose.msra.mxu0 0.0
      %2667 = vmatprep.subr.mxu0 0.0
      %2668 = vmatpush1.xpose.msra.mxu0 0.0
      %2669 = vmatprep.subr.mxu0 0.0
      %2670 = vmatpush1.xpose.msra.mxu0 0.0
      %2671 = vmatprep.subr.mxu0 0.0
      %2672 = vmatpush1.xpose.msra.mxu0 0.0
      %2673 = vmatprep.subr.mxu0 0.0
      %2674 = vmatpush1.xpose.msra.mxu0 0.0
      %2675 = vmatprep.subr.mxu0 0.0
      %2676 = vmatpush1.xpose.msra.mxu0 0.0
      %2677 = vmatprep.subr.mxu0 0.0
      %2678 = vmatpush1.xpose.msra.mxu0 0.0
      %2679 = vmatprep.subr.mxu0 0.0
      %2680 = vmatpush1.xpose.msra.mxu0 0.0
      %2681 = vmatprep.subr.mxu0 0.0
      %2682 = vmatpush1.xpose.msra.mxu0 0.0
      %2683 = vmatprep.subr.mxu0 0.0
      %2684 = vmatpush1.xpose.msra.mxu0 0.0
      %2685 = vmatprep.subr.mxu0 0.0
      %v2686 = vand.u32 %v2346, 4294901760
      %v2687 = vsub.f32 %v2346, %v2686
      %v2688 = vand.u32 %v2687, 4294901760
      %2689 = vmatpush1.xpose.msra.mxu0 %v2688
      %2690 = vmatprep.subr.mxu0 0.0
      %v2691 = vand.u32 %v2343, 4294901760
      %v2692 = vsub.f32 %v2343, %v2691
      %v2693 = vand.u32 %v2692, 4294901760
      %2694 = vmatpush1.xpose.msra.mxu0 %v2693
      %2695 = vmatprep.subr.mxu0 0.0
      %2696 = vmatpush2.xpose.msra.mxu0 0.0
      %2697 = vmatprep.subr.mxu0 0.0
      %2698 = vmatpush2.xpose.msra.mxu0 0.0
      %2699 = vmatprep.subr.mxu0 0.0
      %2700 = vmatpush2.xpose.msra.mxu0 0.0
      %2701 = vmatprep.subr.mxu0 0.0
      %2702 = vmatpush2.xpose.msra.mxu0 0.0
      %2703 = vmatprep.subr.mxu0 0.0
      %2704 = vmatpush2.xpose.msra.mxu0 0.0
      %2705 = vmatprep.subr.mxu0 0.0
      %2706 = vmatpush2.xpose.msra.mxu0 0.0
      %2707 = vmatprep.subr.mxu0 0.0
      %2708 = vmatpush2.xpose.msra.mxu0 0.0
      %2709 = vmatprep.subr.mxu0 0.0
      %2710 = vmatpush2.xpose.msra.mxu0 0.0
      %2711 = vmatprep.subr.mxu0 0.0
      %2712 = vmatpush2.xpose.msra.mxu0 0.0
      %2713 = vmatprep.subr.mxu0 0.0
      %2714 = vmatpush2.xpose.msra.mxu0 0.0
      %2715 = vmatprep.subr.mxu0 0.0
      %2716 = vmatpush2.xpose.msra.mxu0 0.0
      %2717 = vmatprep.subr.mxu0 0.0
      %2718 = vmatpush2.xpose.msra.mxu0 0.0
      %2719 = vmatprep.subr.mxu0 0.0
      %2720 = vmatpush2.xpose.msra.mxu0 0.0
      %2721 = vmatprep.subr.mxu0 0.0
      %2722 = vmatpush2.xpose.msra.mxu0 0.0
      %2723 = vmatprep.subr.mxu0 0.0
      %2724 = vmatpush2.xpose.msra.mxu0 0.0
      %2725 = vmatprep.subr.mxu0 0.0
      %2726 = vmatpush2.xpose.msra.mxu0 0.0
      %2727 = vmatprep.mubr.f32.mxu0 0.0
      %v2728 = vand.u32 %v2340, 4294901760
      %2729 = vmatmul.mubr.f32.gmra.mxu0 %v2728
      %v2730 = vpop.f32.mrf.mxu0
      %v2731 = vadd.f32 %v2654, %v2730
      %v2732 = vpop.f32.mrf.mxu0
      %2733 = vdwg.mxu0
      %2734 = vmatprep.subr.mxu0 0.0
      %2735 = vmatpush1.xpose.msra.mxu0 0.0
      %2736 = vmatprep.subr.mxu0 0.0
      %2737 = vmatpush1.xpose.msra.mxu0 0.0
      %2738 = vmatprep.subr.mxu0 0.0
      %2739 = vmatpush1.xpose.msra.mxu0 0.0
      %2740 = vmatprep.subr.mxu0 0.0
      %2741 = vmatpush1.xpose.msra.mxu0 0.0
      %2742 = vmatprep.subr.mxu0 0.0
      %2743 = vmatpush1.xpose.msra.mxu0 0.0
      %2744 = vmatprep.subr.mxu0 0.0
      %2745 = vmatpush1.xpose.msra.mxu0 0.0
      %2746 = vmatprep.subr.mxu0 0.0
      %2747 = vmatpush1.xpose.msra.mxu0 0.0
      %2748 = vmatprep.subr.mxu0 0.0
      %2749 = vmatpush1.xpose.msra.mxu0 0.0
      %2750 = vmatprep.subr.mxu0 0.0
      %2751 = vmatpush1.xpose.msra.mxu0 0.0
      %2752 = vmatprep.subr.mxu0 0.0
      %2753 = vmatpush1.xpose.msra.mxu0 0.0
      %2754 = vmatprep.subr.mxu0 0.0
      %2755 = vmatpush1.xpose.msra.mxu0 0.0
      %2756 = vmatprep.subr.mxu0 0.0
      %2757 = vmatpush1.xpose.msra.mxu0 0.0
      %2758 = vmatprep.subr.mxu0 0.0
      %2759 = vmatpush1.xpose.msra.mxu0 0.0
      %2760 = vmatprep.subr.mxu0 0.0
      %2761 = vmatpush1.xpose.msra.mxu0 0.0
      %2762 = vmatprep.subr.mxu0 0.0
      %v2763 = vand.u32 %v2346, 4294901760
      %2764 = vmatpush1.xpose.msra.mxu0 %v2763
      %2765 = vmatprep.subr.mxu0 0.0
      %v2766 = vand.u32 %v2343, 4294901760
      %2767 = vmatpush1.xpose.msra.mxu0 %v2766
      %2768 = vmatprep.subr.mxu0 0.0
      %2769 = vmatpush2.xpose.msra.mxu0 0.0
      %2770 = vmatprep.subr.mxu0 0.0
      %2771 = vmatpush2.xpose.msra.mxu0 0.0
      %2772 = vmatprep.subr.mxu0 0.0
      %2773 = vmatpush2.xpose.msra.mxu0 0.0
      %2774 = vmatprep.subr.mxu0 0.0
      %2775 = vmatpush2.xpose.msra.mxu0 0.0
      %2776 = vmatprep.subr.mxu0 0.0
      %2777 = vmatpush2.xpose.msra.mxu0 0.0
      %2778 = vmatprep.subr.mxu0 0.0
      %2779 = vmatpush2.xpose.msra.mxu0 0.0
      %2780 = vmatprep.subr.mxu0 0.0
      %2781 = vmatpush2.xpose.msra.mxu0 0.0
      %2782 = vmatprep.subr.mxu0 0.0
      %2783 = vmatpush2.xpose.msra.mxu0 0.0
      %2784 = vmatprep.subr.mxu0 0.0
      %2785 = vmatpush2.xpose.msra.mxu0 0.0
      %2786 = vmatprep.subr.mxu0 0.0
      %2787 = vmatpush2.xpose.msra.mxu0 0.0
      %2788 = vmatprep.subr.mxu0 0.0
      %2789 = vmatpush2.xpose.msra.mxu0 0.0
      %2790 = vmatprep.subr.mxu0 0.0
      %2791 = vmatpush2.xpose.msra.mxu0 0.0
      %2792 = vmatprep.subr.mxu0 0.0
      %2793 = vmatpush2.xpose.msra.mxu0 0.0
      %2794 = vmatprep.subr.mxu0 0.0
      %2795 = vmatpush2.xpose.msra.mxu0 0.0
      %2796 = vmatprep.subr.mxu0 0.0
      %2797 = vmatpush2.xpose.msra.mxu0 0.0
      %2798 = vmatprep.subr.mxu0 0.0
      %2799 = vmatpush2.xpose.msra.mxu0 0.0
      %2800 = vmatprep.mubr.f32.mxu0 0.0
      %v2801 = vand.u32 %v2340, 4294901760
      %2802 = vmatmul.mubr.f32.gmra.mxu0 %v2801
      %v2803 = vpop.f32.mrf.mxu0
      %v2804 = vadd.f32 %v2731, %v2803
      %v2805 = vpop.f32.mrf.mxu0
      %2806 = vdwg.mxu0
      %v2807 = vmul.f32 %v2322, 2.0
      %v2808 = vmul.f32 %v2328, 2.0
      %v2809 = vmul.f32 %v2334, 2.0
      %v2810 = vlaneseq
      %v2811 = vshrl.u32 %v2810, 7
      %v2812 = vsub.s32 0, %v2811
      %v2813 = vrot.slane %v2804, %v2812
      %v2814 = vsub.f32 %v2813, %v2807
      %v2815 = vsub.f32 %v2813, %v2808
      %v2816 = vsub.f32 %v2813, %v2809
      %v2817 = vmul.f32 %v2814, -0.0005
      %v2818 = vmul.f32 %v2815, -0.0005
      %v2819 = vmul.f32 %v2816, -0.0005
      %vm2820 = vcmask 97280
      %v2821 = vsel %vm2820, %v2817, -inf
      %2822 = vmax.xlane.f32.xlu0 %v2821
      %v2823 = vpop.xlane.xlu0 %2822
      %v2824 = vsel %vm2820, %v2818, -inf
      %2825 = vmax.xlane.f32.xlu0 %v2824
      %v2826 = vpop.xlane.xlu0 %2825
      %v2827 = vsel %vm2820, %v2819, -inf
      %2828 = vmax.xlane.f32.xlu0 %v2827
      %v2829 = vpop.xlane.xlu0 %2828
      %v2830 = vsub.f32 %v2817, %v2823
      %v2831 = vsub.f32 %v2818, %v2826
      %v2832 = vsub.f32 %v2819, %v2829
      %v2833 = vmul.f32 %v2830, 1.442695
      %v2834 = vpow.pop %v2833
      %v2835 = vmul.f32 %v2831, 1.442695
      %v2836 = vpow.pop %v2835
      %v2837 = vmul.f32 %v2832, 1.442695
      %v2838 = vpow.pop %v2837
      %v2839 = vsel %vm2820, %v2834, 0.0
      %2840 = vadd.xlane.f32.xlu0 %v2839
      %v2841 = vpop.xlane.xlu0 %2840
      %v2842 = vsel %vm2820, %v2836, 0.0
      %2843 = vadd.xlane.f32.xlu0 %v2842
      %v2844 = vpop.xlane.xlu0 %2843
      %v2845 = vsel %vm2820, %v2838, 0.0
      %2846 = vadd.xlane.f32.xlu0 %v2845
      %v2847 = vpop.xlane.xlu0 %2846
      %v2848 = vld [vmem:[%s697] sm:$0xff]
      %v2849 = vld [vmem:[%s697 + $0x8] sm:$0xff]
      %v2850 = vld [vmem:[%s697 + $0x10] sm:$0xff]
      %v2851 = vadd.f32 %v2848, 1e-08
      %v2852 = vadd.f32 %v2849, 1e-08
      %v2853 = vadd.f32 %v2850, 1e-08
      %v2854 = vlog2.pop %v2841
      %v2855 = vmul.f32 %v2854, 0.6931472
      %v2856 = vlog2.pop %v2844
      %v2857 = vmul.f32 %v2856, 0.6931472
      %v2858 = vlog2.pop %v2847
      %v2859 = vmul.f32 %v2858, 0.6931472
      %v2860 = vsub.f32 %v2830, %v2855
      %v2861 = vsub.f32 %v2831, %v2857
      %v2862 = vsub.f32 %v2832, %v2859
      %v2863 = vlog2.pop %v2851
      %v2864 = vmul.f32 %v2863, 0.6931472
      %v2865 = vlog2.pop %v2852
      %v2866 = vmul.f32 %v2865, 0.6931472
      %v2867 = vlog2.pop %v2853
      %v2868 = vmul.f32 %v2867, 0.6931472
      %v2869 = vadd.f32 %v2860, %v2864
      %v2870 = vadd.f32 %v2861, %v2866
      %v2871 = vadd.f32 %v2862, %v2868
      %2872 = vst.msk [vmem:[%s710] sm:$0xff] %vm2820, %v2869
      %2873 = vst.msk [vmem:[%s710 + $0x8] sm:$0xff] %vm2820, %v2870
      %2874 = vst.msk [vmem:[%s710 + $0x10] sm:$0xff] %vm2820, %v2871
      %v2875 = vmul.f32 %v2834, %v2851
      %v2876 = vmul.f32 %v2836, %v2852
      %v2877 = vmul.f32 %v2838, %v2853
      %v2878 = vld [vmem:[%s700] sm:$0x1]
      %vm2879 = vcmp.eq.s32.totalorder %v2878, 0
      %v2880 = vsel %vm2879, 1, 0
      %v2881 = vlaneseq
      %v2882 = vshrl.u32 %v2881, 7
      %v2883 = vsub.s32 0, %v2882
      %v2884 = vrot.slane %v2880, %v2883
      %vm2885 = vcmp.eq.s32.totalorder %v2884, 1
      %v2886 = vsel %vm2885, %v2875, 0.0
      %v2887 = vsel %vm2885, %v2876, 0.0
      %v2888 = vsel %vm2885, %v2877, 0.0
      %v2889 = vsel %vm2820, %v2886, 0.0
      %2890 = vadd.xlane.f32.xlu0 %v2889
      %v2891 = vpop.xlane.xlu0 %2890
      %v2892 = vsel %vm2820, %v2887, 0.0
      %2893 = vadd.xlane.f32.xlu0 %v2892
      %v2894 = vpop.xlane.xlu0 %2893
      %v2895 = vsel %vm2820, %v2888, 0.0
      %2896 = vadd.xlane.f32.xlu0 %v2895
      %v2897 = vpop.xlane.xlu0 %2896
      %v2898 = vrcp.pop %v2891
      %v2899 = vmul.f32 %v2886, %v2898
      %v2900 = vrcp.pop %v2894
      %v2901 = vmul.f32 %v2887, %v2900
      %v2902 = vrcp.pop %v2897
      %v2903 = vmul.f32 %v2888, %v2902
      %2904 = vst.msk [vmem:[%s705] sm:$0xff] %vm2820, %v2899
      %2905 = vst.msk [vmem:[%s705 + $0x8] sm:$0xff] %vm2820, %v2901
      %2906 = vst.msk [vmem:[%s705 + $0x10] sm:$0xff] %vm2820, %v2903
      %p2907 = scmp.lt.s32.totalorder %s32, 1
      %s2908 = scalar_select %p2907, %s32, 1
      %s2909 = smul.addr %s2908, 3
      %s2910 = smul.addr %s2909, 8
      %s2911 = scalar_lea.vmem %s19, %s2910
      %p2912 = scmp.lt.s32.totalorder %s32, 1
      %s2913 = scalar_select %p2912, %s32, 1
      %s2914 = smul.addr %s2913, 3
      %s2915 = smul.addr %s2914, 8
      %s2916 = scalar_lea.vmem %s20, %s2915
      // Predicated region
      $region97: #{tpu_custom_call.1} parent=95 // pred_check
        %p2917 = pneg %p474
      $region98: #{tpu_custom_call.1} parent=95 // pred_check_branch
        %2919 = sbr.rel (%p2917) target = $region100
      $region99: #{tpu_custom_call.1} parent=95 // pred_region
        _
      $region100: #{tpu_custom_call.1} parent=95 // pred_fallthru
        _
      // Predicated region
      $region101: #{tpu_custom_call.1} parent=95 // pred_check
        %p2920 = pneg %p500
      $region102: #{tpu_custom_call.1} parent=95 // pred_check_branch
        %2922 = sbr.rel (%p2920) target = $region104
      $region103: #{tpu_custom_call.1} parent=95 // pred_region
        _
      $region104: #{tpu_custom_call.1} parent=95 // pred_fallthru
        _
    $region96: #{tpu_custom_call.1} parent=5 // pred_fallthru
      _
    %p2923 = scmp.le.s32.totalorder 2, %s27
    // Predicated region
    $region105: #{tpu_custom_call.1} parent=5 // pred_check
      %p2924 = pneg %p2923
    $region106: #{tpu_custom_call.1} parent=5 // pred_check_branch
      %2926 = sbr.rel (%p2924) target = $region108
    $region107: #{tpu_custom_call.1} parent=5 // pred_region
      %s2927 = ssub.s32 %s27, 2
      // Predicated region
      $region109: #{tpu_custom_call.1} parent=107 // pred_check
        %p2928 = pneg %p480
      $region110: #{tpu_custom_call.1} parent=107 // pred_check_branch
        %2930 = sbr.rel (%p2928) target = $region112
      $region111: #{tpu_custom_call.1} parent=107 // pred_region
        %p2931 = scmp.lt.s32.totalorder %s33, 1
        %s2932 = scalar_select %p2931, %s33, 1
        %s2933 = smul.addr %s2932, 3
        %s2934 = smul.addr %s2933, 8
        %s2935 = scalar_lea.vmem %s19, %s2934
      $region112: #{tpu_custom_call.1} parent=107 // pred_fallthru
        _
      // Predicated region
      $region113: #{tpu_custom_call.1} parent=107 // pred_check
        %p2936 = pneg %p506
      $region114: #{tpu_custom_call.1} parent=107 // pred_check_branch
        %2938 = sbr.rel (%p2936) target = $region116
      $region115: #{tpu_custom_call.1} parent=107 // pred_region
        %p2939 = scmp.lt.s32.totalorder %s33, 1
        %s2940 = scalar_select %p2939, %s33, 1
        %s2941 = smul.addr %s2940, 3
        %s2942 = smul.addr %s2941, 8
        %s2943 = scalar_lea.vmem %s20, %s2942
      $region116: #{tpu_custom_call.1} parent=107 // pred_fallthru
        _
    $region108: #{tpu_custom_call.1} parent=5 // pred_fallthru
      _
  $region6: #{tpu_custom_call.1} parent=0 // loop_footer
    %s31 = sadd.s32 1, %s27
  $region7: #{tpu_custom_call.1} parent=0 // loop_footer_branch
    %26 = sbr.rel target = $region3
  $region8: #{tpu_custom_call.1} parent=0 // loop_exit
    _

</llo_original>
